<compile_context>
chip_gen: v5e
topology: v5e:2x2
jax: 0.10.0
libtpu: 0.0.40
codegen_flags: <defaults>
</compile_context>

<pallas_src>
import jax
import jax.numpy as jnp
from jax import lax
from jax.experimental import pallas as pl
from jax.experimental.pallas import tpu as pltpu

EPS = 1e-5


def _fused_kernel(x_ref, w1_ref, g1_ref, w2_ref, g2_ref, b2_ref, o_ref):
    # x_ref : (Cin, P)    f32   (same block for every grid step)
    # w1_ref: (Cmid, Cin) f32   (same block for every grid step)
    # g1_ref: (Cmid, 1)   f32   (same block for every grid step)
    # w2_ref: (Tout, Cmid) f32  (per C_out tile)
    # g2_ref/b2_ref: (Tout, 1) f32 (per C_out tile)
    # o_ref : (Tout, P)   f32   (per C_out tile)
    inv_p = 1.0 / x_ref.shape[1]

    # ---- conv2d68 (1x1) as MXU matmul: bf16 inputs, f32 accumulation. ----
    # Casts are done in-kernel (free VPU filler) instead of in the wrapper.
    xb = x_ref[...].astype(jnp.bfloat16)
    w1b = w1_ref[...].astype(jnp.bfloat16)
    y1 = jnp.dot(w1b, xb, preferred_element_type=jnp.float32)        # (Cmid, P)

    # ---- batchnorm2d40: training-mode batch stats, two-pass variance. ----
    mean1 = jnp.sum(y1, axis=1, keepdims=True) * inv_p               # (Cmid, 1)
    d1 = y1 - mean1
    var1 = jnp.sum(d1 * d1, axis=1, keepdims=True) * inv_p
    s1 = g1_ref[...] * lax.rsqrt(var1 + EPS)                         # (Cmid, 1)
    # BN1 shift (b1 - mean1*s1) is a per-channel constant in y2 and is
    # cancelled exactly by BN2's mean subtraction -> dropped entirely.

    # ---- conv2d69 (1x1): apply BN1's scale, then matmul for this tile. ----
    y1s = (y1 * s1).astype(jnp.bfloat16)                             # (Cmid, P)
    w2b = w2_ref[...].astype(jnp.bfloat16)
    y2 = jnp.dot(w2b, y1s, preferred_element_type=jnp.float32)       # (Tout, P)

    # ---- batchnorm2d41: two-pass batch stats (per-channel over P). ----
    mean2 = jnp.sum(y2, axis=1, keepdims=True) * inv_p               # (Tout, 1)
    d2 = y2 - mean2
    var2 = jnp.sum(d2 * d2, axis=1, keepdims=True) * inv_p
    s2 = g2_ref[...] * lax.rsqrt(var2 + EPS)                         # (Tout, 1)
    o_ref[...] = (d2 * s2 + b2_ref[...]).astype(o_ref.dtype)


def conv_bn_conv_bn(x_nchw, w1, g1, b1, w2, g2, b2, *, cout_tiles=2):
    """x_nchw: (N, 576, H, W) f32. Returns (N, 816, H, W) f32 (train-mode BN)."""
    del b1  # BN1 shift cancels inside BN2's mean subtraction (see kernel notes).
    N, C_in, H, W = x_nchw.shape
    C_mid = w1.shape[0]   # 136
    C_out = w2.shape[0]   # 816
    P = N * H * W

    # NCHW -> (Cin, P). For N == 1 this is a pure (free) reshape.
    if N == 1:
        x_cp = x_nchw.reshape(C_in, P)
    else:
        # TODO(synk): for N>1 consume NCHW via an N/P grid axis instead of a
        # full HBM transpose in the wrapper.
        x_cp = jnp.moveaxis(x_nchw, 1, 0).reshape(C_in, P)

    # torch conv weight (Cout, Cin, 1, 1) -> (Cout, Cin): free reshape, kept
    # f32; the bf16 cast happens inside the kernel.
    w1m = w1.reshape(C_mid, C_in)
    w2m = w2.reshape(C_out, C_mid)
    g1c = g1.reshape(C_mid, 1)
    g2c = g2.reshape(C_out, 1)
    b2c = b2.reshape(C_out, 1)

    assert C_out % cout_tiles == 0
    t_out = C_out // cout_tiles
    assert t_out % 8 == 0, t_out

    # Advisory cost estimate so XLA schedules around this tiny custom call.
    flops = 2 * (C_mid * C_in + C_out * C_mid) * P
    bytes_accessed = 4 * (C_in * P + C_mid * C_in + C_out * C_mid
                          + C_out * P + C_mid + 2 * C_out)
    cost = pl.CostEstimate(flops=flops,
                           transcendentals=C_mid + C_out,
                           bytes_accessed=bytes_accessed)

    out_cp = pl.pallas_call(
        _fused_kernel,
        out_shape=jax.ShapeDtypeStruct((C_out, P), jnp.float32),
        grid=(cout_tiles,),
        in_specs=[
            pl.BlockSpec((C_in, P), lambda i: (0, 0)),       # x: same every step
            pl.BlockSpec((C_mid, C_in), lambda i: (0, 0)),   # w1: same every step
            pl.BlockSpec((C_mid, 1), lambda i: (0, 0)),      # g1: same every step
            pl.BlockSpec((t_out, C_mid), lambda i: (i, 0)),  # w2 tile
            pl.BlockSpec((t_out, 1), lambda i: (i, 0)),      # g2 tile
            pl.BlockSpec((t_out, 1), lambda i: (i, 0)),      # b2 tile
        ],
        out_specs=pl.BlockSpec((t_out, P), lambda i: (i, 0)),
        compiler_params=pltpu.CompilerParams(
            dimension_semantics=("parallel",),
            vmem_limit_bytes=16 << 20,
        ),
        cost_estimate=cost,
    )(x_cp, w1m, g1c, w2m, g2c, b2c)

    # (Cout, P) -> NCHW (free reshape for N == 1).
    if N == 1:
        return out_cp.reshape(N, C_out, H, W)
    return jnp.moveaxis(out_cp.reshape(C_out, N, H, W), 0, 1)


def _reference(x_nchw, w1, g1, b1, w2, g2, b2):
    """Pure-JAX f32 reference matching nn.Module train-mode forward."""
    N, C_in, H, W = x_nchw.shape
    C_mid, C_out = w1.shape[0], w2.shape[0]
    x2d = jnp.transpose(x_nchw, (0, 2, 3, 1)).reshape(N * H * W, C_in)
    y1 = x2d @ w1.reshape(C_mid, C_in).T
    m1 = y1.mean(0)
    v1 = ((y1 - m1) ** 2).mean(0)
    y1n = (y1 - m1) * lax.rsqrt(v1 + EPS) * g1 + b1
    y2 = y1n @ w2.reshape(C_out, C_mid).T
    m2 = y2.mean(0)
    v2 = ((y2 - m2) ** 2).mean(0)
    y2n = (y2 - m2) * lax.rsqrt(v2 + EPS) * g2 + b2
    return jnp.transpose(y2n.reshape(N, H, W, C_out), (0, 3, 1, 2))


if __name__ == "__main__":
    key = jax.random.PRNGKey(0)
    kx, kw1, kw2 = jax.random.split(key, 3)

    # Module-implied shapes (1x1 convs fix the channel counts).
    N, H, W = 1, 14, 14
    C_in, C_mid, C_out = 576, 136, 816

    x = jax.random.normal(kx, (N, C_in, H, W), dtype=jnp.float32)

    # Deterministic parameter init (PyTorch defaults: BN gamma=1, beta=0).
    w1 = jax.random.normal(kw1, (C_mid, C_in, 1, 1), dtype=jnp.float32) * (1.0 / (C_in ** 0.5))
    w2 = jax.random.normal(kw2, (C_out, C_mid, 1, 1), dtype=jnp.float32) * (1.0 / (C_mid ** 0.5))
    g1 = jnp.ones((C_mid,), jnp.float32)
    b1 = jnp.zeros((C_mid,), jnp.float32)
    g2 = jnp.ones((C_out,), jnp.float32)
    b2 = jnp.zeros((C_out,), jnp.float32)

    out = conv_bn_conv_bn(x, w1, g1, b1, w2, g2, b2)
    jax.block_until_ready(out)

    assert out.shape == (N, C_out, H, W), out.shape
    assert out.dtype == jnp.float32

    # Loose tolerance: kernel uses bf16 MXU inputs with f32 accumulation.
    ref = _reference(x, w1, g1, b1, w2, g2, b2)
    err = jnp.max(jnp.abs(out - ref))
    assert float(err) < 0.1, f"max abs err {float(err)}"

    print("KERNEL_OK")
</pallas_src>

<mosaic_0001>
module attributes {stable_mosaic.version = 11 : i64} {
  func.func @_fused_kernel(%arg0: i32, %arg1: memref<576x196xf32, #tpu.memory_space<vmem>>, %arg2: memref<136x576xf32, #tpu.memory_space<vmem>>, %arg3: memref<136x1xf32, #tpu.memory_space<vmem>>, %arg4: memref<408x136xf32, #tpu.memory_space<vmem>>, %arg5: memref<408x1xf32, #tpu.memory_space<vmem>>, %arg6: memref<408x1xf32, #tpu.memory_space<vmem>>, %arg7: memref<408x196xf32, #tpu.memory_space<vmem>>) attributes {dimension_semantics = [#tpu.dimension_semantics<parallel>], iteration_bounds = array<i64: 2>, scalar_prefetch = 0 : i64, scratch_operands = 0 : i64, tpu.core_type = #tpu.core_type<tc>, window_params = [{pipeline_mode = #tpu.pipeline_mode<synchronous>, transform_indices = @transform_0, window_bounds = array<i64: 576, 196>}, {pipeline_mode = #tpu.pipeline_mode<synchronous>, transform_indices = @transform_1, window_bounds = array<i64: 136, 576>}, {pipeline_mode = #tpu.pipeline_mode<synchronous>, transform_indices = @transform_2, window_bounds = array<i64: 136, 1>}, {transform_indices = @transform_3, window_bounds = array<i64: 408, 136>}, {transform_indices = @transform_4, window_bounds = array<i64: 408, 1>}, {transform_indices = @transform_5, window_bounds = array<i64: 408, 1>}, {transform_indices = @transform_6, window_bounds = array<i64: 408, 196>}]} {
    %c0 = arith.constant 0 : index
    %c0_0 = arith.constant 0 : index
    %0 = vector.load %arg1[%c0, %c0_0] : memref<576x196xf32, #tpu.memory_space<vmem>>, vector<576x196xf32>
    %1 = arith.truncf %0 : vector<576x196xf32> to vector<576x196xbf16>
    %c0_1 = arith.constant 0 : index
    %c0_2 = arith.constant 0 : index
    %2 = vector.load %arg2[%c0_1, %c0_2] : memref<136x576xf32, #tpu.memory_space<vmem>>, vector<136x576xf32>
    %3 = arith.truncf %2 : vector<136x576xf32> to vector<136x576xbf16>
    %cst = arith.constant dense<0.000000e+00> : vector<136x196xf32>
    %4 = tpu.matmul %3, %1, %cst {dimension_numbers = #tpu.dot_dimension_numbers<[1], [0], [0], [1], [0, 0, 1, 1], [], []>} : vector<136x576xbf16>, vector<576x196xbf16>, vector<136x196xf32> -> vector<136x196xf32>
    %cst_3 = arith.constant dense<0.000000e+00> : vector<136xf32>
    %5 = vector.multi_reduction <add>, %4, %cst_3 [1] : vector<136x196xf32> to vector<136xf32>
    %6 = vector.shape_cast %5 : vector<136xf32> to vector<136x1xf32>
    %cst_4 = arith.constant 0.00510204071 : f32
    %7 = vector.broadcast %cst_4 : f32 to vector<136x1xf32>
    %8 = arith.mulf %6, %7 : vector<136x1xf32>
    %9 = vector.broadcast %8 : vector<136x1xf32> to vector<136x196xf32>
    %10 = arith.subf %4, %9 : vector<136x196xf32>
    %11 = arith.mulf %10, %10 : vector<136x196xf32>
    %cst_5 = arith.constant dense<0.000000e+00> : vector<136xf32>
    %12 = vector.multi_reduction <add>, %11, %cst_5 [1] : vector<136x196xf32> to vector<136xf32>
    %13 = vector.shape_cast %12 : vector<136xf32> to vector<136x1xf32>
    %cst_6 = arith.constant 0.00510204071 : f32
    %14 = vector.broadcast %cst_6 : f32 to vector<136x1xf32>
    %15 = arith.mulf %13, %14 : vector<136x1xf32>
    %c0_7 = arith.constant 0 : index
    %c0_8 = arith.constant 0 : index
    %16 = vector.load %arg3[%c0_7, %c0_8] : memref<136x1xf32, #tpu.memory_space<vmem>>, vector<136x1xf32>
    %cst_9 = arith.constant 9.99999974E-6 : f32
    %17 = vector.broadcast %cst_9 : f32 to vector<136x1xf32>
    %18 = arith.addf %15, %17 : vector<136x1xf32>
    %19 = math.rsqrt %18 : vector<136x1xf32>
    %20 = arith.mulf %16, %19 : vector<136x1xf32>
    %21 = vector.broadcast %20 : vector<136x1xf32> to vector<136x196xf32>
    %22 = arith.mulf %4, %21 : vector<136x196xf32>
    %23 = arith.truncf %22 : vector<136x196xf32> to vector<136x196xbf16>
    %c0_10 = arith.constant 0 : index
    %c0_11 = arith.constant 0 : index
    %24 = vector.load %arg4[%c0_10, %c0_11] : memref<408x136xf32, #tpu.memory_space<vmem>>, vector<408x136xf32>
    %25 = arith.truncf %24 : vector<408x136xf32> to vector<408x136xbf16>
    %cst_12 = arith.constant dense<0.000000e+00> : vector<408x196xf32>
    %26 = tpu.matmul %25, %23, %cst_12 {dimension_numbers = #tpu.dot_dimension_numbers<[1], [0], [0], [1], [0, 0, 1, 1], [], []>} : vector<408x136xbf16>, vector<136x196xbf16>, vector<408x196xf32> -> vector<408x196xf32>
    %cst_13 = arith.constant dense<0.000000e+00> : vector<408xf32>
    %27 = vector.multi_reduction <add>, %26, %cst_13 [1] : vector<408x196xf32> to vector<408xf32>
    %28 = vector.shape_cast %27 : vector<408xf32> to vector<408x1xf32>
    %cst_14 = arith.constant 0.00510204071 : f32
    %29 = vector.broadcast %cst_14 : f32 to vector<408x1xf32>
    %30 = arith.mulf %28, %29 : vector<408x1xf32>
    %31 = vector.broadcast %30 : vector<408x1xf32> to vector<408x196xf32>
    %32 = arith.subf %26, %31 : vector<408x196xf32>
    %33 = arith.mulf %32, %32 : vector<408x196xf32>
    %cst_15 = arith.constant dense<0.000000e+00> : vector<408xf32>
    %34 = vector.multi_reduction <add>, %33, %cst_15 [1] : vector<408x196xf32> to vector<408xf32>
    %35 = vector.shape_cast %34 : vector<408xf32> to vector<408x1xf32>
    %cst_16 = arith.constant 0.00510204071 : f32
    %36 = vector.broadcast %cst_16 : f32 to vector<408x1xf32>
    %37 = arith.mulf %35, %36 : vector<408x1xf32>
    %c0_17 = arith.constant 0 : index
    %c0_18 = arith.constant 0 : index
    %38 = vector.load %arg5[%c0_17, %c0_18] : memref<408x1xf32, #tpu.memory_space<vmem>>, vector<408x1xf32>
    %cst_19 = arith.constant 9.99999974E-6 : f32
    %39 = vector.broadcast %cst_19 : f32 to vector<408x1xf32>
    %40 = arith.addf %37, %39 : vector<408x1xf32>
    %41 = math.rsqrt %40 : vector<408x1xf32>
    %42 = arith.mulf %38, %41 : vector<408x1xf32>
    %43 = vector.broadcast %42 : vector<408x1xf32> to vector<408x196xf32>
    %44 = arith.mulf %32, %43 : vector<408x196xf32>
    %c0_20 = arith.constant 0 : index
    %c0_21 = arith.constant 0 : index
    %45 = vector.load %arg6[%c0_20, %c0_21] : memref<408x1xf32, #tpu.memory_space<vmem>>, vector<408x1xf32>
    %46 = vector.broadcast %45 : vector<408x1xf32> to vector<408x196xf32>
    %47 = arith.addf %44, %46 : vector<408x196xf32>
    %c0_22 = arith.constant 0 : index
    %c0_23 = arith.constant 0 : index
    %48 = vector.load %arg7[%c0_22, %c0_23] : memref<408x196xf32, #tpu.memory_space<vmem>>, vector<408x196xf32>
    tpu.vector_store %arg7[%c0_22, %c0_23], %47 {strides = array<i32>} : memref<408x196xf32, #tpu.memory_space<vmem>>, vector<408x196xf32>,
    return
  }
  func.func @transform_0(%arg0: i32) -> (i32, i32) {
    %c0_i32 = arith.constant 0 : i32
    %c0_i32_0 = arith.constant 0 : i32
    %c0_i32_1 = arith.constant 0 : i32
    return %c0_i32, %c0_i32_0 : i32, i32
  }
  func.func @transform_1(%arg0: i32) -> (i32, i32) {
    %c0_i32 = arith.constant 0 : i32
    %c0_i32_0 = arith.constant 0 : i32
    %c0_i32_1 = arith.constant 0 : i32
    return %c0_i32, %c0_i32_0 : i32, i32
  }
  func.func @transform_2(%arg0: i32) -> (i32, i32) {
    %c0_i32 = arith.constant 0 : i32
    %c0_i32_0 = arith.constant 0 : i32
    %c0_i32_1 = arith.constant 0 : i32
    return %c0_i32, %c0_i32_0 : i32, i32
  }
  func.func @transform_3(%arg0: i32) -> (i32, i32) {
    %c0_i32 = arith.constant 0 : i32
    %c0_i32_0 = arith.constant 0 : i32
    return %arg0, %c0_i32 : i32, i32
  }
  func.func @transform_4(%arg0: i32) -> (i32, i32) {
    %c0_i32 = arith.constant 0 : i32
    %c0_i32_0 = arith.constant 0 : i32
    return %arg0, %c0_i32 : i32, i32
  }
  func.func @transform_5(%arg0: i32) -> (i32, i32) {
    %c0_i32 = arith.constant 0 : i32
    %c0_i32_0 = arith.constant 0 : i32
    return %arg0, %c0_i32 : i32, i32
  }
  func.func @transform_6(%arg0: i32) -> (i32, i32) {
    %c0_i32 = arith.constant 0 : i32
    %c0_i32_0 = arith.constant 0 : i32
    return %arg0, %c0_i32 : i32, i32
  }
}

</mosaic_0001>

<llo_original>
// kernel: tpu_custom_call.1
$region0: #{tpu_custom_call.1}
  #allocation0 [shape = 'u32[]', space=smem, size = 0x4, offset = 0x4, fixed_abs, tag = 'smem constant byte address 0x4 - core index']
  #allocation1 [shape = 'u32[72,128]{1,0:T(1,128)}', space=vmem, size = 0x9000, scoped, tag = 'internal scratch']
  %s0 = inlined_call_operand.vmem [shape: f32[576,196], index: 0, kind: input, shape index: {}]
  %s1 = inlined_call_operand.vmem [shape: f32[136,576], index: 1, kind: input, shape index: {}]
  %s2 = inlined_call_operand.vmem [shape: f32[136,1], index: 2, kind: input, shape index: {}]
  %s3 = inlined_call_operand.vmem [shape: f32[816,136], index: 3, kind: input, shape index: {}]
  %s4 = inlined_call_operand.vmem [shape: f32[816,1], index: 4, kind: input, shape index: {}]
  %s5 = inlined_call_operand.vmem [shape: f32[816,1], index: 5, kind: input, shape index: {}]
  %s6 = inlined_call_operand.vmem [shape: f32[816,196], index: 6, kind: output, shape index: {}]
  %s7 = sld [smem:[#allocation0]]
  $region57: #{tpu_custom_call.1} parent=0
    _
  %s9 = ssub.s32 1, %s7
  %s10 = scalar_select 0, %s9, %s7
  loop: start=0, step=1, limit=4
  $region2: #{tpu_custom_call.1} parent=0 // loop_pre_header
    _
  $region3: #{tpu_custom_call.1} parent=0 // loop_header
    %s12 = sphi 0, %s16
    %p13 = scmp.ge.s32.totalorder %s12, 4
    %s20 = sphi 0, %s20
    %s22 = sphi 0, %s20
    %s23 = sphi 0, %s22
    %s37 = sphi 0, %s23
    %s41 = sphi 0, %s41
    %s43 = sphi 0, %s41
    %s44 = sphi 0, %s43
    %s58 = sphi 0, %s44
    %s62 = sphi 0, %s62
    %s64 = sphi 0, %s62
    %s65 = sphi 0, %s64
    %s79 = sphi 0, %s65
    %s85 = sphi 0, %s87
    %s88 = sphi 0, %s85
    %s89 = sphi 0, %s88
    %s105 = sphi 0, %s89
    %s111 = sphi 0, %s113
    %s114 = sphi 0, %s111
    %s115 = sphi 0, %s114
    %s131 = sphi 0, %s115
    %s137 = sphi 0, %s139
    %s140 = sphi 0, %s137
    %s141 = sphi 0, %s140
    %s157 = sphi 0, %s141
    %s163 = sphi 0, %s165
    %s166 = sphi 0, %s163
    %s167 = sphi 0, %s166
    %s183 = sphi 0, %s167
  $region4: #{tpu_custom_call.1} parent=0 // loop_header_branch
    %15 = sbr.rel (%p13) target = $region8
  $region5: #{tpu_custom_call.1} parent=0 // loop_body
    %s17 = ssub.s32 %s12, 1
    %s18 = ssub.s32 %s12, 2
    %s19 = sadd.s32 %s12, 1
    %s21 = sadd.s32 %s20, 1
    %p24 = scmp.eq.s32.totalorder %s12, 1
    %p25 = scmp.ne.s32.totalorder %s20, %s22
    %p26 = scmp.eq.s32.totalorder %s12, 0
    %p27 = por %p25, %p26
    %p28 = scmp.ne.s32.totalorder %s20, %s22
    %p29 = scmp.eq.s32.totalorder %s17, 1
    %p30 = por %p28, %p29
    %p31 = scmp.ne.s32.totalorder %s22, %s23
    %p32 = scmp.eq.s32.totalorder %s17, 0
    %p33 = por %p31, %p32
    %p34 = scmp.ne.s32.totalorder %s22, %s23
    %p35 = scmp.eq.s32.totalorder %s18, 1
    %p36 = por %p34, %p35
    %p38 = scmp.ne.s32.totalorder %s23, %s37
    %p39 = scmp.eq.s32.totalorder %s18, 0
    %p40 = por %p38, %p39
    %s42 = sadd.s32 %s41, 1
    %p45 = scmp.eq.s32.totalorder %s12, 1
    %p46 = scmp.ne.s32.totalorder %s41, %s43
    %p47 = scmp.eq.s32.totalorder %s12, 0
    %p48 = por %p46, %p47
    %p49 = scmp.ne.s32.totalorder %s41, %s43
    %p50 = scmp.eq.s32.totalorder %s17, 1
    %p51 = por %p49, %p50
    %p52 = scmp.ne.s32.totalorder %s43, %s44
    %p53 = scmp.eq.s32.totalorder %s17, 0
    %p54 = por %p52, %p53
    %p55 = scmp.ne.s32.totalorder %s43, %s44
    %p56 = scmp.eq.s32.totalorder %s18, 1
    %p57 = por %p55, %p56
    %p59 = scmp.ne.s32.totalorder %s44, %s58
    %p60 = scmp.eq.s32.totalorder %s18, 0
    %p61 = por %p59, %p60
    %s63 = sadd.s32 %s62, 1
    %p66 = scmp.eq.s32.totalorder %s12, 1
    %p67 = scmp.ne.s32.totalorder %s62, %s64
    %p68 = scmp.eq.s32.totalorder %s12, 0
    %p69 = por %p67, %p68
    %p70 = scmp.ne.s32.totalorder %s62, %s64
    %p71 = scmp.eq.s32.totalorder %s17, 1
    %p72 = por %p70, %p71
    %p73 = scmp.ne.s32.totalorder %s64, %s65
    %p74 = scmp.eq.s32.totalorder %s17, 0
    %p75 = por %p73, %p74
    %p76 = scmp.ne.s32.totalorder %s64, %s65
    %p77 = scmp.eq.s32.totalorder %s18, 1
    %p78 = por %p76, %p77
    %p80 = scmp.ne.s32.totalorder %s65, %s79
    %p81 = scmp.eq.s32.totalorder %s18, 0
    %p82 = por %p80, %p81
    %s83 = ssub.s32 %s12, %s19
    %p84 = scmp.eq.s32.totalorder %s83, 0
    %s86 = sadd.s32 %s85, 1
    %s87 = scalar_select %p84, %s85, %s86
    %p90 = pneg %p84
    %p91 = scmp.eq.s32.totalorder %s12, 1
    %p92 = por %p90, %p91
    %p93 = scmp.ne.s32.totalorder %s85, %s88
    %p94 = scmp.eq.s32.totalorder %s12, 0
    %p95 = por %p93, %p94
    %p96 = scmp.ne.s32.totalorder %s85, %s88
    %p97 = scmp.eq.s32.totalorder %s17, 1
    %p98 = por %p96, %p97
    %p99 = scmp.ne.s32.totalorder %s88, %s89
    %p100 = scmp.eq.s32.totalorder %s17, 0
    %p101 = por %p99, %p100
    %p102 = scmp.ne.s32.totalorder %s88, %s89
    %p103 = scmp.eq.s32.totalorder %s18, 1
    %p104 = por %p102, %p103
    %p106 = scmp.ne.s32.totalorder %s89, %s105
    %p107 = scmp.eq.s32.totalorder %s18, 0
    %p108 = por %p106, %p107
    %s109 = ssub.s32 %s12, %s19
    %p110 = scmp.eq.s32.totalorder %s109, 0
    %s112 = sadd.s32 %s111, 1
    %s113 = scalar_select %p110, %s111, %s112
    %p116 = pneg %p110
    %p117 = scmp.eq.s32.totalorder %s12, 1
    %p118 = por %p116, %p117
    %p119 = scmp.ne.s32.totalorder %s111, %s114
    %p120 = scmp.eq.s32.totalorder %s12, 0
    %p121 = por %p119, %p120
    %p122 = scmp.ne.s32.totalorder %s111, %s114
    %p123 = scmp.eq.s32.totalorder %s17, 1
    %p124 = por %p122, %p123
    %p125 = scmp.ne.s32.totalorder %s114, %s115
    %p126 = scmp.eq.s32.totalorder %s17, 0
    %p127 = por %p125, %p126
    %p128 = scmp.ne.s32.totalorder %s114, %s115
    %p129 = scmp.eq.s32.totalorder %s18, 1
    %p130 = por %p128, %p129
    %p132 = scmp.ne.s32.totalorder %s115, %s131
    %p133 = scmp.eq.s32.totalorder %s18, 0
    %p134 = por %p132, %p133
    %s135 = ssub.s32 %s12, %s19
    %p136 = scmp.eq.s32.totalorder %s135, 0
    %s138 = sadd.s32 %s137, 1
    %s139 = scalar_select %p136, %s137, %s138
    %p142 = pneg %p136
    %p143 = scmp.eq.s32.totalorder %s12, 1
    %p144 = por %p142, %p143
    %p145 = scmp.ne.s32.totalorder %s137, %s140
    %p146 = scmp.eq.s32.totalorder %s12, 0
    %p147 = por %p145, %p146
    %p148 = scmp.ne.s32.totalorder %s137, %s140
    %p149 = scmp.eq.s32.totalorder %s17, 1
    %p150 = por %p148, %p149
    %p151 = scmp.ne.s32.totalorder %s140, %s141
    %p152 = scmp.eq.s32.totalorder %s17, 0
    %p153 = por %p151, %p152
    %p154 = scmp.ne.s32.totalorder %s140, %s141
    %p155 = scmp.eq.s32.totalorder %s18, 1
    %p156 = por %p154, %p155
    %p158 = scmp.ne.s32.totalorder %s141, %s157
    %p159 = scmp.eq.s32.totalorder %s18, 0
    %p160 = por %p158, %p159
    %s161 = ssub.s32 %s12, %s19
    %p162 = scmp.eq.s32.totalorder %s161, 0
    %s164 = sadd.s32 %s163, 1
    %s165 = scalar_select %p162, %s163, %s164
    %p168 = pneg %p162
    %p169 = scmp.eq.s32.totalorder %s12, 1
    %p170 = por %p168, %p169
    %p171 = scmp.ne.s32.totalorder %s163, %s166
    %p172 = scmp.eq.s32.totalorder %s12, 0
    %p173 = por %p171, %p172
    %p174 = scmp.ne.s32.totalorder %s163, %s166
    %p175 = scmp.eq.s32.totalorder %s17, 1
    %p176 = por %p174, %p175
    %p177 = scmp.ne.s32.totalorder %s166, %s167
    %p178 = scmp.eq.s32.totalorder %s17, 0
    %p179 = por %p177, %p178
    %p180 = scmp.ne.s32.totalorder %s166, %s167
    %p181 = scmp.eq.s32.totalorder %s18, 1
    %p182 = por %p180, %p181
    %p184 = scmp.ne.s32.totalorder %s167, %s183
    %p185 = scmp.eq.s32.totalorder %s18, 0
    %p186 = por %p184, %p185
    %p187 = scmp.le.s32.totalorder 1, %s12
    %p188 = scmp.lt.s32.totalorder %s12, 3
    %p189 = pnand %p187, %p188
    %p190 = pneg %p189
    // Predicated region
    $region9: #{tpu_custom_call.1} parent=5 // pred_check
      _
    $region10: #{tpu_custom_call.1} parent=5 // pred_check_branch
      %192 = sbr.rel (%p189) target = $region12
    $region11: #{tpu_custom_call.1} parent=5 // pred_region
      %s193 = ssub.s32 %s12, 1
      // Predicated region
      $region13: #{tpu_custom_call.1} parent=11 // pred_check
        %p194 = pneg %p33
      $region14: #{tpu_custom_call.1} parent=11 // pred_check_branch
        %196 = sbr.rel (%p194) target = $region16
      $region15: #{tpu_custom_call.1} parent=11 // pred_region
        _
      $region16: #{tpu_custom_call.1} parent=11 // pred_fallthru
        _
      // Predicated region
      $region17: #{tpu_custom_call.1} parent=11 // pred_check
        %p197 = pneg %p54
      $region18: #{tpu_custom_call.1} parent=11 // pred_check_branch
        %199 = sbr.rel (%p197) target = $region20
      $region19: #{tpu_custom_call.1} parent=11 // pred_region
        _
      $region20: #{tpu_custom_call.1} parent=11 // pred_fallthru
        _
      // Predicated region
      $region21: #{tpu_custom_call.1} parent=11 // pred_check
        %p200 = pneg %p75
      $region22: #{tpu_custom_call.1} parent=11 // pred_check_branch
        %202 = sbr.rel (%p200) target = $region24
      $region23: #{tpu_custom_call.1} parent=11 // pred_region
        _
      $region24: #{tpu_custom_call.1} parent=11 // pred_fallthru
        _
    $region12: #{tpu_custom_call.1} parent=5 // pred_fallthru
      _
    %p203 = scmp.lt.s32.totalorder %s12, 2
    // Predicated region
    $region25: #{tpu_custom_call.1} parent=5 // pred_check
      %p204 = pneg %p203
    $region26: #{tpu_custom_call.1} parent=5 // pred_check_branch
      %206 = sbr.rel (%p204) target = $region28
    $region27: #{tpu_custom_call.1} parent=5 // pred_region
      // Predicated region
      $region29: #{tpu_custom_call.1} parent=27 // pred_check
        %p207 = pneg %p95
      $region30: #{tpu_custom_call.1} parent=27 // pred_check_branch
        %209 = sbr.rel (%p207) target = $region32
      $region31: #{tpu_custom_call.1} parent=27 // pred_region
        %s210 = smul.u32 51, %s12
        %p211 = scmp.lt.s32.totalorder %s210, 101
        %s212 = scalar_select %p211, %s210, 101
        %s213 = smul.addr %s212, 2
        %s214 = smul.addr %s213, 8
        %s215 = scalar_lea.vmem %s3, %s214
        %s216 = smul.u32 51, %s12
      $region32: #{tpu_custom_call.1} parent=27 // pred_fallthru
        _
      // Predicated region
      $region33: #{tpu_custom_call.1} parent=27 // pred_check
        %p217 = pneg %p121
      $region34: #{tpu_custom_call.1} parent=27 // pred_check_branch
        %219 = sbr.rel (%p217) target = $region36
      $region35: #{tpu_custom_call.1} parent=27 // pred_region
        %s220 = smul.u32 51, %s12
        %p221 = scmp.lt.s32.totalorder %s220, 101
        %s222 = scalar_select %p221, %s220, 101
        %s223 = smul.addr %s222, 8
        %s224 = scalar_lea.vmem %s4, %s223
        %s225 = smul.u32 51, %s12
      $region36: #{tpu_custom_call.1} parent=27 // pred_fallthru
        _
      // Predicated region
      $region37: #{tpu_custom_call.1} parent=27 // pred_check
        %p226 = pneg %p147
      $region38: #{tpu_custom_call.1} parent=27 // pred_check_branch
        %228 = sbr.rel (%p226) target = $region40
      $region39: #{tpu_custom_call.1} parent=27 // pred_region
        %s229 = smul.u32 51, %s12
        %p230 = scmp.lt.s32.totalorder %s229, 101
        %s231 = scalar_select %p230, %s229, 101
        %s232 = smul.addr %s231, 8
        %s233 = scalar_lea.vmem %s5, %s232
        %s234 = smul.u32 51, %s12
      $region40: #{tpu_custom_call.1} parent=27 // pred_fallthru
        _
    $region28: #{tpu_custom_call.1} parent=5 // pred_fallthru
      _
    %p235 = scmp.le.s32.totalorder 1, %s12
    %p236 = scmp.lt.s32.totalorder %s12, 3
    %p237 = pnand %p235, %p236
    %p238 = pneg %p237
    // Predicated region
    $region41: #{tpu_custom_call.1} parent=5 // pred_check
      _
    $region42: #{tpu_custom_call.1} parent=5 // pred_check_branch
      %240 = sbr.rel (%p237) target = $region44
    $region43: #{tpu_custom_call.1} parent=5 // pred_region
      %s241 = ssub.s32 %s12, 1
      %p242 = pneg %p33
      %p243 = pneg %p30
      %p244 = pneg %p54
      %p245 = pneg %p51
      %p246 = pneg %p75
      %p247 = pneg %p72
      %s248 = smul.u32 51, %s17
      %p249 = scmp.lt.s32.totalorder %s248, 101
      %s250 = scalar_select %p249, %s248, 101
      %s251 = smul.addr %s250, 2
      %s252 = smul.addr %s251, 8
      %s253 = scalar_lea.vmem %s3, %s252
      %p254 = pneg %p101
      %p255 = pneg %p98
      %s256 = smul.u32 51, %s17
      %p257 = scmp.lt.s32.totalorder %s256, 101
      %s258 = scalar_select %p257, %s256, 101
      %s259 = smul.addr %s258, 8
      %s260 = scalar_lea.vmem %s4, %s259
      %p261 = pneg %p127
      %p262 = pneg %p124
      %s263 = smul.u32 51, %s17
      %p264 = scmp.lt.s32.totalorder %s263, 101
      %s265 = scalar_select %p264, %s263, 101
      %s266 = smul.addr %s265, 8
      %s267 = scalar_lea.vmem %s5, %s266
      %p268 = pneg %p153
      %p269 = pneg %p150
      %p270 = pneg %p179
      %p271 = pneg %p176
      %s272 = smul.u32 51, %s17
      %p273 = scmp.lt.s32.totalorder %s272, 101
      %s274 = scalar_select %p273, %s272, 101
      %s275 = smul.addr %s274, 2
      %s276 = smul.addr %s275, 8
      %s277 = scalar_lea.vmem %s6, %s276
      %s278 = smul.u32 51, %s17
      %p279 = scmp.lt.s32.totalorder %s278, 101
      %s280 = scalar_select %p279, %s278, 101
      %s281 = smul.addr %s280, 2
      %s282 = smul.addr %s281, 8
      %s283 = scalar_lea.vmem %s3, %s282
      %s284 = smul.u32 51, %s17
      %s285 = smul.u32 51, %s17
      %p286 = scmp.lt.s32.totalorder %s285, 101
      %s287 = scalar_select %p286, %s285, 101
      %s288 = smul.addr %s287, 8
      %s289 = scalar_lea.vmem %s4, %s288
      %s290 = smul.u32 51, %s17
      %s291 = smul.u32 51, %s17
      %p292 = scmp.lt.s32.totalorder %s291, 101
      %s293 = scalar_select %p292, %s291, 101
      %s294 = smul.addr %s293, 8
      %s295 = scalar_lea.vmem %s5, %s294
      %s296 = smul.u32 51, %s17
      %s297 = smul.u32 51, %s17
      %p298 = scmp.lt.s32.totalorder %s297, 101
      %s299 = scalar_select %p298, %s297, 101
      %s300 = smul.addr %s299, 2
      %s301 = smul.addr %s300, 8
      %s302 = scalar_lea.vmem %s6, %s301
      %s303 = smul.u32 51, %s17
      %v305 = vld [vmem:[%s0] sm:$0xff]
      %v306 = vld [vmem:[%s0 + $0x8] sm:$0xff]
      %v307 = vld [vmem:[%s0 + $0x10] sm:$0xff]
      %v308 = vld [vmem:[%s0 + $0x18] sm:$0xff]
      %v309 = vld [vmem:[%s0 + $0x20] sm:$0xff]
      %v310 = vld [vmem:[%s0 + $0x28] sm:$0xff]
      %v311 = vld [vmem:[%s0 + $0x30] sm:$0xff]
      %v312 = vld [vmem:[%s0 + $0x38] sm:$0xff]
      %v313 = vld [vmem:[%s0 + $0x40] sm:$0xff]
      %v314 = vld [vmem:[%s0 + $0x48] sm:$0xff]
      %v315 = vld [vmem:[%s0 + $0x50] sm:$0xff]
      %v316 = vld [vmem:[%s0 + $0x58] sm:$0xff]
      %v317 = vld [vmem:[%s0 + $0x60] sm:$0xff]
      %v318 = vld [vmem:[%s0 + $0x68] sm:$0xff]
      %v319 = vld [vmem:[%s0 + $0x70] sm:$0xff]
      %v320 = vld [vmem:[%s0 + $0x78] sm:$0xff]
      %v321 = vld [vmem:[%s0 + $0x80] sm:$0xff]
      %v322 = vld [vmem:[%s0 + $0x88] sm:$0xff]
      %v323 = vld [vmem:[%s0 + $0x90] sm:$0xff]
      %v324 = vld [vmem:[%s0 + $0x98] sm:$0xff]
      %v325 = vld [vmem:[%s0 + $0xa0] sm:$0xff]
      %v326 = vld [vmem:[%s0 + $0xa8] sm:$0xff]
      %v327 = vld [vmem:[%s0 + $0xb0] sm:$0xff]
      %v328 = vld [vmem:[%s0 + $0xb8] sm:$0xff]
      %v329 = vld [vmem:[%s0 + $0xc0] sm:$0xff]
      %v330 = vld [vmem:[%s0 + $0xc8] sm:$0xff]
      %v331 = vld [vmem:[%s0 + $0xd0] sm:$0xff]
      %v332 = vld [vmem:[%s0 + $0xd8] sm:$0xff]
      %v333 = vld [vmem:[%s0 + $0xe0] sm:$0xff]
      %v334 = vld [vmem:[%s0 + $0xe8] sm:$0xff]
      %v335 = vld [vmem:[%s0 + $0xf0] sm:$0xff]
      %v336 = vld [vmem:[%s0 + $0xf8] sm:$0xff]
      %v337 = vld [vmem:[%s0 + $0x100] sm:$0xff]
      %v338 = vld [vmem:[%s0 + $0x108] sm:$0xff]
      %v339 = vld [vmem:[%s0 + $0x110] sm:$0xff]
      %v340 = vld [vmem:[%s0 + $0x118] sm:$0xff]
      %v341 = vld [vmem:[%s0 + $0x120] sm:$0xff]
      %v342 = vld [vmem:[%s0 + $0x128] sm:$0xff]
      %v343 = vld [vmem:[%s0 + $0x130] sm:$0xff]
      %v344 = vld [vmem:[%s0 + $0x138] sm:$0xff]
      %v345 = vld [vmem:[%s0 + $0x140] sm:$0xff]
      %v346 = vld [vmem:[%s0 + $0x148] sm:$0xff]
      %v347 = vld [vmem:[%s0 + $0x150] sm:$0xff]
      %v348 = vld [vmem:[%s0 + $0x158] sm:$0xff]
      %v349 = vld [vmem:[%s0 + $0x160] sm:$0xff]
      %v350 = vld [vmem:[%s0 + $0x168] sm:$0xff]
      %v351 = vld [vmem:[%s0 + $0x170] sm:$0xff]
      %v352 = vld [vmem:[%s0 + $0x178] sm:$0xff]
      %v353 = vld [vmem:[%s0 + $0x180] sm:$0xff]
      %v354 = vld [vmem:[%s0 + $0x188] sm:$0xff]
      %v355 = vld [vmem:[%s0 + $0x190] sm:$0xff]
      %v356 = vld [vmem:[%s0 + $0x198] sm:$0xff]
      %v357 = vld [vmem:[%s0 + $0x1a0] sm:$0xff]
      %v358 = vld [vmem:[%s0 + $0x1a8] sm:$0xff]
      %v359 = vld [vmem:[%s0 + $0x1b0] sm:$0xff]
      %v360 = vld [vmem:[%s0 + $0x1b8] sm:$0xff]
      %v361 = vld [vmem:[%s0 + $0x1c0] sm:$0xff]
      %v362 = vld [vmem:[%s0 + $0x1c8] sm:$0xff]
      %v363 = vld [vmem:[%s0 + $0x1d0] sm:$0xff]
      %v364 = vld [vmem:[%s0 + $0x1d8] sm:$0xff]
      %v365 = vld [vmem:[%s0 + $0x1e0] sm:$0xff]
      %v366 = vld [vmem:[%s0 + $0x1e8] sm:$0xff]
      %v367 = vld [vmem:[%s0 + $0x1f0] sm:$0xff]
      %v368 = vld [vmem:[%s0 + $0x1f8] sm:$0xff]
      %v369 = vld [vmem:[%s0 + $0x200] sm:$0xff]
      %v370 = vld [vmem:[%s0 + $0x208] sm:$0xff]
      %v371 = vld [vmem:[%s0 + $0x210] sm:$0xff]
      %v372 = vld [vmem:[%s0 + $0x218] sm:$0xff]
      %v373 = vld [vmem:[%s0 + $0x220] sm:$0xff]
      %v374 = vld [vmem:[%s0 + $0x228] sm:$0xff]
      %v375 = vld [vmem:[%s0 + $0x230] sm:$0xff]
      %v376 = vld [vmem:[%s0 + $0x238] sm:$0xff]
      %v377 = vld [vmem:[%s0 + $0x240] sm:$0xff]
      %v378 = vld [vmem:[%s0 + $0x248] sm:$0xff]
      %v379 = vld [vmem:[%s0 + $0x250] sm:$0xff]
      %v380 = vld [vmem:[%s0 + $0x258] sm:$0xff]
      %v381 = vld [vmem:[%s0 + $0x260] sm:$0xff]
      %v382 = vld [vmem:[%s0 + $0x268] sm:$0xff]
      %v383 = vld [vmem:[%s0 + $0x270] sm:$0xff]
      %v384 = vld [vmem:[%s0 + $0x278] sm:$0xff]
      %v385 = vld [vmem:[%s0 + $0x280] sm:$0xff]
      %v386 = vld [vmem:[%s0 + $0x288] sm:$0xff]
      %v387 = vld [vmem:[%s0 + $0x290] sm:$0xff]
      %v388 = vld [vmem:[%s0 + $0x298] sm:$0xff]
      %v389 = vld [vmem:[%s0 + $0x2a0] sm:$0xff]
      %v390 = vld [vmem:[%s0 + $0x2a8] sm:$0xff]
      %v391 = vld [vmem:[%s0 + $0x2b0] sm:$0xff]
      %v392 = vld [vmem:[%s0 + $0x2b8] sm:$0xff]
      %v393 = vld [vmem:[%s0 + $0x2c0] sm:$0xff]
      %v394 = vld [vmem:[%s0 + $0x2c8] sm:$0xff]
      %v395 = vld [vmem:[%s0 + $0x2d0] sm:$0xff]
      %v396 = vld [vmem:[%s0 + $0x2d8] sm:$0xff]
      %v397 = vld [vmem:[%s0 + $0x2e0] sm:$0xff]
      %v398 = vld [vmem:[%s0 + $0x2e8] sm:$0xff]
      %v399 = vld [vmem:[%s0 + $0x2f0] sm:$0xff]
      %v400 = vld [vmem:[%s0 + $0x2f8] sm:$0xff]
      %v401 = vld [vmem:[%s0 + $0x300] sm:$0xff]
      %v402 = vld [vmem:[%s0 + $0x308] sm:$0xff]
      %v403 = vld [vmem:[%s0 + $0x310] sm:$0xff]
      %v404 = vld [vmem:[%s0 + $0x318] sm:$0xff]
      %v405 = vld [vmem:[%s0 + $0x320] sm:$0xff]
      %v406 = vld [vmem:[%s0 + $0x328] sm:$0xff]
      %v407 = vld [vmem:[%s0 + $0x330] sm:$0xff]
      %v408 = vld [vmem:[%s0 + $0x338] sm:$0xff]
      %v409 = vld [vmem:[%s0 + $0x340] sm:$0xff]
      %v410 = vld [vmem:[%s0 + $0x348] sm:$0xff]
      %v411 = vld [vmem:[%s0 + $0x350] sm:$0xff]
      %v412 = vld [vmem:[%s0 + $0x358] sm:$0xff]
      %v413 = vld [vmem:[%s0 + $0x360] sm:$0xff]
      %v414 = vld [vmem:[%s0 + $0x368] sm:$0xff]
      %v415 = vld [vmem:[%s0 + $0x370] sm:$0xff]
      %v416 = vld [vmem:[%s0 + $0x378] sm:$0xff]
      %v417 = vld [vmem:[%s0 + $0x380] sm:$0xff]
      %v418 = vld [vmem:[%s0 + $0x388] sm:$0xff]
      %v419 = vld [vmem:[%s0 + $0x390] sm:$0xff]
      %v420 = vld [vmem:[%s0 + $0x398] sm:$0xff]
      %v421 = vld [vmem:[%s0 + $0x3a0] sm:$0xff]
      %v422 = vld [vmem:[%s0 + $0x3a8] sm:$0xff]
      %v423 = vld [vmem:[%s0 + $0x3b0] sm:$0xff]
      %v424 = vld [vmem:[%s0 + $0x3b8] sm:$0xff]
      %v425 = vld [vmem:[%s0 + $0x3c0] sm:$0xff]
      %v426 = vld [vmem:[%s0 + $0x3c8] sm:$0xff]
      %v427 = vld [vmem:[%s0 + $0x3d0] sm:$0xff]
      %v428 = vld [vmem:[%s0 + $0x3d8] sm:$0xff]
      %v429 = vld [vmem:[%s0 + $0x3e0] sm:$0xff]
      %v430 = vld [vmem:[%s0 + $0x3e8] sm:$0xff]
      %v431 = vld [vmem:[%s0 + $0x3f0] sm:$0xff]
      %v432 = vld [vmem:[%s0 + $0x3f8] sm:$0xff]
      %v433 = vld [vmem:[%s0 + $0x400] sm:$0xff]
      %v434 = vld [vmem:[%s0 + $0x408] sm:$0xff]
      %v435 = vld [vmem:[%s0 + $0x410] sm:$0xff]
      %v436 = vld [vmem:[%s0 + $0x418] sm:$0xff]
      %v437 = vld [vmem:[%s0 + $0x420] sm:$0xff]
      %v438 = vld [vmem:[%s0 + $0x428] sm:$0xff]
      %v439 = vld [vmem:[%s0 + $0x430] sm:$0xff]
      %v440 = vld [vmem:[%s0 + $0x438] sm:$0xff]
      %v441 = vld [vmem:[%s0 + $0x440] sm:$0xff]
      %v442 = vld [vmem:[%s0 + $0x448] sm:$0xff]
      %v443 = vld [vmem:[%s0 + $0x450] sm:$0xff]
      %v444 = vld [vmem:[%s0 + $0x458] sm:$0xff]
      %v445 = vld [vmem:[%s0 + $0x460] sm:$0xff]
      %v446 = vld [vmem:[%s0 + $0x468] sm:$0xff]
      %v447 = vld [vmem:[%s0 + $0x470] sm:$0xff]
      %v448 = vld [vmem:[%s0 + $0x478] sm:$0xff]
      %v449 = vpack.c.bf16 %v307, %v305
      %v450 = vpack.c.bf16 %v308, %v306
      %v451 = vpack.c.bf16 %v311, %v309
      %v452 = vpack.c.bf16 %v312, %v310
      %v453 = vpack.c.bf16 %v315, %v313
      %v454 = vpack.c.bf16 %v316, %v314
      %v455 = vpack.c.bf16 %v319, %v317
      %v456 = vpack.c.bf16 %v320, %v318
      %v457 = vpack.c.bf16 %v323, %v321
      %v458 = vpack.c.bf16 %v324, %v322
      %v459 = vpack.c.bf16 %v327, %v325
      %v460 = vpack.c.bf16 %v328, %v326
      %v461 = vpack.c.bf16 %v331, %v329
      %v462 = vpack.c.bf16 %v332, %v330
      %v463 = vpack.c.bf16 %v335, %v333
      %v464 = vpack.c.bf16 %v336, %v334
      %v465 = vpack.c.bf16 %v339, %v337
      %v466 = vpack.c.bf16 %v340, %v338
      %v467 = vpack.c.bf16 %v343, %v341
      %v468 = vpack.c.bf16 %v344, %v342
      %v469 = vpack.c.bf16 %v347, %v345
      %v470 = vpack.c.bf16 %v348, %v346
      %v471 = vpack.c.bf16 %v351, %v349
      %v472 = vpack.c.bf16 %v352, %v350
      %v473 = vpack.c.bf16 %v355, %v353
      %v474 = vpack.c.bf16 %v356, %v354
      %v475 = vpack.c.bf16 %v359, %v357
      %v476 = vpack.c.bf16 %v360, %v358
      %v477 = vpack.c.bf16 %v363, %v361
      %v478 = vpack.c.bf16 %v364, %v362
      %v479 = vpack.c.bf16 %v367, %v365
      %v480 = vpack.c.bf16 %v368, %v366
      %v481 = vpack.c.bf16 %v371, %v369
      %v482 = vpack.c.bf16 %v372, %v370
      %v483 = vpack.c.bf16 %v375, %v373
      %v484 = vpack.c.bf16 %v376, %v374
      %v485 = vpack.c.bf16 %v379, %v377
      %v486 = vpack.c.bf16 %v380, %v378
      %v487 = vpack.c.bf16 %v383, %v381
      %v488 = vpack.c.bf16 %v384, %v382
      %v489 = vpack.c.bf16 %v387, %v385
      %v490 = vpack.c.bf16 %v388, %v386
      %v491 = vpack.c.bf16 %v391, %v389
      %v492 = vpack.c.bf16 %v392, %v390
      %v493 = vpack.c.bf16 %v395, %v393
      %v494 = vpack.c.bf16 %v396, %v394
      %v495 = vpack.c.bf16 %v399, %v397
      %v496 = vpack.c.bf16 %v400, %v398
      %v497 = vpack.c.bf16 %v403, %v401
      %v498 = vpack.c.bf16 %v404, %v402
      %v499 = vpack.c.bf16 %v407, %v405
      %v500 = vpack.c.bf16 %v408, %v406
      %v501 = vpack.c.bf16 %v411, %v409
      %v502 = vpack.c.bf16 %v412, %v410
      %v503 = vpack.c.bf16 %v415, %v413
      %v504 = vpack.c.bf16 %v416, %v414
      %v505 = vpack.c.bf16 %v419, %v417
      %v506 = vpack.c.bf16 %v420, %v418
      %v507 = vpack.c.bf16 %v423, %v421
      %v508 = vpack.c.bf16 %v424, %v422
      %v509 = vpack.c.bf16 %v427, %v425
      %v510 = vpack.c.bf16 %v428, %v426
      %v511 = vpack.c.bf16 %v431, %v429
      %v512 = vpack.c.bf16 %v432, %v430
      %v513 = vpack.c.bf16 %v435, %v433
      %v514 = vpack.c.bf16 %v436, %v434
      %v515 = vpack.c.bf16 %v439, %v437
      %v516 = vpack.c.bf16 %v440, %v438
      %v517 = vpack.c.bf16 %v443, %v441
      %v518 = vpack.c.bf16 %v444, %v442
      %v519 = vpack.c.bf16 %v447, %v445
      %v520 = vpack.c.bf16 %v448, %v446
      %v521 = vld [vmem:[%s1] sm:$0xff]
      %v522 = vld [vmem:[%s1 + $0x8] sm:$0xff]
      %v523 = vld [vmem:[%s1 + $0x10] sm:$0xff]
      %v524 = vld [vmem:[%s1 + $0x18] sm:$0xff]
      %v525 = vld [vmem:[%s1 + $0x20] sm:$0xff]
      %v526 = vld [vmem:[%s1 + $0x28] sm:$0xff]
      %v527 = vld [vmem:[%s1 + $0x30] sm:$0xff]
      %v528 = vld [vmem:[%s1 + $0x38] sm:$0xff]
      %v529 = vld [vmem:[%s1 + $0x40] sm:$0xff]
      %v530 = vld [vmem:[%s1 + $0x48] sm:$0xff]
      %v531 = vld [vmem:[%s1 + $0x50] sm:$0xff]
      %v532 = vld [vmem:[%s1 + $0x58] sm:$0xff]
      %v533 = vld [vmem:[%s1 + $0x60] sm:$0xff]
      %v534 = vld [vmem:[%s1 + $0x68] sm:$0xff]
      %v535 = vld [vmem:[%s1 + $0x70] sm:$0xff]
      %v536 = vld [vmem:[%s1 + $0x78] sm:$0xff]
      %v537 = vld [vmem:[%s1 + $0x80] sm:$0xff]
      %v538 = vld [vmem:[%s1 + $0x88] sm:$0xff]
      %v539 = vld [vmem:[%s1 + $0x90] sm:$0xff]
      %v540 = vld [vmem:[%s1 + $0x98] sm:$0xff]
      %v541 = vld [vmem:[%s1 + $0xa0] sm:$0xff]
      %v542 = vld [vmem:[%s1 + $0xa8] sm:$0xff]
      %v543 = vld [vmem:[%s1 + $0xb0] sm:$0xff]
      %v544 = vld [vmem:[%s1 + $0xb8] sm:$0xff]
      %v545 = vld [vmem:[%s1 + $0xc0] sm:$0xff]
      %v546 = vld [vmem:[%s1 + $0xc8] sm:$0xff]
      %v547 = vld [vmem:[%s1 + $0xd0] sm:$0xff]
      %v548 = vld [vmem:[%s1 + $0xd8] sm:$0xff]
      %v549 = vld [vmem:[%s1 + $0xe0] sm:$0xff]
      %v550 = vld [vmem:[%s1 + $0xe8] sm:$0xff]
      %v551 = vld [vmem:[%s1 + $0xf0] sm:$0xff]
      %v552 = vld [vmem:[%s1 + $0xf8] sm:$0xff]
      %v553 = vld [vmem:[%s1 + $0x100] sm:$0xff]
      %v554 = vld [vmem:[%s1 + $0x108] sm:$0xff]
      %v555 = vld [vmem:[%s1 + $0x110] sm:$0xff]
      %v556 = vld [vmem:[%s1 + $0x118] sm:$0xff]
      %v557 = vld [vmem:[%s1 + $0x120] sm:$0xff]
      %v558 = vld [vmem:[%s1 + $0x128] sm:$0xff]
      %v559 = vld [vmem:[%s1 + $0x130] sm:$0xff]
      %v560 = vld [vmem:[%s1 + $0x138] sm:$0xff]
      %v561 = vld [vmem:[%s1 + $0x140] sm:$0xff]
      %v562 = vld [vmem:[%s1 + $0x148] sm:$0xff]
      %v563 = vld [vmem:[%s1 + $0x150] sm:$0xff]
      %v564 = vld [vmem:[%s1 + $0x158] sm:$0xff]
      %v565 = vld [vmem:[%s1 + $0x160] sm:$0xff]
      %v566 = vld [vmem:[%s1 + $0x168] sm:$0xff]
      %v567 = vld [vmem:[%s1 + $0x170] sm:$0xff]
      %v568 = vld [vmem:[%s1 + $0x178] sm:$0xff]
      %v569 = vld [vmem:[%s1 + $0x180] sm:$0xff]
      %v570 = vld [vmem:[%s1 + $0x188] sm:$0xff]
      %v571 = vld [vmem:[%s1 + $0x190] sm:$0xff]
      %v572 = vld [vmem:[%s1 + $0x198] sm:$0xff]
      %v573 = vld [vmem:[%s1 + $0x1a0] sm:$0xff]
      %v574 = vld [vmem:[%s1 + $0x1a8] sm:$0xff]
      %v575 = vld [vmem:[%s1 + $0x1b0] sm:$0xff]
      %v576 = vld [vmem:[%s1 + $0x1b8] sm:$0xff]
      %v577 = vld [vmem:[%s1 + $0x1c0] sm:$0xff]
      %v578 = vld [vmem:[%s1 + $0x1c8] sm:$0xff]
      %v579 = vld [vmem:[%s1 + $0x1d0] sm:$0xff]
      %v580 = vld [vmem:[%s1 + $0x1d8] sm:$0xff]
      %v581 = vld [vmem:[%s1 + $0x1e0] sm:$0xff]
      %v582 = vld [vmem:[%s1 + $0x1e8] sm:$0xff]
      %v583 = vld [vmem:[%s1 + $0x1f0] sm:$0xff]
      %v584 = vld [vmem:[%s1 + $0x1f8] sm:$0xff]
      %v585 = vld [vmem:[%s1 + $0x200] sm:$0xff]
      %v586 = vld [vmem:[%s1 + $0x208] sm:$0xff]
      %v587 = vld [vmem:[%s1 + $0x210] sm:$0xff]
      %v588 = vld [vmem:[%s1 + $0x218] sm:$0xff]
      %v589 = vld [vmem:[%s1 + $0x220] sm:$0xff]
      %v590 = vld [vmem:[%s1 + $0x228] sm:$0xff]
      %v591 = vld [vmem:[%s1 + $0x230] sm:$0xff]
      %v592 = vld [vmem:[%s1 + $0x238] sm:$0xff]
      %v593 = vld [vmem:[%s1 + $0x240] sm:$0xff]
      %v594 = vld [vmem:[%s1 + $0x248] sm:$0xff]
      %v595 = vld [vmem:[%s1 + $0x250] sm:$0xff]
      %v596 = vld [vmem:[%s1 + $0x258] sm:$0xff]
      %v597 = vld [vmem:[%s1 + $0x260] sm:$0xff]
      %v598 = vld [vmem:[%s1 + $0x268] sm:$0xff]
      %v599 = vld [vmem:[%s1 + $0x270] sm:$0xff]
      %v600 = vld [vmem:[%s1 + $0x278] sm:$0xff]
      %v601 = vld [vmem:[%s1 + $0x280] sm:$0xff]
      %v602 = vld [vmem:[%s1 + $0x288] sm:$0xff]
      %v603 = vld [vmem:[%s1 + $0x290] sm:$0xff]
      %v604 = vld [vmem:[%s1 + $0x298] sm:$0xff]
      %v605 = vld [vmem:[%s1 + $0x2a0] sm:$0xff]
      %v606 = vpack.c.bf16 %v526, %v521
      %v607 = vpack.c.bf16 %v527, %v522
      %v608 = vpack.c.bf16 %v528, %v523
      %v609 = vpack.c.bf16 %v529, %v524
      %v610 = vpack.c.bf16 %v530, %v525
      %v611 = vpack.c.bf16 %v536, %v531
      %v612 = vpack.c.bf16 %v537, %v532
      %v613 = vpack.c.bf16 %v538, %v533
      %v614 = vpack.c.bf16 %v539, %v534
      %v615 = vpack.c.bf16 %v540, %v535
      %v616 = vpack.c.bf16 %v546, %v541
      %v617 = vpack.c.bf16 %v547, %v542
      %v618 = vpack.c.bf16 %v548, %v543
      %v619 = vpack.c.bf16 %v549, %v544
      %v620 = vpack.c.bf16 %v550, %v545
      %v621 = vpack.c.bf16 %v556, %v551
      %v622 = vpack.c.bf16 %v557, %v552
      %v623 = vpack.c.bf16 %v558, %v553
      %v624 = vpack.c.bf16 %v559, %v554
      %v625 = vpack.c.bf16 %v560, %v555
      %v626 = vpack.c.bf16 %v566, %v561
      %v627 = vpack.c.bf16 %v567, %v562
      %v628 = vpack.c.bf16 %v568, %v563
      %v629 = vpack.c.bf16 %v569, %v564
      %v630 = vpack.c.bf16 %v570, %v565
      %v631 = vpack.c.bf16 %v576, %v571
      %v632 = vpack.c.bf16 %v577, %v572
      %v633 = vpack.c.bf16 %v578, %v573
      %v634 = vpack.c.bf16 %v579, %v574
      %v635 = vpack.c.bf16 %v580, %v575
      %v636 = vpack.c.bf16 %v586, %v581
      %v637 = vpack.c.bf16 %v587, %v582
      %v638 = vpack.c.bf16 %v588, %v583
      %v639 = vpack.c.bf16 %v589, %v584
      %v640 = vpack.c.bf16 %v590, %v585
      %v641 = vpack.c.bf16 %v596, %v591
      %v642 = vpack.c.bf16 %v597, %v592
      %v643 = vpack.c.bf16 %v598, %v593
      %v644 = vpack.c.bf16 %v599, %v594
      %v645 = vpack.c.bf16 %v600, %v595
      %v646 = vpack.c.bf16 %v601, %v601
      %v647 = vpack.c.bf16 %v602, %v602
      %v648 = vpack.c.bf16 %v603, %v603
      %v649 = vpack.c.bf16 %v604, %v604
      %v650 = vpack.c.bf16 %v605, %v605
      %vm651 = vcmask 523264
      %v653 = vsel %vm651, %v610, 0
      %v656 = vsel %vm651, %v615, 0
      %v659 = vsel %vm651, %v620, 0
      %v662 = vsel %vm651, %v625, 0
      %v665 = vsel %vm651, %v630, 0
      %v668 = vsel %vm651, %v635, 0
      %v671 = vsel %vm651, %v640, 0
      %v674 = vsel %vm651, %v645, 0
      %v677 = vsel %vm651, %v650, 0
      %679 = vmatpush.bf16.msra.mxu0 %v463
      %680 = vmatpush.bf16.msra.mxu0 %v461
      %681 = vmatpush.bf16.msra.mxu0 %v459
      %682 = vmatpush.bf16.msra.mxu0 %v457
      %683 = vmatpush.bf16.msra.mxu0 %v455
      %684 = vmatpush.bf16.msra.mxu0 %v453
      %685 = vmatpush.bf16.msra.mxu0 %v451
      %686 = vmatpush.bf16.msra.mxu0 %v449
      %687 = vmatmul.bf16.gmra.mxu0 %v606
      %v688 = vpop.f32.mrf.mxu0
      %v689 = vadd.f32 0.0, %v688
      %v690 = vpop.f32.mrf.mxu0
      %v691 = vadd.f32 0.0, %v690
      %692 = vmatmul.bf16.gmra.mxu0 %v611
      %v693 = vpop.f32.mrf.mxu0
      %v694 = vadd.f32 0.0, %v693
      %v695 = vpop.f32.mrf.mxu0
      %v696 = vadd.f32 0.0, %v695
      %697 = vmatmul.bf16.gmra.mxu0 %v616
      %v698 = vpop.f32.mrf.mxu0
      %v699 = vadd.f32 0.0, %v698
      %v700 = vpop.f32.mrf.mxu0
      %v701 = vadd.f32 0.0, %v700
      %702 = vmatmul.bf16.gmra.mxu0 %v621
      %v703 = vpop.f32.mrf.mxu0
      %v704 = vadd.f32 0.0, %v703
      %v705 = vpop.f32.mrf.mxu0
      %v706 = vadd.f32 0.0, %v705
      %707 = vmatmul.bf16.gmra.mxu0 %v626
      %v708 = vpop.f32.mrf.mxu0
      %v709 = vadd.f32 0.0, %v708
      %v710 = vpop.f32.mrf.mxu0
      %v711 = vadd.f32 0.0, %v710
      %712 = vmatmul.bf16.gmra.mxu0 %v631
      %v713 = vpop.f32.mrf.mxu0
      %v714 = vadd.f32 0.0, %v713
      %v715 = vpop.f32.mrf.mxu0
      %v716 = vadd.f32 0.0, %v715
      %717 = vmatmul.bf16.gmra.mxu0 %v636
      %v718 = vpop.f32.mrf.mxu0
      %v719 = vadd.f32 0.0, %v718
      %v720 = vpop.f32.mrf.mxu0
      %v721 = vadd.f32 0.0, %v720
      %722 = vmatmul.bf16.gmra.mxu0 %v641
      %v723 = vpop.f32.mrf.mxu0
      %v724 = vadd.f32 0.0, %v723
      %v725 = vpop.f32.mrf.mxu0
      %v726 = vadd.f32 0.0, %v725
      %727 = vmatmul.bf16.gmra.mxu0 %v646
      %v728 = vpop.f32.mrf.mxu0
      %v729 = vadd.f32 0.0, %v728
      %v730 = vpop.f32.mrf.mxu0
      %731 = vdwg.mxu0
      %732 = vmatpush.bf16.msra.mxu0 %v479
      %733 = vmatpush.bf16.msra.mxu0 %v477
      %734 = vmatpush.bf16.msra.mxu0 %v475
      %735 = vmatpush.bf16.msra.mxu0 %v473
      %736 = vmatpush.bf16.msra.mxu0 %v471
      %737 = vmatpush.bf16.msra.mxu0 %v469
      %738 = vmatpush.bf16.msra.mxu0 %v467
      %739 = vmatpush.bf16.msra.mxu0 %v465
      %740 = vmatmul.bf16.gmra.mxu0 %v607
      %v741 = vpop.f32.mrf.mxu0
      %v742 = vadd.f32 %v689, %v741
      %v743 = vpop.f32.mrf.mxu0
      %v744 = vadd.f32 %v691, %v743
      %745 = vmatmul.bf16.gmra.mxu0 %v612
      %v746 = vpop.f32.mrf.mxu0
      %v747 = vadd.f32 %v694, %v746
      %v748 = vpop.f32.mrf.mxu0
      %v749 = vadd.f32 %v696, %v748
      %750 = vmatmul.bf16.gmra.mxu0 %v617
      %v751 = vpop.f32.mrf.mxu0
      %v752 = vadd.f32 %v699, %v751
      %v753 = vpop.f32.mrf.mxu0
      %v754 = vadd.f32 %v701, %v753
      %755 = vmatmul.bf16.gmra.mxu0 %v622
      %v756 = vpop.f32.mrf.mxu0
      %v757 = vadd.f32 %v704, %v756
      %v758 = vpop.f32.mrf.mxu0
      %v759 = vadd.f32 %v706, %v758
      %760 = vmatmul.bf16.gmra.mxu0 %v627
      %v761 = vpop.f32.mrf.mxu0
      %v762 = vadd.f32 %v709, %v761
      %v763 = vpop.f32.mrf.mxu0
      %v764 = vadd.f32 %v711, %v763
      %765 = vmatmul.bf16.gmra.mxu0 %v632
      %v766 = vpop.f32.mrf.mxu0
      %v767 = vadd.f32 %v714, %v766
      %v768 = vpop.f32.mrf.mxu0
      %v769 = vadd.f32 %v716, %v768
      %770 = vmatmul.bf16.gmra.mxu0 %v637
      %v771 = vpop.f32.mrf.mxu0
      %v772 = vadd.f32 %v719, %v771
      %v773 = vpop.f32.mrf.mxu0
      %v774 = vadd.f32 %v721, %v773
      %775 = vmatmul.bf16.gmra.mxu0 %v642
      %v776 = vpop.f32.mrf.mxu0
      %v777 = vadd.f32 %v724, %v776
      %v778 = vpop.f32.mrf.mxu0
      %v779 = vadd.f32 %v726, %v778
      %780 = vmatmul.bf16.gmra.mxu0 %v647
      %v781 = vpop.f32.mrf.mxu0
      %v782 = vadd.f32 %v729, %v781
      %v783 = vpop.f32.mrf.mxu0
      %784 = vdwg.mxu0
      %785 = vmatpush.bf16.msra.mxu0 %v495
      %786 = vmatpush.bf16.msra.mxu0 %v493
      %787 = vmatpush.bf16.msra.mxu0 %v491
      %788 = vmatpush.bf16.msra.mxu0 %v489
      %789 = vmatpush.bf16.msra.mxu0 %v487
      %790 = vmatpush.bf16.msra.mxu0 %v485
      %791 = vmatpush.bf16.msra.mxu0 %v483
      %792 = vmatpush.bf16.msra.mxu0 %v481
      %793 = vmatmul.bf16.gmra.mxu0 %v608
      %v794 = vpop.f32.mrf.mxu0
      %v795 = vadd.f32 %v742, %v794
      %v796 = vpop.f32.mrf.mxu0
      %v797 = vadd.f32 %v744, %v796
      %798 = vmatmul.bf16.gmra.mxu0 %v613
      %v799 = vpop.f32.mrf.mxu0
      %v800 = vadd.f32 %v747, %v799
      %v801 = vpop.f32.mrf.mxu0
      %v802 = vadd.f32 %v749, %v801
      %803 = vmatmul.bf16.gmra.mxu0 %v618
      %v804 = vpop.f32.mrf.mxu0
      %v805 = vadd.f32 %v752, %v804
      %v806 = vpop.f32.mrf.mxu0
      %v807 = vadd.f32 %v754, %v806
      %808 = vmatmul.bf16.gmra.mxu0 %v623
      %v809 = vpop.f32.mrf.mxu0
      %v810 = vadd.f32 %v757, %v809
      %v811 = vpop.f32.mrf.mxu0
      %v812 = vadd.f32 %v759, %v811
      %813 = vmatmul.bf16.gmra.mxu0 %v628
      %v814 = vpop.f32.mrf.mxu0
      %v815 = vadd.f32 %v762, %v814
      %v816 = vpop.f32.mrf.mxu0
      %v817 = vadd.f32 %v764, %v816
      %818 = vmatmul.bf16.gmra.mxu0 %v633
      %v819 = vpop.f32.mrf.mxu0
      %v820 = vadd.f32 %v767, %v819
      %v821 = vpop.f32.mrf.mxu0
      %v822 = vadd.f32 %v769, %v821
      %823 = vmatmul.bf16.gmra.mxu0 %v638
      %v824 = vpop.f32.mrf.mxu0
      %v825 = vadd.f32 %v772, %v824
      %v826 = vpop.f32.mrf.mxu0
      %v827 = vadd.f32 %v774, %v826
      %828 = vmatmul.bf16.gmra.mxu0 %v643
      %v829 = vpop.f32.mrf.mxu0
      %v830 = vadd.f32 %v777, %v829
      %v831 = vpop.f32.mrf.mxu0
      %v832 = vadd.f32 %v779, %v831
      %833 = vmatmul.bf16.gmra.mxu0 %v648
      %v834 = vpop.f32.mrf.mxu0
      %v835 = vadd.f32 %v782, %v834
      %v836 = vpop.f32.mrf.mxu0
      %837 = vdwg.mxu0
      %838 = vmatpush.bf16.msra.mxu0 %v511
      %839 = vmatpush.bf16.msra.mxu0 %v509
      %840 = vmatpush.bf16.msra.mxu0 %v507
      %841 = vmatpush.bf16.msra.mxu0 %v505
      %842 = vmatpush.bf16.msra.mxu0 %v503
      %843 = vmatpush.bf16.msra.mxu0 %v501
      %844 = vmatpush.bf16.msra.mxu0 %v499
      %845 = vmatpush.bf16.msra.mxu0 %v497
      %846 = vmatmul.bf16.gmra.mxu0 %v609
      %v847 = vpop.f32.mrf.mxu0
      %v848 = vadd.f32 %v795, %v847
      %v849 = vpop.f32.mrf.mxu0
      %v850 = vadd.f32 %v797, %v849
      %851 = vmatmul.bf16.gmra.mxu0 %v614
      %v852 = vpop.f32.mrf.mxu0
      %v853 = vadd.f32 %v800, %v852
      %v854 = vpop.f32.mrf.mxu0
      %v855 = vadd.f32 %v802, %v854
      %856 = vmatmul.bf16.gmra.mxu0 %v619
      %v857 = vpop.f32.mrf.mxu0
      %v858 = vadd.f32 %v805, %v857
      %v859 = vpop.f32.mrf.mxu0
      %v860 = vadd.f32 %v807, %v859
      %861 = vmatmul.bf16.gmra.mxu0 %v624
      %v862 = vpop.f32.mrf.mxu0
      %v863 = vadd.f32 %v810, %v862
      %v864 = vpop.f32.mrf.mxu0
      %v865 = vadd.f32 %v812, %v864
      %866 = vmatmul.bf16.gmra.mxu0 %v629
      %v867 = vpop.f32.mrf.mxu0
      %v868 = vadd.f32 %v815, %v867
      %v869 = vpop.f32.mrf.mxu0
      %v870 = vadd.f32 %v817, %v869
      %871 = vmatmul.bf16.gmra.mxu0 %v634
      %v872 = vpop.f32.mrf.mxu0
      %v873 = vadd.f32 %v820, %v872
      %v874 = vpop.f32.mrf.mxu0
      %v875 = vadd.f32 %v822, %v874
      %876 = vmatmul.bf16.gmra.mxu0 %v639
      %v877 = vpop.f32.mrf.mxu0
      %v878 = vadd.f32 %v825, %v877
      %v879 = vpop.f32.mrf.mxu0
      %v880 = vadd.f32 %v827, %v879
      %881 = vmatmul.bf16.gmra.mxu0 %v644
      %v882 = vpop.f32.mrf.mxu0
      %v883 = vadd.f32 %v830, %v882
      %v884 = vpop.f32.mrf.mxu0
      %v885 = vadd.f32 %v832, %v884
      %886 = vmatmul.bf16.gmra.mxu0 %v649
      %v887 = vpop.f32.mrf.mxu0
      %v888 = vadd.f32 %v835, %v887
      %v889 = vpop.f32.mrf.mxu0
      %890 = vdwg.mxu0
      %891 = vmatpush.bf16.msra.mxu0 0
      %892 = vmatpush.bf16.msra.mxu0 0
      %893 = vmatpush.bf16.msra.mxu0 0
      %894 = vmatpush.bf16.msra.mxu0 0
      %895 = vmatpush.bf16.msra.mxu0 %v519
      %896 = vmatpush.bf16.msra.mxu0 %v517
      %897 = vmatpush.bf16.msra.mxu0 %v515
      %898 = vmatpush.bf16.msra.mxu0 %v513
      %899 = vmatmul.bf16.gmra.mxu0 %v653
      %v900 = vpop.f32.mrf.mxu0
      %v901 = vadd.f32 %v848, %v900
      %v902 = vpop.f32.mrf.mxu0
      %v903 = vadd.f32 %v850, %v902
      %904 = vmatmul.bf16.gmra.mxu0 %v656
      %v905 = vpop.f32.mrf.mxu0
      %v906 = vadd.f32 %v853, %v905
      %v907 = vpop.f32.mrf.mxu0
      %v908 = vadd.f32 %v855, %v907
      %909 = vmatmul.bf16.gmra.mxu0 %v659
      %v910 = vpop.f32.mrf.mxu0
      %v911 = vadd.f32 %v858, %v910
      %v912 = vpop.f32.mrf.mxu0
      %v913 = vadd.f32 %v860, %v912
      %914 = vmatmul.bf16.gmra.mxu0 %v662
      %v915 = vpop.f32.mrf.mxu0
      %v916 = vadd.f32 %v863, %v915
      %v917 = vpop.f32.mrf.mxu0
      %v918 = vadd.f32 %v865, %v917
      %919 = vmatmul.bf16.gmra.mxu0 %v665
      %v920 = vpop.f32.mrf.mxu0
      %v921 = vadd.f32 %v868, %v920
      %v922 = vpop.f32.mrf.mxu0
      %v923 = vadd.f32 %v870, %v922
      %924 = vmatmul.bf16.gmra.mxu0 %v668
      %v925 = vpop.f32.mrf.mxu0
      %v926 = vadd.f32 %v873, %v925
      %v927 = vpop.f32.mrf.mxu0
      %v928 = vadd.f32 %v875, %v927
      %929 = vmatmul.bf16.gmra.mxu0 %v671
      %v930 = vpop.f32.mrf.mxu0
      %v931 = vadd.f32 %v878, %v930
      %v932 = vpop.f32.mrf.mxu0
      %v933 = vadd.f32 %v880, %v932
      %934 = vmatmul.bf16.gmra.mxu0 %v674
      %v935 = vpop.f32.mrf.mxu0
      %v936 = vadd.f32 %v883, %v935
      %v937 = vpop.f32.mrf.mxu0
      %v938 = vadd.f32 %v885, %v937
      %939 = vmatmul.bf16.gmra.mxu0 %v677
      %v940 = vpop.f32.mrf.mxu0
      %v941 = vadd.f32 %v888, %v940
      %v942 = vpop.f32.mrf.mxu0
      %943 = vdwg.mxu0
      %944 = vmatpush.bf16.msra.mxu0 %v464
      %945 = vmatpush.bf16.msra.mxu0 %v462
      %946 = vmatpush.bf16.msra.mxu0 %v460
      %947 = vmatpush.bf16.msra.mxu0 %v458
      %948 = vmatpush.bf16.msra.mxu0 %v456
      %949 = vmatpush.bf16.msra.mxu0 %v454
      %950 = vmatpush.bf16.msra.mxu0 %v452
      %951 = vmatpush.bf16.msra.mxu0 %v450
      %952 = vmatmul.bf16.gmra.mxu0 %v606
      %v953 = vpop.f32.mrf.mxu0
      %v954 = vadd.f32 0.0, %v953
      %v955 = vpop.f32.mrf.mxu0
      %v956 = vadd.f32 0.0, %v955
      %957 = vmatmul.bf16.gmra.mxu0 %v611
      %v958 = vpop.f32.mrf.mxu0
      %v959 = vadd.f32 0.0, %v958
      %v960 = vpop.f32.mrf.mxu0
      %v961 = vadd.f32 0.0, %v960
      %962 = vmatmul.bf16.gmra.mxu0 %v616
      %v963 = vpop.f32.mrf.mxu0
      %v964 = vadd.f32 0.0, %v963
      %v965 = vpop.f32.mrf.mxu0
      %v966 = vadd.f32 0.0, %v965
      %967 = vmatmul.bf16.gmra.mxu0 %v621
      %v968 = vpop.f32.mrf.mxu0
      %v969 = vadd.f32 0.0, %v968
      %v970 = vpop.f32.mrf.mxu0
      %v971 = vadd.f32 0.0, %v970
      %972 = vmatmul.bf16.gmra.mxu0 %v626
      %v973 = vpop.f32.mrf.mxu0
      %v974 = vadd.f32 0.0, %v973
      %v975 = vpop.f32.mrf.mxu0
      %v976 = vadd.f32 0.0, %v975
      %977 = vmatmul.bf16.gmra.mxu0 %v631
      %v978 = vpop.f32.mrf.mxu0
      %v979 = vadd.f32 0.0, %v978
      %v980 = vpop.f32.mrf.mxu0
      %v981 = vadd.f32 0.0, %v980
      %982 = vmatmul.bf16.gmra.mxu0 %v636
      %v983 = vpop.f32.mrf.mxu0
      %v984 = vadd.f32 0.0, %v983
      %v985 = vpop.f32.mrf.mxu0
      %v986 = vadd.f32 0.0, %v985
      %987 = vmatmul.bf16.gmra.mxu0 %v641
      %v988 = vpop.f32.mrf.mxu0
      %v989 = vadd.f32 0.0, %v988
      %v990 = vpop.f32.mrf.mxu0
      %v991 = vadd.f32 0.0, %v990
      %992 = vmatmul.bf16.gmra.mxu0 %v646
      %v993 = vpop.f32.mrf.mxu0
      %v994 = vadd.f32 0.0, %v993
      %v995 = vpop.f32.mrf.mxu0
      %996 = vdwg.mxu0
      %997 = vmatpush.bf16.msra.mxu0 %v480
      %998 = vmatpush.bf16.msra.mxu0 %v478
      %999 = vmatpush.bf16.msra.mxu0 %v476
      %1000 = vmatpush.bf16.msra.mxu0 %v474
      %1001 = vmatpush.bf16.msra.mxu0 %v472
      %1002 = vmatpush.bf16.msra.mxu0 %v470
      %1003 = vmatpush.bf16.msra.mxu0 %v468
      %1004 = vmatpush.bf16.msra.mxu0 %v466
      %1005 = vmatmul.bf16.gmra.mxu0 %v607
      %v1006 = vpop.f32.mrf.mxu0
      %v1007 = vadd.f32 %v954, %v1006
      %v1008 = vpop.f32.mrf.mxu0
      %v1009 = vadd.f32 %v956, %v1008
      %1010 = vmatmul.bf16.gmra.mxu0 %v612
      %v1011 = vpop.f32.mrf.mxu0
      %v1012 = vadd.f32 %v959, %v1011
      %v1013 = vpop.f32.mrf.mxu0
      %v1014 = vadd.f32 %v961, %v1013
      %1015 = vmatmul.bf16.gmra.mxu0 %v617
      %v1016 = vpop.f32.mrf.mxu0
      %v1017 = vadd.f32 %v964, %v1016
      %v1018 = vpop.f32.mrf.mxu0
      %v1019 = vadd.f32 %v966, %v1018
      %1020 = vmatmul.bf16.gmra.mxu0 %v622
      %v1021 = vpop.f32.mrf.mxu0
      %v1022 = vadd.f32 %v969, %v1021
      %v1023 = vpop.f32.mrf.mxu0
      %v1024 = vadd.f32 %v971, %v1023
      %1025 = vmatmul.bf16.gmra.mxu0 %v627
      %v1026 = vpop.f32.mrf.mxu0
      %v1027 = vadd.f32 %v974, %v1026
      %v1028 = vpop.f32.mrf.mxu0
      %v1029 = vadd.f32 %v976, %v1028
      %1030 = vmatmul.bf16.gmra.mxu0 %v632
      %v1031 = vpop.f32.mrf.mxu0
      %v1032 = vadd.f32 %v979, %v1031
      %v1033 = vpop.f32.mrf.mxu0
      %v1034 = vadd.f32 %v981, %v1033
      %1035 = vmatmul.bf16.gmra.mxu0 %v637
      %v1036 = vpop.f32.mrf.mxu0
      %v1037 = vadd.f32 %v984, %v1036
      %v1038 = vpop.f32.mrf.mxu0
      %v1039 = vadd.f32 %v986, %v1038
      %1040 = vmatmul.bf16.gmra.mxu0 %v642
      %v1041 = vpop.f32.mrf.mxu0
      %v1042 = vadd.f32 %v989, %v1041
      %v1043 = vpop.f32.mrf.mxu0
      %v1044 = vadd.f32 %v991, %v1043
      %1045 = vmatmul.bf16.gmra.mxu0 %v647
      %v1046 = vpop.f32.mrf.mxu0
      %v1047 = vadd.f32 %v994, %v1046
      %v1048 = vpop.f32.mrf.mxu0
      %1049 = vdwg.mxu0
      %1050 = vmatpush.bf16.msra.mxu0 %v496
      %1051 = vmatpush.bf16.msra.mxu0 %v494
      %1052 = vmatpush.bf16.msra.mxu0 %v492
      %1053 = vmatpush.bf16.msra.mxu0 %v490
      %1054 = vmatpush.bf16.msra.mxu0 %v488
      %1055 = vmatpush.bf16.msra.mxu0 %v486
      %1056 = vmatpush.bf16.msra.mxu0 %v484
      %1057 = vmatpush.bf16.msra.mxu0 %v482
      %1058 = vmatmul.bf16.gmra.mxu0 %v608
      %v1059 = vpop.f32.mrf.mxu0
      %v1060 = vadd.f32 %v1007, %v1059
      %v1061 = vpop.f32.mrf.mxu0
      %v1062 = vadd.f32 %v1009, %v1061
      %1063 = vmatmul.bf16.gmra.mxu0 %v613
      %v1064 = vpop.f32.mrf.mxu0
      %v1065 = vadd.f32 %v1012, %v1064
      %v1066 = vpop.f32.mrf.mxu0
      %v1067 = vadd.f32 %v1014, %v1066
      %1068 = vmatmul.bf16.gmra.mxu0 %v618
      %v1069 = vpop.f32.mrf.mxu0
      %v1070 = vadd.f32 %v1017, %v1069
      %v1071 = vpop.f32.mrf.mxu0
      %v1072 = vadd.f32 %v1019, %v1071
      %1073 = vmatmul.bf16.gmra.mxu0 %v623
      %v1074 = vpop.f32.mrf.mxu0
      %v1075 = vadd.f32 %v1022, %v1074
      %v1076 = vpop.f32.mrf.mxu0
      %v1077 = vadd.f32 %v1024, %v1076
      %1078 = vmatmul.bf16.gmra.mxu0 %v628
      %v1079 = vpop.f32.mrf.mxu0
      %v1080 = vadd.f32 %v1027, %v1079
      %v1081 = vpop.f32.mrf.mxu0
      %v1082 = vadd.f32 %v1029, %v1081
      %1083 = vmatmul.bf16.gmra.mxu0 %v633
      %v1084 = vpop.f32.mrf.mxu0
      %v1085 = vadd.f32 %v1032, %v1084
      %v1086 = vpop.f32.mrf.mxu0
      %v1087 = vadd.f32 %v1034, %v1086
      %1088 = vmatmul.bf16.gmra.mxu0 %v638
      %v1089 = vpop.f32.mrf.mxu0
      %v1090 = vadd.f32 %v1037, %v1089
      %v1091 = vpop.f32.mrf.mxu0
      %v1092 = vadd.f32 %v1039, %v1091
      %1093 = vmatmul.bf16.gmra.mxu0 %v643
      %v1094 = vpop.f32.mrf.mxu0
      %v1095 = vadd.f32 %v1042, %v1094
      %v1096 = vpop.f32.mrf.mxu0
      %v1097 = vadd.f32 %v1044, %v1096
      %1098 = vmatmul.bf16.gmra.mxu0 %v648
      %v1099 = vpop.f32.mrf.mxu0
      %v1100 = vadd.f32 %v1047, %v1099
      %v1101 = vpop.f32.mrf.mxu0
      %1102 = vdwg.mxu0
      %1103 = vmatpush.bf16.msra.mxu0 %v512
      %1104 = vmatpush.bf16.msra.mxu0 %v510
      %1105 = vmatpush.bf16.msra.mxu0 %v508
      %1106 = vmatpush.bf16.msra.mxu0 %v506
      %1107 = vmatpush.bf16.msra.mxu0 %v504
      %1108 = vmatpush.bf16.msra.mxu0 %v502
      %1109 = vmatpush.bf16.msra.mxu0 %v500
      %1110 = vmatpush.bf16.msra.mxu0 %v498
      %1111 = vmatmul.bf16.gmra.mxu0 %v609
      %v1112 = vpop.f32.mrf.mxu0
      %v1113 = vadd.f32 %v1060, %v1112
      %v1114 = vpop.f32.mrf.mxu0
      %v1115 = vadd.f32 %v1062, %v1114
      %1116 = vmatmul.bf16.gmra.mxu0 %v614
      %v1117 = vpop.f32.mrf.mxu0
      %v1118 = vadd.f32 %v1065, %v1117
      %v1119 = vpop.f32.mrf.mxu0
      %v1120 = vadd.f32 %v1067, %v1119
      %1121 = vmatmul.bf16.gmra.mxu0 %v619
      %v1122 = vpop.f32.mrf.mxu0
      %v1123 = vadd.f32 %v1070, %v1122
      %v1124 = vpop.f32.mrf.mxu0
      %v1125 = vadd.f32 %v1072, %v1124
      %1126 = vmatmul.bf16.gmra.mxu0 %v624
      %v1127 = vpop.f32.mrf.mxu0
      %v1128 = vadd.f32 %v1075, %v1127
      %v1129 = vpop.f32.mrf.mxu0
      %v1130 = vadd.f32 %v1077, %v1129
      %1131 = vmatmul.bf16.gmra.mxu0 %v629
      %v1132 = vpop.f32.mrf.mxu0
      %v1133 = vadd.f32 %v1080, %v1132
      %v1134 = vpop.f32.mrf.mxu0
      %v1135 = vadd.f32 %v1082, %v1134
      %1136 = vmatmul.bf16.gmra.mxu0 %v634
      %v1137 = vpop.f32.mrf.mxu0
      %v1138 = vadd.f32 %v1085, %v1137
      %v1139 = vpop.f32.mrf.mxu0
      %v1140 = vadd.f32 %v1087, %v1139
      %1141 = vmatmul.bf16.gmra.mxu0 %v639
      %v1142 = vpop.f32.mrf.mxu0
      %v1143 = vadd.f32 %v1090, %v1142
      %v1144 = vpop.f32.mrf.mxu0
      %v1145 = vadd.f32 %v1092, %v1144
      %1146 = vmatmul.bf16.gmra.mxu0 %v644
      %v1147 = vpop.f32.mrf.mxu0
      %v1148 = vadd.f32 %v1095, %v1147
      %v1149 = vpop.f32.mrf.mxu0
      %v1150 = vadd.f32 %v1097, %v1149
      %1151 = vmatmul.bf16.gmra.mxu0 %v649
      %v1152 = vpop.f32.mrf.mxu0
      %v1153 = vadd.f32 %v1100, %v1152
      %v1154 = vpop.f32.mrf.mxu0
      %1155 = vdwg.mxu0
      %1156 = vmatpush.bf16.msra.mxu0 0
      %1157 = vmatpush.bf16.msra.mxu0 0
      %1158 = vmatpush.bf16.msra.mxu0 0
      %1159 = vmatpush.bf16.msra.mxu0 0
      %1160 = vmatpush.bf16.msra.mxu0 %v520
      %1161 = vmatpush.bf16.msra.mxu0 %v518
      %1162 = vmatpush.bf16.msra.mxu0 %v516
      %1163 = vmatpush.bf16.msra.mxu0 %v514
      %1164 = vmatmul.bf16.gmra.mxu0 %v653
      %v1165 = vpop.f32.mrf.mxu0
      %v1166 = vadd.f32 %v1113, %v1165
      %v1167 = vpop.f32.mrf.mxu0
      %v1168 = vadd.f32 %v1115, %v1167
      %1169 = vmatmul.bf16.gmra.mxu0 %v656
      %v1170 = vpop.f32.mrf.mxu0
      %v1171 = vadd.f32 %v1118, %v1170
      %v1172 = vpop.f32.mrf.mxu0
      %v1173 = vadd.f32 %v1120, %v1172
      %1174 = vmatmul.bf16.gmra.mxu0 %v659
      %v1175 = vpop.f32.mrf.mxu0
      %v1176 = vadd.f32 %v1123, %v1175
      %v1177 = vpop.f32.mrf.mxu0
      %v1178 = vadd.f32 %v1125, %v1177
      %1179 = vmatmul.bf16.gmra.mxu0 %v662
      %v1180 = vpop.f32.mrf.mxu0
      %v1181 = vadd.f32 %v1128, %v1180
      %v1182 = vpop.f32.mrf.mxu0
      %v1183 = vadd.f32 %v1130, %v1182
      %1184 = vmatmul.bf16.gmra.mxu0 %v665
      %v1185 = vpop.f32.mrf.mxu0
      %v1186 = vadd.f32 %v1133, %v1185
      %v1187 = vpop.f32.mrf.mxu0
      %v1188 = vadd.f32 %v1135, %v1187
      %1189 = vmatmul.bf16.gmra.mxu0 %v668
      %v1190 = vpop.f32.mrf.mxu0
      %v1191 = vadd.f32 %v1138, %v1190
      %v1192 = vpop.f32.mrf.mxu0
      %v1193 = vadd.f32 %v1140, %v1192
      %1194 = vmatmul.bf16.gmra.mxu0 %v671
      %v1195 = vpop.f32.mrf.mxu0
      %v1196 = vadd.f32 %v1143, %v1195
      %v1197 = vpop.f32.mrf.mxu0
      %v1198 = vadd.f32 %v1145, %v1197
      %1199 = vmatmul.bf16.gmra.mxu0 %v674
      %v1200 = vpop.f32.mrf.mxu0
      %v1201 = vadd.f32 %v1148, %v1200
      %v1202 = vpop.f32.mrf.mxu0
      %v1203 = vadd.f32 %v1150, %v1202
      %1204 = vmatmul.bf16.gmra.mxu0 %v677
      %v1205 = vpop.f32.mrf.mxu0
      %v1206 = vadd.f32 %v1153, %v1205
      %v1207 = vpop.f32.mrf.mxu0
      %1208 = vdwg.mxu0
      %vm1209 = vcmask 556032
      %v1210 = vsel %vm1209, %v1166, 0.0
      %v1211 = vadd.f32 %v901, %v1210
      %1212 = vadd.xlane.f32.xlu0 %v1211
      %v1213 = vpop.xlane.xlu0 %1212
      %v1214 = vsel %vm1209, %v1168, 0.0
      %v1215 = vadd.f32 %v903, %v1214
      %1216 = vadd.xlane.f32.xlu0 %v1215
      %v1217 = vpop.xlane.xlu0 %1216
      %v1218 = vsel %vm1209, %v1171, 0.0
      %v1219 = vadd.f32 %v906, %v1218
      %1220 = vadd.xlane.f32.xlu0 %v1219
      %v1221 = vpop.xlane.xlu0 %1220
      %v1222 = vsel %vm1209, %v1173, 0.0
      %v1223 = vadd.f32 %v908, %v1222
      %1224 = vadd.xlane.f32.xlu0 %v1223
      %v1225 = vpop.xlane.xlu0 %1224
      %v1226 = vsel %vm1209, %v1176, 0.0
      %v1227 = vadd.f32 %v911, %v1226
      %1228 = vadd.xlane.f32.xlu0 %v1227
      %v1229 = vpop.xlane.xlu0 %1228
      %v1230 = vsel %vm1209, %v1178, 0.0
      %v1231 = vadd.f32 %v913, %v1230
      %1232 = vadd.xlane.f32.xlu0 %v1231
      %v1233 = vpop.xlane.xlu0 %1232
      %v1234 = vsel %vm1209, %v1181, 0.0
      %v1235 = vadd.f32 %v916, %v1234
      %1236 = vadd.xlane.f32.xlu0 %v1235
      %v1237 = vpop.xlane.xlu0 %1236
      %v1238 = vsel %vm1209, %v1183, 0.0
      %v1239 = vadd.f32 %v918, %v1238
      %1240 = vadd.xlane.f32.xlu0 %v1239
      %v1241 = vpop.xlane.xlu0 %1240
      %v1242 = vsel %vm1209, %v1186, 0.0
      %v1243 = vadd.f32 %v921, %v1242
      %1244 = vadd.xlane.f32.xlu0 %v1243
      %v1245 = vpop.xlane.xlu0 %1244
      %v1246 = vsel %vm1209, %v1188, 0.0
      %v1247 = vadd.f32 %v923, %v1246
      %1248 = vadd.xlane.f32.xlu0 %v1247
      %v1249 = vpop.xlane.xlu0 %1248
      %v1250 = vsel %vm1209, %v1191, 0.0
      %v1251 = vadd.f32 %v926, %v1250
      %1252 = vadd.xlane.f32.xlu0 %v1251
      %v1253 = vpop.xlane.xlu0 %1252
      %v1254 = vsel %vm1209, %v1193, 0.0
      %v1255 = vadd.f32 %v928, %v1254
      %1256 = vadd.xlane.f32.xlu0 %v1255
      %v1257 = vpop.xlane.xlu0 %1256
      %v1258 = vsel %vm1209, %v1196, 0.0
      %v1259 = vadd.f32 %v931, %v1258
      %1260 = vadd.xlane.f32.xlu0 %v1259
      %v1261 = vpop.xlane.xlu0 %1260
      %v1262 = vsel %vm1209, %v1198, 0.0
      %v1263 = vadd.f32 %v933, %v1262
      %1264 = vadd.xlane.f32.xlu0 %v1263
      %v1265 = vpop.xlane.xlu0 %1264
      %v1266 = vsel %vm1209, %v1201, 0.0
      %v1267 = vadd.f32 %v936, %v1266
      %1268 = vadd.xlane.f32.xlu0 %v1267
      %v1269 = vpop.xlane.xlu0 %1268
      %v1270 = vsel %vm1209, %v1203, 0.0
      %v1271 = vadd.f32 %v938, %v1270
      %1272 = vadd.xlane.f32.xlu0 %v1271
      %v1273 = vpop.xlane.xlu0 %1272
      %v1274 = vsel %vm1209, %v1206, 0.0
      %v1275 = vadd.f32 %v941, %v1274
      %1276 = vadd.xlane.f32.xlu0 %v1275
      %v1277 = vpop.xlane.xlu0 %1276
      %v1278 = vmul.f32 %v1213, 0.0051020407
      %v1279 = vmul.f32 %v1217, 0.0051020407
      %v1280 = vmul.f32 %v1221, 0.0051020407
      %v1281 = vmul.f32 %v1225, 0.0051020407
      %v1282 = vmul.f32 %v1229, 0.0051020407
      %v1283 = vmul.f32 %v1233, 0.0051020407
      %v1284 = vmul.f32 %v1237, 0.0051020407
      %v1285 = vmul.f32 %v1241, 0.0051020407
      %v1286 = vmul.f32 %v1245, 0.0051020407
      %v1287 = vmul.f32 %v1249, 0.0051020407
      %v1288 = vmul.f32 %v1253, 0.0051020407
      %v1289 = vmul.f32 %v1257, 0.0051020407
      %v1290 = vmul.f32 %v1261, 0.0051020407
      %v1291 = vmul.f32 %v1265, 0.0051020407
      %v1292 = vmul.f32 %v1269, 0.0051020407
      %v1293 = vmul.f32 %v1273, 0.0051020407
      %v1294 = vmul.f32 %v1277, 0.0051020407
      %v1295 = vsub.f32 %v901, %v1278
      %v1296 = vsub.f32 %v1166, %v1278
      %v1297 = vsub.f32 %v903, %v1279
      %v1298 = vsub.f32 %v1168, %v1279
      %v1299 = vsub.f32 %v906, %v1280
      %v1300 = vsub.f32 %v1171, %v1280
      %v1301 = vsub.f32 %v908, %v1281
      %v1302 = vsub.f32 %v1173, %v1281
      %v1303 = vsub.f32 %v911, %v1282
      %v1304 = vsub.f32 %v1176, %v1282
      %v1305 = vsub.f32 %v913, %v1283
      %v1306 = vsub.f32 %v1178, %v1283
      %v1307 = vsub.f32 %v916, %v1284
      %v1308 = vsub.f32 %v1181, %v1284
      %v1309 = vsub.f32 %v918, %v1285
      %v1310 = vsub.f32 %v1183, %v1285
      %v1311 = vsub.f32 %v921, %v1286
      %v1312 = vsub.f32 %v1186, %v1286
      %v1313 = vsub.f32 %v923, %v1287
      %v1314 = vsub.f32 %v1188, %v1287
      %v1315 = vsub.f32 %v926, %v1288
      %v1316 = vsub.f32 %v1191, %v1288
      %v1317 = vsub.f32 %v928, %v1289
      %v1318 = vsub.f32 %v1193, %v1289
      %v1319 = vsub.f32 %v931, %v1290
      %v1320 = vsub.f32 %v1196, %v1290
      %v1321 = vsub.f32 %v933, %v1291
      %v1322 = vsub.f32 %v1198, %v1291
      %v1323 = vsub.f32 %v936, %v1292
      %v1324 = vsub.f32 %v1201, %v1292
      %v1325 = vsub.f32 %v938, %v1293
      %v1326 = vsub.f32 %v1203, %v1293
      %v1327 = vsub.f32 %v941, %v1294
      %v1328 = vsub.f32 %v1206, %v1294
      %v1329 = vmul.f32 %v1295, %v1295
      %v1330 = vmul.f32 %v1296, %v1296
      %v1331 = vmul.f32 %v1297, %v1297
      %v1332 = vmul.f32 %v1298, %v1298
      %v1333 = vmul.f32 %v1299, %v1299
      %v1334 = vmul.f32 %v1300, %v1300
      %v1335 = vmul.f32 %v1301, %v1301
      %v1336 = vmul.f32 %v1302, %v1302
      %v1337 = vmul.f32 %v1303, %v1303
      %v1338 = vmul.f32 %v1304, %v1304
      %v1339 = vmul.f32 %v1305, %v1305
      %v1340 = vmul.f32 %v1306, %v1306
      %v1341 = vmul.f32 %v1307, %v1307
      %v1342 = vmul.f32 %v1308, %v1308
      %v1343 = vmul.f32 %v1309, %v1309
      %v1344 = vmul.f32 %v1310, %v1310
      %v1345 = vmul.f32 %v1311, %v1311
      %v1346 = vmul.f32 %v1312, %v1312
      %v1347 = vmul.f32 %v1313, %v1313
      %v1348 = vmul.f32 %v1314, %v1314
      %v1349 = vmul.f32 %v1315, %v1315
      %v1350 = vmul.f32 %v1316, %v1316
      %v1351 = vmul.f32 %v1317, %v1317
      %v1352 = vmul.f32 %v1318, %v1318
      %v1353 = vmul.f32 %v1319, %v1319
      %v1354 = vmul.f32 %v1320, %v1320
      %v1355 = vmul.f32 %v1321, %v1321
      %v1356 = vmul.f32 %v1322, %v1322
      %v1357 = vmul.f32 %v1323, %v1323
      %v1358 = vmul.f32 %v1324, %v1324
      %v1359 = vmul.f32 %v1325, %v1325
      %v1360 = vmul.f32 %v1326, %v1326
      %v1361 = vmul.f32 %v1327, %v1327
      %v1362 = vmul.f32 %v1328, %v1328
      %v1363 = vsel %vm1209, %v1330, 0.0
      %v1364 = vadd.f32 %v1329, %v1363
      %1365 = vadd.xlane.f32.xlu0 %v1364
      %v1366 = vpop.xlane.xlu0 %1365
      %v1367 = vsel %vm1209, %v1332, 0.0
      %v1368 = vadd.f32 %v1331, %v1367
      %1369 = vadd.xlane.f32.xlu0 %v1368
      %v1370 = vpop.xlane.xlu0 %1369
      %v1371 = vsel %vm1209, %v1334, 0.0
      %v1372 = vadd.f32 %v1333, %v1371
      %1373 = vadd.xlane.f32.xlu0 %v1372
      %v1374 = vpop.xlane.xlu0 %1373
      %v1375 = vsel %vm1209, %v1336, 0.0
      %v1376 = vadd.f32 %v1335, %v1375
      %1377 = vadd.xlane.f32.xlu0 %v1376
      %v1378 = vpop.xlane.xlu0 %1377
      %v1379 = vsel %vm1209, %v1338, 0.0
      %v1380 = vadd.f32 %v1337, %v1379
      %1381 = vadd.xlane.f32.xlu0 %v1380
      %v1382 = vpop.xlane.xlu0 %1381
      %v1383 = vsel %vm1209, %v1340, 0.0
      %v1384 = vadd.f32 %v1339, %v1383
      %1385 = vadd.xlane.f32.xlu0 %v1384
      %v1386 = vpop.xlane.xlu0 %1385
      %v1387 = vsel %vm1209, %v1342, 0.0
      %v1388 = vadd.f32 %v1341, %v1387
      %1389 = vadd.xlane.f32.xlu0 %v1388
      %v1390 = vpop.xlane.xlu0 %1389
      %v1391 = vsel %vm1209, %v1344, 0.0
      %v1392 = vadd.f32 %v1343, %v1391
      %1393 = vadd.xlane.f32.xlu0 %v1392
      %v1394 = vpop.xlane.xlu0 %1393
      %v1395 = vsel %vm1209, %v1346, 0.0
      %v1396 = vadd.f32 %v1345, %v1395
      %1397 = vadd.xlane.f32.xlu0 %v1396
      %v1398 = vpop.xlane.xlu0 %1397
      %v1399 = vsel %vm1209, %v1348, 0.0
      %v1400 = vadd.f32 %v1347, %v1399
      %1401 = vadd.xlane.f32.xlu0 %v1400
      %v1402 = vpop.xlane.xlu0 %1401
      %v1403 = vsel %vm1209, %v1350, 0.0
      %v1404 = vadd.f32 %v1349, %v1403
      %1405 = vadd.xlane.f32.xlu0 %v1404
      %v1406 = vpop.xlane.xlu0 %1405
      %v1407 = vsel %vm1209, %v1352, 0.0
      %v1408 = vadd.f32 %v1351, %v1407
      %1409 = vadd.xlane.f32.xlu0 %v1408
      %v1410 = vpop.xlane.xlu0 %1409
      %v1411 = vsel %vm1209, %v1354, 0.0
      %v1412 = vadd.f32 %v1353, %v1411
      %1413 = vadd.xlane.f32.xlu0 %v1412
      %v1414 = vpop.xlane.xlu0 %1413
      %v1415 = vsel %vm1209, %v1356, 0.0
      %v1416 = vadd.f32 %v1355, %v1415
      %1417 = vadd.xlane.f32.xlu0 %v1416
      %v1418 = vpop.xlane.xlu0 %1417
      %v1419 = vsel %vm1209, %v1358, 0.0
      %v1420 = vadd.f32 %v1357, %v1419
      %1421 = vadd.xlane.f32.xlu0 %v1420
      %v1422 = vpop.xlane.xlu0 %1421
      %v1423 = vsel %vm1209, %v1360, 0.0
      %v1424 = vadd.f32 %v1359, %v1423
      %1425 = vadd.xlane.f32.xlu0 %v1424
      %v1426 = vpop.xlane.xlu0 %1425
      %v1427 = vsel %vm1209, %v1362, 0.0
      %v1428 = vadd.f32 %v1361, %v1427
      %1429 = vadd.xlane.f32.xlu0 %v1428
      %v1430 = vpop.xlane.xlu0 %1429
      %v1431 = vmul.f32 %v1366, 0.0051020407
      %v1432 = vmul.f32 %v1370, 0.0051020407
      %v1433 = vmul.f32 %v1374, 0.0051020407
      %v1434 = vmul.f32 %v1378, 0.0051020407
      %v1435 = vmul.f32 %v1382, 0.0051020407
      %v1436 = vmul.f32 %v1386, 0.0051020407
      %v1437 = vmul.f32 %v1390, 0.0051020407
      %v1438 = vmul.f32 %v1394, 0.0051020407
      %v1439 = vmul.f32 %v1398, 0.0051020407
      %v1440 = vmul.f32 %v1402, 0.0051020407
      %v1441 = vmul.f32 %v1406, 0.0051020407
      %v1442 = vmul.f32 %v1410, 0.0051020407
      %v1443 = vmul.f32 %v1414, 0.0051020407
      %v1444 = vmul.f32 %v1418, 0.0051020407
      %v1445 = vmul.f32 %v1422, 0.0051020407
      %v1446 = vmul.f32 %v1426, 0.0051020407
      %v1447 = vmul.f32 %v1430, 0.0051020407
      %v1448 = vld [vmem:[%s2] sm:$0xff]
      %v1449 = vld [vmem:[%s2 + $0x8] sm:$0xff]
      %v1450 = vld [vmem:[%s2 + $0x10] sm:$0xff]
      %v1451 = vld [vmem:[%s2 + $0x18] sm:$0xff]
      %v1452 = vld [vmem:[%s2 + $0x20] sm:$0xff]
      %v1453 = vld [vmem:[%s2 + $0x28] sm:$0xff]
      %v1454 = vld [vmem:[%s2 + $0x30] sm:$0xff]
      %v1455 = vld [vmem:[%s2 + $0x38] sm:$0xff]
      %v1456 = vld [vmem:[%s2 + $0x40] sm:$0xff]
      %v1457 = vld [vmem:[%s2 + $0x48] sm:$0xff]
      %v1458 = vld [vmem:[%s2 + $0x50] sm:$0xff]
      %v1459 = vld [vmem:[%s2 + $0x58] sm:$0xff]
      %v1460 = vld [vmem:[%s2 + $0x60] sm:$0xff]
      %v1461 = vld [vmem:[%s2 + $0x68] sm:$0xff]
      %v1462 = vld [vmem:[%s2 + $0x70] sm:$0xff]
      %v1463 = vld [vmem:[%s2 + $0x78] sm:$0xff]
      %v1464 = vld [vmem:[%s2 + $0x80] sm:$0xff]
      %v1465 = vadd.f32 %v1431, 1e-05
      %v1466 = vadd.f32 %v1432, 1e-05
      %v1467 = vadd.f32 %v1433, 1e-05
      %v1468 = vadd.f32 %v1434, 1e-05
      %v1469 = vadd.f32 %v1435, 1e-05
      %v1470 = vadd.f32 %v1436, 1e-05
      %v1471 = vadd.f32 %v1437, 1e-05
      %v1472 = vadd.f32 %v1438, 1e-05
      %v1473 = vadd.f32 %v1439, 1e-05
      %v1474 = vadd.f32 %v1440, 1e-05
      %v1475 = vadd.f32 %v1441, 1e-05
      %v1476 = vadd.f32 %v1442, 1e-05
      %v1477 = vadd.f32 %v1443, 1e-05
      %v1478 = vadd.f32 %v1444, 1e-05
      %v1479 = vadd.f32 %v1445, 1e-05
      %v1480 = vadd.f32 %v1446, 1e-05
      %v1481 = vadd.f32 %v1447, 1e-05
      %v1482 = vrsqrt.pop %v1465
      %v1483 = vmul.f32 %v1482, %v1465
      %v1484 = vmul.f32 %v1483, %v1482
      %v1485 = vmul.f32 0.5, %v1484
      %v1486 = vsub.f32 1.5, %v1485
      %v1487 = vmul.f32 %v1482, %v1486
      %vm1488 = vweird.f32 %v1465
      %vm1489 = vweird.f32 %v1482
      %vm1490 = vmor %vm1488, %vm1489
      %v1491 = vsel %vm1490, %v1482, %v1487
      %v1492 = vrsqrt.pop %v1466
      %v1493 = vmul.f32 %v1492, %v1466
      %v1494 = vmul.f32 %v1493, %v1492
      %v1495 = vmul.f32 0.5, %v1494
      %v1496 = vsub.f32 1.5, %v1495
      %v1497 = vmul.f32 %v1492, %v1496
      %vm1498 = vweird.f32 %v1466
      %vm1499 = vweird.f32 %v1492
      %vm1500 = vmor %vm1498, %vm1499
      %v1501 = vsel %vm1500, %v1492, %v1497
      %v1502 = vrsqrt.pop %v1467
      %v1503 = vmul.f32 %v1502, %v1467
      %v1504 = vmul.f32 %v1503, %v1502
      %v1505 = vmul.f32 0.5, %v1504
      %v1506 = vsub.f32 1.5, %v1505
      %v1507 = vmul.f32 %v1502, %v1506
      %vm1508 = vweird.f32 %v1467
      %vm1509 = vweird.f32 %v1502
      %vm1510 = vmor %vm1508, %vm1509
      %v1511 = vsel %vm1510, %v1502, %v1507
      %v1512 = vrsqrt.pop %v1468
      %v1513 = vmul.f32 %v1512, %v1468
      %v1514 = vmul.f32 %v1513, %v1512
      %v1515 = vmul.f32 0.5, %v1514
      %v1516 = vsub.f32 1.5, %v1515
      %v1517 = vmul.f32 %v1512, %v1516
      %vm1518 = vweird.f32 %v1468
      %vm1519 = vweird.f32 %v1512
      %vm1520 = vmor %vm1518, %vm1519
      %v1521 = vsel %vm1520, %v1512, %v1517
      %v1522 = vrsqrt.pop %v1469
      %v1523 = vmul.f32 %v1522, %v1469
      %v1524 = vmul.f32 %v1523, %v1522
      %v1525 = vmul.f32 0.5, %v1524
      %v1526 = vsub.f32 1.5, %v1525
      %v1527 = vmul.f32 %v1522, %v1526
      %vm1528 = vweird.f32 %v1469
      %vm1529 = vweird.f32 %v1522
      %vm1530 = vmor %vm1528, %vm1529
      %v1531 = vsel %vm1530, %v1522, %v1527
      %v1532 = vrsqrt.pop %v1470
      %v1533 = vmul.f32 %v1532, %v1470
      %v1534 = vmul.f32 %v1533, %v1532
      %v1535 = vmul.f32 0.5, %v1534
      %v1536 = vsub.f32 1.5, %v1535
      %v1537 = vmul.f32 %v1532, %v1536
      %vm1538 = vweird.f32 %v1470
      %vm1539 = vweird.f32 %v1532
      %vm1540 = vmor %vm1538, %vm1539
      %v1541 = vsel %vm1540, %v1532, %v1537
      %v1542 = vrsqrt.pop %v1471
      %v1543 = vmul.f32 %v1542, %v1471
      %v1544 = vmul.f32 %v1543, %v1542
      %v1545 = vmul.f32 0.5, %v1544
      %v1546 = vsub.f32 1.5, %v1545
      %v1547 = vmul.f32 %v1542, %v1546
      %vm1548 = vweird.f32 %v1471
      %vm1549 = vweird.f32 %v1542
      %vm1550 = vmor %vm1548, %vm1549
      %v1551 = vsel %vm1550, %v1542, %v1547
      %v1552 = vrsqrt.pop %v1472
      %v1553 = vmul.f32 %v1552, %v1472
      %v1554 = vmul.f32 %v1553, %v1552
      %v1555 = vmul.f32 0.5, %v1554
      %v1556 = vsub.f32 1.5, %v1555
      %v1557 = vmul.f32 %v1552, %v1556
      %vm1558 = vweird.f32 %v1472
      %vm1559 = vweird.f32 %v1552
      %vm1560 = vmor %vm1558, %vm1559
      %v1561 = vsel %vm1560, %v1552, %v1557
      %v1562 = vrsqrt.pop %v1473
      %v1563 = vmul.f32 %v1562, %v1473
      %v1564 = vmul.f32 %v1563, %v1562
      %v1565 = vmul.f32 0.5, %v1564
      %v1566 = vsub.f32 1.5, %v1565
      %v1567 = vmul.f32 %v1562, %v1566
      %vm1568 = vweird.f32 %v1473
      %vm1569 = vweird.f32 %v1562
      %vm1570 = vmor %vm1568, %vm1569
      %v1571 = vsel %vm1570, %v1562, %v1567
      %v1572 = vrsqrt.pop %v1474
      %v1573 = vmul.f32 %v1572, %v1474
      %v1574 = vmul.f32 %v1573, %v1572
      %v1575 = vmul.f32 0.5, %v1574
      %v1576 = vsub.f32 1.5, %v1575
      %v1577 = vmul.f32 %v1572, %v1576
      %vm1578 = vweird.f32 %v1474
      %vm1579 = vweird.f32 %v1572
      %vm1580 = vmor %vm1578, %vm1579
      %v1581 = vsel %vm1580, %v1572, %v1577
      %v1582 = vrsqrt.pop %v1475
      %v1583 = vmul.f32 %v1582, %v1475
      %v1584 = vmul.f32 %v1583, %v1582
      %v1585 = vmul.f32 0.5, %v1584
      %v1586 = vsub.f32 1.5, %v1585
      %v1587 = vmul.f32 %v1582, %v1586
      %vm1588 = vweird.f32 %v1475
      %vm1589 = vweird.f32 %v1582
      %vm1590 = vmor %vm1588, %vm1589
      %v1591 = vsel %vm1590, %v1582, %v1587
      %v1592 = vrsqrt.pop %v1476
      %v1593 = vmul.f32 %v1592, %v1476
      %v1594 = vmul.f32 %v1593, %v1592
      %v1595 = vmul.f32 0.5, %v1594
      %v1596 = vsub.f32 1.5, %v1595
      %v1597 = vmul.f32 %v1592, %v1596
      %vm1598 = vweird.f32 %v1476
      %vm1599 = vweird.f32 %v1592
      %vm1600 = vmor %vm1598, %vm1599
      %v1601 = vsel %vm1600, %v1592, %v1597
      %v1602 = vrsqrt.pop %v1477
      %v1603 = vmul.f32 %v1602, %v1477
      %v1604 = vmul.f32 %v1603, %v1602
      %v1605 = vmul.f32 0.5, %v1604
      %v1606 = vsub.f32 1.5, %v1605
      %v1607 = vmul.f32 %v1602, %v1606
      %vm1608 = vweird.f32 %v1477
      %vm1609 = vweird.f32 %v1602
      %vm1610 = vmor %vm1608, %vm1609
      %v1611 = vsel %vm1610, %v1602, %v1607
      %v1612 = vrsqrt.pop %v1478
      %v1613 = vmul.f32 %v1612, %v1478
      %v1614 = vmul.f32 %v1613, %v1612
      %v1615 = vmul.f32 0.5, %v1614
      %v1616 = vsub.f32 1.5, %v1615
      %v1617 = vmul.f32 %v1612, %v1616
      %vm1618 = vweird.f32 %v1478
      %vm1619 = vweird.f32 %v1612
      %vm1620 = vmor %vm1618, %vm1619
      %v1621 = vsel %vm1620, %v1612, %v1617
      %v1622 = vrsqrt.pop %v1479
      %v1623 = vmul.f32 %v1622, %v1479
      %v1624 = vmul.f32 %v1623, %v1622
      %v1625 = vmul.f32 0.5, %v1624
      %v1626 = vsub.f32 1.5, %v1625
      %v1627 = vmul.f32 %v1622, %v1626
      %vm1628 = vweird.f32 %v1479
      %vm1629 = vweird.f32 %v1622
      %vm1630 = vmor %vm1628, %vm1629
      %v1631 = vsel %vm1630, %v1622, %v1627
      %v1632 = vrsqrt.pop %v1480
      %v1633 = vmul.f32 %v1632, %v1480
      %v1634 = vmul.f32 %v1633, %v1632
      %v1635 = vmul.f32 0.5, %v1634
      %v1636 = vsub.f32 1.5, %v1635
      %v1637 = vmul.f32 %v1632, %v1636
      %vm1638 = vweird.f32 %v1480
      %vm1639 = vweird.f32 %v1632
      %vm1640 = vmor %vm1638, %vm1639
      %v1641 = vsel %vm1640, %v1632, %v1637
      %v1642 = vrsqrt.pop %v1481
      %v1643 = vmul.f32 %v1642, %v1481
      %v1644 = vmul.f32 %v1643, %v1642
      %v1645 = vmul.f32 0.5, %v1644
      %v1646 = vsub.f32 1.5, %v1645
      %v1647 = vmul.f32 %v1642, %v1646
      %vm1648 = vweird.f32 %v1481
      %vm1649 = vweird.f32 %v1642
      %vm1650 = vmor %vm1648, %vm1649
      %v1651 = vsel %vm1650, %v1642, %v1647
      %v1652 = vmul.f32 %v1448, %v1491
      %v1653 = vmul.f32 %v1449, %v1501
      %v1654 = vmul.f32 %v1450, %v1511
      %v1655 = vmul.f32 %v1451, %v1521
      %v1656 = vmul.f32 %v1452, %v1531
      %v1657 = vmul.f32 %v1453, %v1541
      %v1658 = vmul.f32 %v1454, %v1551
      %v1659 = vmul.f32 %v1455, %v1561
      %v1660 = vmul.f32 %v1456, %v1571
      %v1661 = vmul.f32 %v1457, %v1581
      %v1662 = vmul.f32 %v1458, %v1591
      %v1663 = vmul.f32 %v1459, %v1601
      %v1664 = vmul.f32 %v1460, %v1611
      %v1665 = vmul.f32 %v1461, %v1621
      %v1666 = vmul.f32 %v1462, %v1631
      %v1667 = vmul.f32 %v1463, %v1641
      %v1668 = vmul.f32 %v1464, %v1651
      %1670 = vset.pattern.permute.xlu0 0
      %1671 = vperm.xlu0 %1670, %v1652
      %v1672 = vpop.permute.xlu0 %1671
      %1675 = vset.pattern.permute.xlu0 0
      %1676 = vperm.xlu0 %1675, %v1653
      %v1677 = vpop.permute.xlu0 %1676
      %1680 = vset.pattern.permute.xlu0 0
      %1681 = vperm.xlu0 %1680, %v1654
      %v1682 = vpop.permute.xlu0 %1681
      %1685 = vset.pattern.permute.xlu0 0
      %1686 = vperm.xlu0 %1685, %v1655
      %v1687 = vpop.permute.xlu0 %1686
      %1690 = vset.pattern.permute.xlu0 0
      %1691 = vperm.xlu0 %1690, %v1656
      %v1692 = vpop.permute.xlu0 %1691
      %1695 = vset.pattern.permute.xlu0 0
      %1696 = vperm.xlu0 %1695, %v1657
      %v1697 = vpop.permute.xlu0 %1696
      %1700 = vset.pattern.permute.xlu0 0
      %1701 = vperm.xlu0 %1700, %v1658
      %v1702 = vpop.permute.xlu0 %1701
      %1705 = vset.pattern.permute.xlu0 0
      %1706 = vperm.xlu0 %1705, %v1659
      %v1707 = vpop.permute.xlu0 %1706
      %1710 = vset.pattern.permute.xlu0 0
      %1711 = vperm.xlu0 %1710, %v1660
      %v1712 = vpop.permute.xlu0 %1711
      %1715 = vset.pattern.permute.xlu0 0
      %1716 = vperm.xlu0 %1715, %v1661
      %v1717 = vpop.permute.xlu0 %1716
      %1720 = vset.pattern.permute.xlu0 0
      %1721 = vperm.xlu0 %1720, %v1662
      %v1722 = vpop.permute.xlu0 %1721
      %1725 = vset.pattern.permute.xlu0 0
      %1726 = vperm.xlu0 %1725, %v1663
      %v1727 = vpop.permute.xlu0 %1726
      %1730 = vset.pattern.permute.xlu0 0
      %1731 = vperm.xlu0 %1730, %v1664
      %v1732 = vpop.permute.xlu0 %1731
      %1735 = vset.pattern.permute.xlu0 0
      %1736 = vperm.xlu0 %1735, %v1665
      %v1737 = vpop.permute.xlu0 %1736
      %1740 = vset.pattern.permute.xlu0 0
      %1741 = vperm.xlu0 %1740, %v1666
      %v1742 = vpop.permute.xlu0 %1741
      %1745 = vset.pattern.permute.xlu0 0
      %1746 = vperm.xlu0 %1745, %v1667
      %v1747 = vpop.permute.xlu0 %1746
      %1750 = vset.pattern.permute.xlu0 0
      %1751 = vperm.xlu0 %1750, %v1668
      %v1752 = vpop.permute.xlu0 %1751
      %v1754 = vmul.f32 %v901, %v1672
      %v1755 = vmul.f32 %v1166, %v1672
      %v1756 = vmul.f32 %v903, %v1677
      %v1757 = vmul.f32 %v1168, %v1677
      %v1758 = vmul.f32 %v906, %v1682
      %v1759 = vmul.f32 %v1171, %v1682
      %v1760 = vmul.f32 %v908, %v1687
      %v1761 = vmul.f32 %v1173, %v1687
      %v1762 = vmul.f32 %v911, %v1692
      %v1763 = vmul.f32 %v1176, %v1692
      %v1764 = vmul.f32 %v913, %v1697
      %v1765 = vmul.f32 %v1178, %v1697
      %v1766 = vmul.f32 %v916, %v1702
      %v1767 = vmul.f32 %v1181, %v1702
      %v1768 = vmul.f32 %v918, %v1707
      %v1769 = vmul.f32 %v1183, %v1707
      %v1770 = vmul.f32 %v921, %v1712
      %v1771 = vmul.f32 %v1186, %v1712
      %v1772 = vmul.f32 %v923, %v1717
      %v1773 = vmul.f32 %v1188, %v1717
      %v1774 = vmul.f32 %v926, %v1722
      %v1775 = vmul.f32 %v1191, %v1722
      %v1776 = vmul.f32 %v928, %v1727
      %v1777 = vmul.f32 %v1193, %v1727
      %v1778 = vmul.f32 %v931, %v1732
      %v1779 = vmul.f32 %v1196, %v1732
      %v1780 = vmul.f32 %v933, %v1737
      %v1781 = vmul.f32 %v1198, %v1737
      %v1782 = vmul.f32 %v936, %v1742
      %v1783 = vmul.f32 %v1201, %v1742
      %v1784 = vmul.f32 %v938, %v1747
      %v1785 = vmul.f32 %v1203, %v1747
      %v1786 = vmul.f32 %v941, %v1752
      %v1787 = vmul.f32 %v1206, %v1752
      %v1788 = vpack.c.bf16 %v1756, %v1754
      %v1789 = vpack.c.bf16 %v1757, %v1755
      %v1790 = vpack.c.bf16 %v1760, %v1758
      %v1791 = vpack.c.bf16 %v1761, %v1759
      %v1792 = vpack.c.bf16 %v1764, %v1762
      %v1793 = vpack.c.bf16 %v1765, %v1763
      %v1794 = vpack.c.bf16 %v1768, %v1766
      %v1795 = vpack.c.bf16 %v1769, %v1767
      %v1796 = vpack.c.bf16 %v1772, %v1770
      %v1797 = vpack.c.bf16 %v1773, %v1771
      %v1798 = vpack.c.bf16 %v1776, %v1774
      %v1799 = vpack.c.bf16 %v1777, %v1775
      %v1800 = vpack.c.bf16 %v1780, %v1778
      %v1801 = vpack.c.bf16 %v1781, %v1779
      %v1802 = vpack.c.bf16 %v1784, %v1782
      %v1803 = vpack.c.bf16 %v1785, %v1783
      %v1804 = vpack.c.bf16 %v1786, %v1786
      %v1805 = vpack.c.bf16 %v1787, %v1787
      %v1806 = vld [vmem:[%s283] sm:$0xff]
      %v1807 = vld [vmem:[%s283 + $0x8] sm:$0xff]
      %v1808 = vld [vmem:[%s283 + $0x10] sm:$0xff]
      %v1809 = vld [vmem:[%s283 + $0x18] sm:$0xff]
      %v1810 = vld [vmem:[%s283 + $0x20] sm:$0xff]
      %v1811 = vld [vmem:[%s283 + $0x28] sm:$0xff]
      %v1812 = vld [vmem:[%s283 + $0x30] sm:$0xff]
      %v1813 = vld [vmem:[%s283 + $0x38] sm:$0xff]
      %v1814 = vld [vmem:[%s283 + $0x40] sm:$0xff]
      %v1815 = vld [vmem:[%s283 + $0x48] sm:$0xff]
      %v1816 = vld [vmem:[%s283 + $0x50] sm:$0xff]
      %v1817 = vld [vmem:[%s283 + $0x58] sm:$0xff]
      %v1818 = vld [vmem:[%s283 + $0x60] sm:$0xff]
      %v1819 = vld [vmem:[%s283 + $0x68] sm:$0xff]
      %v1820 = vld [vmem:[%s283 + $0x70] sm:$0xff]
      %v1821 = vld [vmem:[%s283 + $0x78] sm:$0xff]
      %v1822 = vld [vmem:[%s283 + $0x80] sm:$0xff]
      %v1823 = vld [vmem:[%s283 + $0x88] sm:$0xff]
      %v1824 = vld [vmem:[%s283 + $0x90] sm:$0xff]
      %v1825 = vld [vmem:[%s283 + $0x98] sm:$0xff]
      %v1826 = vld [vmem:[%s283 + $0xa0] sm:$0xff]
      %v1827 = vld [vmem:[%s283 + $0xa8] sm:$0xff]
      %v1828 = vld [vmem:[%s283 + $0xb0] sm:$0xff]
      %v1829 = vld [vmem:[%s283 + $0xb8] sm:$0xff]
      %v1830 = vld [vmem:[%s283 + $0xc0] sm:$0xff]
      %v1831 = vld [vmem:[%s283 + $0xc8] sm:$0xff]
      %v1832 = vld [vmem:[%s283 + $0xd0] sm:$0xff]
      %v1833 = vld [vmem:[%s283 + $0xd8] sm:$0xff]
      %v1834 = vld [vmem:[%s283 + $0xe0] sm:$0xff]
      %v1835 = vld [vmem:[%s283 + $0xe8] sm:$0xff]
      %v1836 = vld [vmem:[%s283 + $0xf0] sm:$0xff]
      %v1837 = vld [vmem:[%s283 + $0xf8] sm:$0xff]
      %v1838 = vld [vmem:[%s283 + $0x100] sm:$0xff]
      %v1839 = vld [vmem:[%s283 + $0x108] sm:$0xff]
      %v1840 = vld [vmem:[%s283 + $0x110] sm:$0xff]
      %v1841 = vld [vmem:[%s283 + $0x118] sm:$0xff]
      %v1842 = vld [vmem:[%s283 + $0x120] sm:$0xff]
      %v1843 = vld [vmem:[%s283 + $0x128] sm:$0xff]
      %v1844 = vld [vmem:[%s283 + $0x130] sm:$0xff]
      %v1845 = vld [vmem:[%s283 + $0x138] sm:$0xff]
      %v1846 = vld [vmem:[%s283 + $0x140] sm:$0xff]
      %v1847 = vld [vmem:[%s283 + $0x148] sm:$0xff]
      %v1848 = vld [vmem:[%s283 + $0x150] sm:$0xff]
      %v1849 = vld [vmem:[%s283 + $0x158] sm:$0xff]
      %v1850 = vld [vmem:[%s283 + $0x160] sm:$0xff]
      %v1851 = vld [vmem:[%s283 + $0x168] sm:$0xff]
      %v1852 = vld [vmem:[%s283 + $0x170] sm:$0xff]
      %v1853 = vld [vmem:[%s283 + $0x178] sm:$0xff]
      %v1854 = vld [vmem:[%s283 + $0x180] sm:$0xff]
      %v1855 = vld [vmem:[%s283 + $0x188] sm:$0xff]
      %v1856 = vld [vmem:[%s283 + $0x190] sm:$0xff]
      %v1857 = vld [vmem:[%s283 + $0x198] sm:$0xff]
      %v1858 = vld [vmem:[%s283 + $0x1a0] sm:$0xff]
      %v1859 = vld [vmem:[%s283 + $0x1a8] sm:$0xff]
      %v1860 = vld [vmem:[%s283 + $0x1b0] sm:$0xff]
      %v1861 = vld [vmem:[%s283 + $0x1b8] sm:$0xff]
      %v1862 = vld [vmem:[%s283 + $0x1c0] sm:$0xff]
      %v1863 = vld [vmem:[%s283 + $0x1c8] sm:$0xff]
      %v1864 = vld [vmem:[%s283 + $0x1d0] sm:$0xff]
      %v1865 = vld [vmem:[%s283 + $0x1d8] sm:$0xff]
      %v1866 = vld [vmem:[%s283 + $0x1e0] sm:$0xff]
      %v1867 = vld [vmem:[%s283 + $0x1e8] sm:$0xff]
      %v1868 = vld [vmem:[%s283 + $0x1f0] sm:$0xff]
      %v1869 = vld [vmem:[%s283 + $0x1f8] sm:$0xff]
      %v1870 = vld [vmem:[%s283 + $0x200] sm:$0xff]
      %v1871 = vld [vmem:[%s283 + $0x208] sm:$0xff]
      %v1872 = vld [vmem:[%s283 + $0x210] sm:$0xff]
      %v1873 = vld [vmem:[%s283 + $0x218] sm:$0xff]
      %v1874 = vld [vmem:[%s283 + $0x220] sm:$0xff]
      %v1875 = vld [vmem:[%s283 + $0x228] sm:$0xff]
      %v1876 = vld [vmem:[%s283 + $0x230] sm:$0xff]
      %v1877 = vld [vmem:[%s283 + $0x238] sm:$0xff]
      %v1878 = vld [vmem:[%s283 + $0x240] sm:$0xff]
      %v1879 = vld [vmem:[%s283 + $0x248] sm:$0xff]
      %v1880 = vld [vmem:[%s283 + $0x250] sm:$0xff]
      %v1881 = vld [vmem:[%s283 + $0x258] sm:$0xff]
      %v1882 = vld [vmem:[%s283 + $0x260] sm:$0xff]
      %v1883 = vld [vmem:[%s283 + $0x268] sm:$0xff]
      %v1884 = vld [vmem:[%s283 + $0x270] sm:$0xff]
      %v1885 = vld [vmem:[%s283 + $0x278] sm:$0xff]
      %v1886 = vld [vmem:[%s283 + $0x280] sm:$0xff]
      %v1887 = vld [vmem:[%s283 + $0x288] sm:$0xff]
      %v1888 = vld [vmem:[%s283 + $0x290] sm:$0xff]
      %v1889 = vld [vmem:[%s283 + $0x298] sm:$0xff]
      %v1890 = vld [vmem:[%s283 + $0x2a0] sm:$0xff]
      %v1891 = vld [vmem:[%s283 + $0x2a8] sm:$0xff]
      %v1892 = vld [vmem:[%s283 + $0x2b0] sm:$0xff]
      %v1893 = vld [vmem:[%s283 + $0x2b8] sm:$0xff]
      %v1894 = vld [vmem:[%s283 + $0x2c0] sm:$0xff]
      %v1895 = vld [vmem:[%s283 + $0x2c8] sm:$0xff]
      %v1896 = vld [vmem:[%s283 + $0x2d0] sm:$0xff]
      %v1897 = vld [vmem:[%s283 + $0x2d8] sm:$0xff]
      %v1898 = vld [vmem:[%s283 + $0x2e0] sm:$0xff]
      %v1899 = vld [vmem:[%s283 + $0x2e8] sm:$0xff]
      %v1900 = vld [vmem:[%s283 + $0x2f0] sm:$0xff]
      %v1901 = vld [vmem:[%s283 + $0x2f8] sm:$0xff]
      %v1902 = vld [vmem:[%s283 + $0x300] sm:$0xff]
      %v1903 = vld [vmem:[%s283 + $0x308] sm:$0xff]
      %v1904 = vld [vmem:[%s283 + $0x310] sm:$0xff]
      %v1905 = vld [vmem:[%s283 + $0x318] sm:$0xff]
      %v1906 = vld [vmem:[%s283 + $0x320] sm:$0xff]
      %v1907 = vld [vmem:[%s283 + $0x328] sm:$0xff]
      %v1908 = vpack.c.bf16 %v1808, %v1806
      %v1909 = vpack.c.bf16 %v1809, %v1807
      %v1910 = vpack.c.bf16 %v1812, %v1810
      %v1911 = vpack.c.bf16 %v1813, %v1811
      %v1912 = vpack.c.bf16 %v1816, %v1814
      %v1913 = vpack.c.bf16 %v1817, %v1815
      %v1914 = vpack.c.bf16 %v1820, %v1818
      %v1915 = vpack.c.bf16 %v1821, %v1819
      %v1916 = vpack.c.bf16 %v1824, %v1822
      %v1917 = vpack.c.bf16 %v1825, %v1823
      %v1918 = vpack.c.bf16 %v1828, %v1826
      %v1919 = vpack.c.bf16 %v1829, %v1827
      %v1920 = vpack.c.bf16 %v1832, %v1830
      %v1921 = vpack.c.bf16 %v1833, %v1831
      %v1922 = vpack.c.bf16 %v1836, %v1834
      %v1923 = vpack.c.bf16 %v1837, %v1835
      %v1924 = vpack.c.bf16 %v1840, %v1838
      %v1925 = vpack.c.bf16 %v1841, %v1839
      %v1926 = vpack.c.bf16 %v1844, %v1842
      %v1927 = vpack.c.bf16 %v1845, %v1843
      %v1928 = vpack.c.bf16 %v1848, %v1846
      %v1929 = vpack.c.bf16 %v1849, %v1847
      %v1930 = vpack.c.bf16 %v1852, %v1850
      %v1931 = vpack.c.bf16 %v1853, %v1851
      %v1932 = vpack.c.bf16 %v1856, %v1854
      %v1933 = vpack.c.bf16 %v1857, %v1855
      %v1934 = vpack.c.bf16 %v1860, %v1858
      %v1935 = vpack.c.bf16 %v1861, %v1859
      %v1936 = vpack.c.bf16 %v1864, %v1862
      %v1937 = vpack.c.bf16 %v1865, %v1863
      %v1938 = vpack.c.bf16 %v1868, %v1866
      %v1939 = vpack.c.bf16 %v1869, %v1867
      %v1940 = vpack.c.bf16 %v1872, %v1870
      %v1941 = vpack.c.bf16 %v1873, %v1871
      %v1942 = vpack.c.bf16 %v1876, %v1874
      %v1943 = vpack.c.bf16 %v1877, %v1875
      %v1944 = vpack.c.bf16 %v1880, %v1878
      %v1945 = vpack.c.bf16 %v1881, %v1879
      %v1946 = vpack.c.bf16 %v1884, %v1882
      %v1947 = vpack.c.bf16 %v1885, %v1883
      %v1948 = vpack.c.bf16 %v1888, %v1886
      %v1949 = vpack.c.bf16 %v1889, %v1887
      %v1950 = vpack.c.bf16 %v1892, %v1890
      %v1951 = vpack.c.bf16 %v1893, %v1891
      %v1952 = vpack.c.bf16 %v1896, %v1894
      %v1953 = vpack.c.bf16 %v1897, %v1895
      %v1954 = vpack.c.bf16 %v1900, %v1898
      %v1955 = vpack.c.bf16 %v1901, %v1899
      %v1956 = vpack.c.bf16 %v1904, %v1902
      %v1957 = vpack.c.bf16 %v1905, %v1903
      %v1958 = vpack.c.bf16 %v1906, %v1906
      %v1959 = vpack.c.bf16 %v1907, %v1907
      %vm1960 = vcmask 64512
      %v1962 = vsel %vm1960, %v1909, 0
      %v1965 = vsel %vm1960, %v1911, 0
      %v1968 = vsel %vm1960, %v1913, 0
      %v1971 = vsel %vm1960, %v1915, 0
      %v1974 = vsel %vm1960, %v1917, 0
      %v1977 = vsel %vm1960, %v1919, 0
      %v1980 = vsel %vm1960, %v1921, 0
      %v1983 = vsel %vm1960, %v1923, 0
      %v1986 = vsel %vm1960, %v1925, 0
      %v1989 = vsel %vm1960, %v1927, 0
      %v1992 = vsel %vm1960, %v1929, 0
      %v1995 = vsel %vm1960, %v1931, 0
      %v1998 = vsel %vm1960, %v1933, 0
      %v2001 = vsel %vm1960, %v1935, 0
      %v2004 = vsel %vm1960, %v1937, 0
      %v2007 = vsel %vm1960, %v1939, 0
      %v2010 = vsel %vm1960, %v1941, 0
      %v2013 = vsel %vm1960, %v1943, 0
      %v2016 = vsel %vm1960, %v1945, 0
      %v2019 = vsel %vm1960, %v1947, 0
      %v2022 = vsel %vm1960, %v1949, 0
      %v2025 = vsel %vm1960, %v1951, 0
      %v2028 = vsel %vm1960, %v1953, 0
      %v2031 = vsel %vm1960, %v1955, 0
      %v2034 = vsel %vm1960, %v1957, 0
      %v2037 = vsel %vm1960, %v1959, 0
      %vm2039 = vcmask 1043456
      %v2041 = vsel %vm2039, %v1804, 0
      %v2044 = vsel %vm2039, %v1805, 0
      %2046 = vmatpush.bf16.msra.mxu0 %v1802
      %2047 = vmatpush.bf16.msra.mxu0 %v1800
      %2048 = vmatpush.bf16.msra.mxu0 %v1798
      %2049 = vmatpush.bf16.msra.mxu0 %v1796
      %2050 = vmatpush.bf16.msra.mxu0 %v1794
      %2051 = vmatpush.bf16.msra.mxu0 %v1792
      %2052 = vmatpush.bf16.msra.mxu0 %v1790
      %2053 = vmatpush.bf16.msra.mxu0 %v1788
      %2054 = vmatmul.bf16.gmra.mxu0 %v1908
      %v2055 = vpop.f32.mrf.mxu0
      %v2056 = vadd.f32 0.0, %v2055
      %v2057 = vpop.f32.mrf.mxu0
      %v2058 = vadd.f32 0.0, %v2057
      %2059 = vmatmul.bf16.gmra.mxu0 %v1910
      %v2060 = vpop.f32.mrf.mxu0
      %v2061 = vadd.f32 0.0, %v2060
      %v2062 = vpop.f32.mrf.mxu0
      %v2063 = vadd.f32 0.0, %v2062
      %2064 = vmatmul.bf16.gmra.mxu0 %v1912
      %v2065 = vpop.f32.mrf.mxu0
      %v2066 = vadd.f32 0.0, %v2065
      %v2067 = vpop.f32.mrf.mxu0
      %v2068 = vadd.f32 0.0, %v2067
      %2069 = vmatmul.bf16.gmra.mxu0 %v1914
      %v2070 = vpop.f32.mrf.mxu0
      %v2071 = vadd.f32 0.0, %v2070
      %v2072 = vpop.f32.mrf.mxu0
      %v2073 = vadd.f32 0.0, %v2072
      %2074 = vmatmul.bf16.gmra.mxu0 %v1916
      %v2075 = vpop.f32.mrf.mxu0
      %v2076 = vadd.f32 0.0, %v2075
      %v2077 = vpop.f32.mrf.mxu0
      %v2078 = vadd.f32 0.0, %v2077
      %2079 = vmatmul.bf16.gmra.mxu0 %v1918
      %v2080 = vpop.f32.mrf.mxu0
      %v2081 = vadd.f32 0.0, %v2080
      %v2082 = vpop.f32.mrf.mxu0
      %v2083 = vadd.f32 0.0, %v2082
      %2084 = vmatmul.bf16.gmra.mxu0 %v1920
      %v2085 = vpop.f32.mrf.mxu0
      %v2086 = vadd.f32 0.0, %v2085
      %v2087 = vpop.f32.mrf.mxu0
      %v2088 = vadd.f32 0.0, %v2087
      %2089 = vmatmul.bf16.gmra.mxu0 %v1922
      %v2090 = vpop.f32.mrf.mxu0
      %v2091 = vadd.f32 0.0, %v2090
      %v2092 = vpop.f32.mrf.mxu0
      %v2093 = vadd.f32 0.0, %v2092
      %2094 = vmatmul.bf16.gmra.mxu0 %v1924
      %v2095 = vpop.f32.mrf.mxu0
      %v2096 = vadd.f32 0.0, %v2095
      %v2097 = vpop.f32.mrf.mxu0
      %v2098 = vadd.f32 0.0, %v2097
      %2099 = vmatmul.bf16.gmra.mxu0 %v1926
      %v2100 = vpop.f32.mrf.mxu0
      %v2101 = vadd.f32 0.0, %v2100
      %v2102 = vpop.f32.mrf.mxu0
      %v2103 = vadd.f32 0.0, %v2102
      %2104 = vmatmul.bf16.gmra.mxu0 %v1928
      %v2105 = vpop.f32.mrf.mxu0
      %v2106 = vadd.f32 0.0, %v2105
      %v2107 = vpop.f32.mrf.mxu0
      %v2108 = vadd.f32 0.0, %v2107
      %2109 = vmatmul.bf16.gmra.mxu0 %v1930
      %v2110 = vpop.f32.mrf.mxu0
      %v2111 = vadd.f32 0.0, %v2110
      %v2112 = vpop.f32.mrf.mxu0
      %v2113 = vadd.f32 0.0, %v2112
      %2114 = vmatmul.bf16.gmra.mxu0 %v1932
      %v2115 = vpop.f32.mrf.mxu0
      %v2116 = vadd.f32 0.0, %v2115
      %v2117 = vpop.f32.mrf.mxu0
      %v2118 = vadd.f32 0.0, %v2117
      %2119 = vmatmul.bf16.gmra.mxu0 %v1934
      %v2120 = vpop.f32.mrf.mxu0
      %v2121 = vadd.f32 0.0, %v2120
      %v2122 = vpop.f32.mrf.mxu0
      %v2123 = vadd.f32 0.0, %v2122
      %2124 = vmatmul.bf16.gmra.mxu0 %v1936
      %v2125 = vpop.f32.mrf.mxu0
      %v2126 = vadd.f32 0.0, %v2125
      %v2127 = vpop.f32.mrf.mxu0
      %v2128 = vadd.f32 0.0, %v2127
      %2129 = vmatmul.bf16.gmra.mxu0 %v1938
      %v2130 = vpop.f32.mrf.mxu0
      %v2131 = vadd.f32 0.0, %v2130
      %v2132 = vpop.f32.mrf.mxu0
      %v2133 = vadd.f32 0.0, %v2132
      %2134 = vmatmul.bf16.gmra.mxu0 %v1940
      %v2135 = vpop.f32.mrf.mxu0
      %v2136 = vadd.f32 0.0, %v2135
      %v2137 = vpop.f32.mrf.mxu0
      %v2138 = vadd.f32 0.0, %v2137
      %2139 = vmatmul.bf16.gmra.mxu0 %v1942
      %v2140 = vpop.f32.mrf.mxu0
      %v2141 = vadd.f32 0.0, %v2140
      %v2142 = vpop.f32.mrf.mxu0
      %v2143 = vadd.f32 0.0, %v2142
      %2144 = vmatmul.bf16.gmra.mxu0 %v1944
      %v2145 = vpop.f32.mrf.mxu0
      %v2146 = vadd.f32 0.0, %v2145
      %v2147 = vpop.f32.mrf.mxu0
      %v2148 = vadd.f32 0.0, %v2147
      %2149 = vmatmul.bf16.gmra.mxu0 %v1946
      %v2150 = vpop.f32.mrf.mxu0
      %v2151 = vadd.f32 0.0, %v2150
      %v2152 = vpop.f32.mrf.mxu0
      %v2153 = vadd.f32 0.0, %v2152
      %2154 = vmatmul.bf16.gmra.mxu0 %v1948
      %v2155 = vpop.f32.mrf.mxu0
      %v2156 = vadd.f32 0.0, %v2155
      %v2157 = vpop.f32.mrf.mxu0
      %v2158 = vadd.f32 0.0, %v2157
      %2159 = vmatmul.bf16.gmra.mxu0 %v1950
      %v2160 = vpop.f32.mrf.mxu0
      %v2161 = vadd.f32 0.0, %v2160
      %v2162 = vpop.f32.mrf.mxu0
      %v2163 = vadd.f32 0.0, %v2162
      %2164 = vmatmul.bf16.gmra.mxu0 %v1952
      %v2165 = vpop.f32.mrf.mxu0
      %v2166 = vadd.f32 0.0, %v2165
      %v2167 = vpop.f32.mrf.mxu0
      %v2168 = vadd.f32 0.0, %v2167
      %2169 = vmatmul.bf16.gmra.mxu0 %v1954
      %v2170 = vpop.f32.mrf.mxu0
      %v2171 = vadd.f32 0.0, %v2170
      %v2172 = vpop.f32.mrf.mxu0
      %v2173 = vadd.f32 0.0, %v2172
      %2174 = vmatmul.bf16.gmra.mxu0 %v1956
      %v2175 = vpop.f32.mrf.mxu0
      %v2176 = vadd.f32 0.0, %v2175
      %v2177 = vpop.f32.mrf.mxu0
      %v2178 = vadd.f32 0.0, %v2177
      %2179 = vmatmul.bf16.gmra.mxu0 %v1958
      %v2180 = vpop.f32.mrf.mxu0
      %v2181 = vadd.f32 0.0, %v2180
      %v2182 = vpop.f32.mrf.mxu0
      %2183 = vdwg.mxu0
      %2184 = vmatpush.bf16.msra.mxu0 0
      %2185 = vmatpush.bf16.msra.mxu0 0
      %2186 = vmatpush.bf16.msra.mxu0 0
      %2187 = vmatpush.bf16.msra.mxu0 0
      %2188 = vmatpush.bf16.msra.mxu0 0
      %2189 = vmatpush.bf16.msra.mxu0 0
      %2190 = vmatpush.bf16.msra.mxu0 0
      %2191 = vmatpush.bf16.msra.mxu0 %v2041
      %2192 = vmatmul.bf16.gmra.mxu0 %v1962
      %v2193 = vpop.f32.mrf.mxu0
      %v2194 = vadd.f32 %v2056, %v2193
      %v2195 = vpop.f32.mrf.mxu0
      %v2196 = vadd.f32 %v2058, %v2195
      %2197 = vmatmul.bf16.gmra.mxu0 %v1965
      %v2198 = vpop.f32.mrf.mxu0
      %v2199 = vadd.f32 %v2061, %v2198
      %v2200 = vpop.f32.mrf.mxu0
      %v2201 = vadd.f32 %v2063, %v2200
      %2202 = vmatmul.bf16.gmra.mxu0 %v1968
      %v2203 = vpop.f32.mrf.mxu0
      %v2204 = vadd.f32 %v2066, %v2203
      %v2205 = vpop.f32.mrf.mxu0
      %v2206 = vadd.f32 %v2068, %v2205
      %2207 = vmatmul.bf16.gmra.mxu0 %v1971
      %v2208 = vpop.f32.mrf.mxu0
      %v2209 = vadd.f32 %v2071, %v2208
      %v2210 = vpop.f32.mrf.mxu0
      %v2211 = vadd.f32 %v2073, %v2210
      %2212 = vmatmul.bf16.gmra.mxu0 %v1974
      %v2213 = vpop.f32.mrf.mxu0
      %v2214 = vadd.f32 %v2076, %v2213
      %v2215 = vpop.f32.mrf.mxu0
      %v2216 = vadd.f32 %v2078, %v2215
      %2217 = vmatmul.bf16.gmra.mxu0 %v1977
      %v2218 = vpop.f32.mrf.mxu0
      %v2219 = vadd.f32 %v2081, %v2218
      %v2220 = vpop.f32.mrf.mxu0
      %v2221 = vadd.f32 %v2083, %v2220
      %2222 = vmatmul.bf16.gmra.mxu0 %v1980
      %v2223 = vpop.f32.mrf.mxu0
      %v2224 = vadd.f32 %v2086, %v2223
      %v2225 = vpop.f32.mrf.mxu0
      %v2226 = vadd.f32 %v2088, %v2225
      %2227 = vmatmul.bf16.gmra.mxu0 %v1983
      %v2228 = vpop.f32.mrf.mxu0
      %v2229 = vadd.f32 %v2091, %v2228
      %v2230 = vpop.f32.mrf.mxu0
      %v2231 = vadd.f32 %v2093, %v2230
      %2232 = vmatmul.bf16.gmra.mxu0 %v1986
      %v2233 = vpop.f32.mrf.mxu0
      %v2234 = vadd.f32 %v2096, %v2233
      %v2235 = vpop.f32.mrf.mxu0
      %v2236 = vadd.f32 %v2098, %v2235
      %2237 = vmatmul.bf16.gmra.mxu0 %v1989
      %v2238 = vpop.f32.mrf.mxu0
      %v2239 = vadd.f32 %v2101, %v2238
      %v2240 = vpop.f32.mrf.mxu0
      %v2241 = vadd.f32 %v2103, %v2240
      %2242 = vmatmul.bf16.gmra.mxu0 %v1992
      %v2243 = vpop.f32.mrf.mxu0
      %v2244 = vadd.f32 %v2106, %v2243
      %v2245 = vpop.f32.mrf.mxu0
      %v2246 = vadd.f32 %v2108, %v2245
      %2247 = vmatmul.bf16.gmra.mxu0 %v1995
      %v2248 = vpop.f32.mrf.mxu0
      %v2249 = vadd.f32 %v2111, %v2248
      %v2250 = vpop.f32.mrf.mxu0
      %v2251 = vadd.f32 %v2113, %v2250
      %2252 = vmatmul.bf16.gmra.mxu0 %v1998
      %v2253 = vpop.f32.mrf.mxu0
      %v2254 = vadd.f32 %v2116, %v2253
      %v2255 = vpop.f32.mrf.mxu0
      %v2256 = vadd.f32 %v2118, %v2255
      %2257 = vmatmul.bf16.gmra.mxu0 %v2001
      %v2258 = vpop.f32.mrf.mxu0
      %v2259 = vadd.f32 %v2121, %v2258
      %v2260 = vpop.f32.mrf.mxu0
      %v2261 = vadd.f32 %v2123, %v2260
      %2262 = vmatmul.bf16.gmra.mxu0 %v2004
      %v2263 = vpop.f32.mrf.mxu0
      %v2264 = vadd.f32 %v2126, %v2263
      %v2265 = vpop.f32.mrf.mxu0
      %v2266 = vadd.f32 %v2128, %v2265
      %2267 = vmatmul.bf16.gmra.mxu0 %v2007
      %v2268 = vpop.f32.mrf.mxu0
      %v2269 = vadd.f32 %v2131, %v2268
      %v2270 = vpop.f32.mrf.mxu0
      %v2271 = vadd.f32 %v2133, %v2270
      %2272 = vmatmul.bf16.gmra.mxu0 %v2010
      %v2273 = vpop.f32.mrf.mxu0
      %v2274 = vadd.f32 %v2136, %v2273
      %v2275 = vpop.f32.mrf.mxu0
      %v2276 = vadd.f32 %v2138, %v2275
      %2277 = vmatmul.bf16.gmra.mxu0 %v2013
      %v2278 = vpop.f32.mrf.mxu0
      %v2279 = vadd.f32 %v2141, %v2278
      %v2280 = vpop.f32.mrf.mxu0
      %v2281 = vadd.f32 %v2143, %v2280
      %2282 = vmatmul.bf16.gmra.mxu0 %v2016
      %v2283 = vpop.f32.mrf.mxu0
      %v2284 = vadd.f32 %v2146, %v2283
      %v2285 = vpop.f32.mrf.mxu0
      %v2286 = vadd.f32 %v2148, %v2285
      %2287 = vmatmul.bf16.gmra.mxu0 %v2019
      %v2288 = vpop.f32.mrf.mxu0
      %v2289 = vadd.f32 %v2151, %v2288
      %v2290 = vpop.f32.mrf.mxu0
      %v2291 = vadd.f32 %v2153, %v2290
      %2292 = vmatmul.bf16.gmra.mxu0 %v2022
      %v2293 = vpop.f32.mrf.mxu0
      %v2294 = vadd.f32 %v2156, %v2293
      %v2295 = vpop.f32.mrf.mxu0
      %v2296 = vadd.f32 %v2158, %v2295
      %2297 = vmatmul.bf16.gmra.mxu0 %v2025
      %v2298 = vpop.f32.mrf.mxu0
      %v2299 = vadd.f32 %v2161, %v2298
      %v2300 = vpop.f32.mrf.mxu0
      %v2301 = vadd.f32 %v2163, %v2300
      %2302 = vmatmul.bf16.gmra.mxu0 %v2028
      %v2303 = vpop.f32.mrf.mxu0
      %v2304 = vadd.f32 %v2166, %v2303
      %v2305 = vpop.f32.mrf.mxu0
      %v2306 = vadd.f32 %v2168, %v2305
      %2307 = vmatmul.bf16.gmra.mxu0 %v2031
      %v2308 = vpop.f32.mrf.mxu0
      %v2309 = vadd.f32 %v2171, %v2308
      %v2310 = vpop.f32.mrf.mxu0
      %v2311 = vadd.f32 %v2173, %v2310
      %2312 = vmatmul.bf16.gmra.mxu0 %v2034
      %v2313 = vpop.f32.mrf.mxu0
      %v2314 = vadd.f32 %v2176, %v2313
      %v2315 = vpop.f32.mrf.mxu0
      %v2316 = vadd.f32 %v2178, %v2315
      %2317 = vmatmul.bf16.gmra.mxu0 %v2037
      %v2318 = vpop.f32.mrf.mxu0
      %v2319 = vadd.f32 %v2181, %v2318
      %v2320 = vpop.f32.mrf.mxu0
      %2321 = vdwg.mxu0
      %2322 = vmatpush.bf16.msra.mxu0 %v1803
      %2323 = vmatpush.bf16.msra.mxu0 %v1801
      %2324 = vmatpush.bf16.msra.mxu0 %v1799
      %2325 = vmatpush.bf16.msra.mxu0 %v1797
      %2326 = vmatpush.bf16.msra.mxu0 %v1795
      %2327 = vmatpush.bf16.msra.mxu0 %v1793
      %2328 = vmatpush.bf16.msra.mxu0 %v1791
      %2329 = vmatpush.bf16.msra.mxu0 %v1789
      %2330 = vmatmul.bf16.gmra.mxu0 %v1908
      %v2331 = vpop.f32.mrf.mxu0
      %v2332 = vadd.f32 0.0, %v2331
      %v2333 = vpop.f32.mrf.mxu0
      %v2334 = vadd.f32 0.0, %v2333
      %2335 = vmatmul.bf16.gmra.mxu0 %v1910
      %v2336 = vpop.f32.mrf.mxu0
      %v2337 = vadd.f32 0.0, %v2336
      %v2338 = vpop.f32.mrf.mxu0
      %v2339 = vadd.f32 0.0, %v2338
      %2340 = vmatmul.bf16.gmra.mxu0 %v1912
      %v2341 = vpop.f32.mrf.mxu0
      %v2342 = vadd.f32 0.0, %v2341
      %v2343 = vpop.f32.mrf.mxu0
      %v2344 = vadd.f32 0.0, %v2343
      %2345 = vmatmul.bf16.gmra.mxu0 %v1914
      %v2346 = vpop.f32.mrf.mxu0
      %v2347 = vadd.f32 0.0, %v2346
      %v2348 = vpop.f32.mrf.mxu0
      %v2349 = vadd.f32 0.0, %v2348
      %2350 = vmatmul.bf16.gmra.mxu0 %v1916
      %v2351 = vpop.f32.mrf.mxu0
      %v2352 = vadd.f32 0.0, %v2351
      %v2353 = vpop.f32.mrf.mxu0
      %v2354 = vadd.f32 0.0, %v2353
      %2355 = vmatmul.bf16.gmra.mxu0 %v1918
      %v2356 = vpop.f32.mrf.mxu0
      %v2357 = vadd.f32 0.0, %v2356
      %v2358 = vpop.f32.mrf.mxu0
      %v2359 = vadd.f32 0.0, %v2358
      %2360 = vmatmul.bf16.gmra.mxu0 %v1920
      %v2361 = vpop.f32.mrf.mxu0
      %v2362 = vadd.f32 0.0, %v2361
      %v2363 = vpop.f32.mrf.mxu0
      %v2364 = vadd.f32 0.0, %v2363
      %2365 = vmatmul.bf16.gmra.mxu0 %v1922
      %v2366 = vpop.f32.mrf.mxu0
      %v2367 = vadd.f32 0.0, %v2366
      %v2368 = vpop.f32.mrf.mxu0
      %v2369 = vadd.f32 0.0, %v2368
      %2370 = vmatmul.bf16.gmra.mxu0 %v1924
      %v2371 = vpop.f32.mrf.mxu0
      %v2372 = vadd.f32 0.0, %v2371
      %v2373 = vpop.f32.mrf.mxu0
      %v2374 = vadd.f32 0.0, %v2373
      %2375 = vmatmul.bf16.gmra.mxu0 %v1926
      %v2376 = vpop.f32.mrf.mxu0
      %v2377 = vadd.f32 0.0, %v2376
      %v2378 = vpop.f32.mrf.mxu0
      %v2379 = vadd.f32 0.0, %v2378
      %2380 = vmatmul.bf16.gmra.mxu0 %v1928
      %v2381 = vpop.f32.mrf.mxu0
      %v2382 = vadd.f32 0.0, %v2381
      %v2383 = vpop.f32.mrf.mxu0
      %v2384 = vadd.f32 0.0, %v2383
      %2385 = vmatmul.bf16.gmra.mxu0 %v1930
      %v2386 = vpop.f32.mrf.mxu0
      %v2387 = vadd.f32 0.0, %v2386
      %v2388 = vpop.f32.mrf.mxu0
      %v2389 = vadd.f32 0.0, %v2388
      %2390 = vmatmul.bf16.gmra.mxu0 %v1932
      %v2391 = vpop.f32.mrf.mxu0
      %v2392 = vadd.f32 0.0, %v2391
      %v2393 = vpop.f32.mrf.mxu0
      %v2394 = vadd.f32 0.0, %v2393
      %2395 = vmatmul.bf16.gmra.mxu0 %v1934
      %v2396 = vpop.f32.mrf.mxu0
      %v2397 = vadd.f32 0.0, %v2396
      %v2398 = vpop.f32.mrf.mxu0
      %v2399 = vadd.f32 0.0, %v2398
      %2400 = vmatmul.bf16.gmra.mxu0 %v1936
      %v2401 = vpop.f32.mrf.mxu0
      %v2402 = vadd.f32 0.0, %v2401
      %v2403 = vpop.f32.mrf.mxu0
      %v2404 = vadd.f32 0.0, %v2403
      %2405 = vmatmul.bf16.gmra.mxu0 %v1938
      %v2406 = vpop.f32.mrf.mxu0
      %v2407 = vadd.f32 0.0, %v2406
      %v2408 = vpop.f32.mrf.mxu0
      %v2409 = vadd.f32 0.0, %v2408
      %2410 = vmatmul.bf16.gmra.mxu0 %v1940
      %v2411 = vpop.f32.mrf.mxu0
      %v2412 = vadd.f32 0.0, %v2411
      %v2413 = vpop.f32.mrf.mxu0
      %v2414 = vadd.f32 0.0, %v2413
      %2415 = vmatmul.bf16.gmra.mxu0 %v1942
      %v2416 = vpop.f32.mrf.mxu0
      %v2417 = vadd.f32 0.0, %v2416
      %v2418 = vpop.f32.mrf.mxu0
      %v2419 = vadd.f32 0.0, %v2418
      %2420 = vmatmul.bf16.gmra.mxu0 %v1944
      %v2421 = vpop.f32.mrf.mxu0
      %v2422 = vadd.f32 0.0, %v2421
      %v2423 = vpop.f32.mrf.mxu0
      %v2424 = vadd.f32 0.0, %v2423
      %2425 = vmatmul.bf16.gmra.mxu0 %v1946
      %v2426 = vpop.f32.mrf.mxu0
      %v2427 = vadd.f32 0.0, %v2426
      %v2428 = vpop.f32.mrf.mxu0
      %v2429 = vadd.f32 0.0, %v2428
      %2430 = vmatmul.bf16.gmra.mxu0 %v1948
      %v2431 = vpop.f32.mrf.mxu0
      %v2432 = vadd.f32 0.0, %v2431
      %v2433 = vpop.f32.mrf.mxu0
      %v2434 = vadd.f32 0.0, %v2433
      %2435 = vmatmul.bf16.gmra.mxu0 %v1950
      %v2436 = vpop.f32.mrf.mxu0
      %v2437 = vadd.f32 0.0, %v2436
      %v2438 = vpop.f32.mrf.mxu0
      %v2439 = vadd.f32 0.0, %v2438
      %2440 = vmatmul.bf16.gmra.mxu0 %v1952
      %v2441 = vpop.f32.mrf.mxu0
      %v2442 = vadd.f32 0.0, %v2441
      %v2443 = vpop.f32.mrf.mxu0
      %v2444 = vadd.f32 0.0, %v2443
      %2445 = vmatmul.bf16.gmra.mxu0 %v1954
      %v2446 = vpop.f32.mrf.mxu0
      %v2447 = vadd.f32 0.0, %v2446
      %v2448 = vpop.f32.mrf.mxu0
      %v2449 = vadd.f32 0.0, %v2448
      %2450 = vmatmul.bf16.gmra.mxu0 %v1956
      %v2451 = vpop.f32.mrf.mxu0
      %v2452 = vadd.f32 0.0, %v2451
      %v2453 = vpop.f32.mrf.mxu0
      %v2454 = vadd.f32 0.0, %v2453
      %2455 = vmatmul.bf16.gmra.mxu0 %v1958
      %v2456 = vpop.f32.mrf.mxu0
      %v2457 = vadd.f32 0.0, %v2456
      %v2458 = vpop.f32.mrf.mxu0
      %2459 = vdwg.mxu0
      %2460 = vmatpush.bf16.msra.mxu0 0
      %2461 = vmatpush.bf16.msra.mxu0 0
      %2462 = vmatpush.bf16.msra.mxu0 0
      %2463 = vmatpush.bf16.msra.mxu0 0
      %2464 = vmatpush.bf16.msra.mxu0 0
      %2465 = vmatpush.bf16.msra.mxu0 0
      %2466 = vmatpush.bf16.msra.mxu0 0
      %2467 = vmatpush.bf16.msra.mxu0 %v2044
      %2468 = vmatmul.bf16.gmra.mxu0 %v1962
      %v2469 = vpop.f32.mrf.mxu0
      %v2470 = vadd.f32 %v2332, %v2469
      %v2471 = vpop.f32.mrf.mxu0
      %v2472 = vadd.f32 %v2334, %v2471
      %2473 = vmatmul.bf16.gmra.mxu0 %v1965
      %v2474 = vpop.f32.mrf.mxu0
      %v2475 = vadd.f32 %v2337, %v2474
      %v2476 = vpop.f32.mrf.mxu0
      %v2477 = vadd.f32 %v2339, %v2476
      %2478 = vmatmul.bf16.gmra.mxu0 %v1968
      %v2479 = vpop.f32.mrf.mxu0
      %v2480 = vadd.f32 %v2342, %v2479
      %v2481 = vpop.f32.mrf.mxu0
      %v2482 = vadd.f32 %v2344, %v2481
      %2483 = vmatmul.bf16.gmra.mxu0 %v1971
      %v2484 = vpop.f32.mrf.mxu0
      %v2485 = vadd.f32 %v2347, %v2484
      %v2486 = vpop.f32.mrf.mxu0
      %v2487 = vadd.f32 %v2349, %v2486
      %2488 = vmatmul.bf16.gmra.mxu0 %v1974
      %v2489 = vpop.f32.mrf.mxu0
      %v2490 = vadd.f32 %v2352, %v2489
      %v2491 = vpop.f32.mrf.mxu0
      %v2492 = vadd.f32 %v2354, %v2491
      %2493 = vmatmul.bf16.gmra.mxu0 %v1977
      %v2494 = vpop.f32.mrf.mxu0
      %v2495 = vadd.f32 %v2357, %v2494
      %v2496 = vpop.f32.mrf.mxu0
      %v2497 = vadd.f32 %v2359, %v2496
      %2498 = vmatmul.bf16.gmra.mxu0 %v1980
      %v2499 = vpop.f32.mrf.mxu0
      %v2500 = vadd.f32 %v2362, %v2499
      %v2501 = vpop.f32.mrf.mxu0
      %v2502 = vadd.f32 %v2364, %v2501
      %2503 = vmatmul.bf16.gmra.mxu0 %v1983
      %v2504 = vpop.f32.mrf.mxu0
      %v2505 = vadd.f32 %v2367, %v2504
      %v2506 = vpop.f32.mrf.mxu0
      %v2507 = vadd.f32 %v2369, %v2506
      %2508 = vmatmul.bf16.gmra.mxu0 %v1986
      %v2509 = vpop.f32.mrf.mxu0
      %v2510 = vadd.f32 %v2372, %v2509
      %v2511 = vpop.f32.mrf.mxu0
      %v2512 = vadd.f32 %v2374, %v2511
      %2513 = vmatmul.bf16.gmra.mxu0 %v1989
      %v2514 = vpop.f32.mrf.mxu0
      %v2515 = vadd.f32 %v2377, %v2514
      %v2516 = vpop.f32.mrf.mxu0
      %v2517 = vadd.f32 %v2379, %v2516
      %2518 = vmatmul.bf16.gmra.mxu0 %v1992
      %v2519 = vpop.f32.mrf.mxu0
      %v2520 = vadd.f32 %v2382, %v2519
      %v2521 = vpop.f32.mrf.mxu0
      %v2522 = vadd.f32 %v2384, %v2521
      %2523 = vmatmul.bf16.gmra.mxu0 %v1995
      %v2524 = vpop.f32.mrf.mxu0
      %v2525 = vadd.f32 %v2387, %v2524
      %v2526 = vpop.f32.mrf.mxu0
      %v2527 = vadd.f32 %v2389, %v2526
      %2528 = vmatmul.bf16.gmra.mxu0 %v1998
      %v2529 = vpop.f32.mrf.mxu0
      %v2530 = vadd.f32 %v2392, %v2529
      %v2531 = vpop.f32.mrf.mxu0
      %v2532 = vadd.f32 %v2394, %v2531
      %2533 = vmatmul.bf16.gmra.mxu0 %v2001
      %v2534 = vpop.f32.mrf.mxu0
      %v2535 = vadd.f32 %v2397, %v2534
      %v2536 = vpop.f32.mrf.mxu0
      %v2537 = vadd.f32 %v2399, %v2536
      %2538 = vmatmul.bf16.gmra.mxu0 %v2004
      %v2539 = vpop.f32.mrf.mxu0
      %v2540 = vadd.f32 %v2402, %v2539
      %v2541 = vpop.f32.mrf.mxu0
      %v2542 = vadd.f32 %v2404, %v2541
      %2543 = vmatmul.bf16.gmra.mxu0 %v2007
      %v2544 = vpop.f32.mrf.mxu0
      %v2545 = vadd.f32 %v2407, %v2544
      %v2546 = vpop.f32.mrf.mxu0
      %v2547 = vadd.f32 %v2409, %v2546
      %2548 = vmatmul.bf16.gmra.mxu0 %v2010
      %v2549 = vpop.f32.mrf.mxu0
      %v2550 = vadd.f32 %v2412, %v2549
      %v2551 = vpop.f32.mrf.mxu0
      %v2552 = vadd.f32 %v2414, %v2551
      %2553 = vmatmul.bf16.gmra.mxu0 %v2013
      %v2554 = vpop.f32.mrf.mxu0
      %v2555 = vadd.f32 %v2417, %v2554
      %v2556 = vpop.f32.mrf.mxu0
      %v2557 = vadd.f32 %v2419, %v2556
      %2558 = vmatmul.bf16.gmra.mxu0 %v2016
      %v2559 = vpop.f32.mrf.mxu0
      %v2560 = vadd.f32 %v2422, %v2559
      %v2561 = vpop.f32.mrf.mxu0
      %v2562 = vadd.f32 %v2424, %v2561
      %2563 = vmatmul.bf16.gmra.mxu0 %v2019
      %v2564 = vpop.f32.mrf.mxu0
      %v2565 = vadd.f32 %v2427, %v2564
      %v2566 = vpop.f32.mrf.mxu0
      %v2567 = vadd.f32 %v2429, %v2566
      %2568 = vmatmul.bf16.gmra.mxu0 %v2022
      %v2569 = vpop.f32.mrf.mxu0
      %v2570 = vadd.f32 %v2432, %v2569
      %v2571 = vpop.f32.mrf.mxu0
      %v2572 = vadd.f32 %v2434, %v2571
      %2573 = vmatmul.bf16.gmra.mxu0 %v2025
      %v2574 = vpop.f32.mrf.mxu0
      %v2575 = vadd.f32 %v2437, %v2574
      %v2576 = vpop.f32.mrf.mxu0
      %v2577 = vadd.f32 %v2439, %v2576
      %2578 = vmatmul.bf16.gmra.mxu0 %v2028
      %v2579 = vpop.f32.mrf.mxu0
      %v2580 = vadd.f32 %v2442, %v2579
      %v2581 = vpop.f32.mrf.mxu0
      %v2582 = vadd.f32 %v2444, %v2581
      %2583 = vmatmul.bf16.gmra.mxu0 %v2031
      %v2584 = vpop.f32.mrf.mxu0
      %v2585 = vadd.f32 %v2447, %v2584
      %v2586 = vpop.f32.mrf.mxu0
      %v2587 = vadd.f32 %v2449, %v2586
      %2588 = vmatmul.bf16.gmra.mxu0 %v2034
      %v2589 = vpop.f32.mrf.mxu0
      %v2590 = vadd.f32 %v2452, %v2589
      %v2591 = vpop.f32.mrf.mxu0
      %v2592 = vadd.f32 %v2454, %v2591
      %2593 = vmatmul.bf16.gmra.mxu0 %v2037
      %v2594 = vpop.f32.mrf.mxu0
      %v2595 = vadd.f32 %v2457, %v2594
      %v2596 = vpop.f32.mrf.mxu0
      %2597 = vdwg.mxu0
      %v2598 = vsel %vm1209, %v2470, 0.0
      %v2599 = vadd.f32 %v2194, %v2598
      %2600 = vadd.xlane.f32.xlu0 %v2599
      %v2601 = vpop.xlane.xlu0 %2600
      %v2602 = vsel %vm1209, %v2472, 0.0
      %v2603 = vadd.f32 %v2196, %v2602
      %2604 = vadd.xlane.f32.xlu0 %v2603
      %v2605 = vpop.xlane.xlu0 %2604
      %v2606 = vsel %vm1209, %v2475, 0.0
      %v2607 = vadd.f32 %v2199, %v2606
      %2608 = vadd.xlane.f32.xlu0 %v2607
      %v2609 = vpop.xlane.xlu0 %2608
      %v2610 = vsel %vm1209, %v2477, 0.0
      %v2611 = vadd.f32 %v2201, %v2610
      %2612 = vadd.xlane.f32.xlu0 %v2611
      %v2613 = vpop.xlane.xlu0 %2612
      %v2614 = vsel %vm1209, %v2480, 0.0
      %v2615 = vadd.f32 %v2204, %v2614
      %2616 = vadd.xlane.f32.xlu0 %v2615
      %v2617 = vpop.xlane.xlu0 %2616
      %v2618 = vsel %vm1209, %v2482, 0.0
      %v2619 = vadd.f32 %v2206, %v2618
      %2620 = vadd.xlane.f32.xlu0 %v2619
      %v2621 = vpop.xlane.xlu0 %2620
      %v2622 = vsel %vm1209, %v2485, 0.0
      %v2623 = vadd.f32 %v2209, %v2622
      %2624 = vadd.xlane.f32.xlu0 %v2623
      %v2625 = vpop.xlane.xlu0 %2624
      %v2626 = vsel %vm1209, %v2487, 0.0
      %v2627 = vadd.f32 %v2211, %v2626
      %2628 = vadd.xlane.f32.xlu0 %v2627
      %v2629 = vpop.xlane.xlu0 %2628
      %v2630 = vsel %vm1209, %v2490, 0.0
      %v2631 = vadd.f32 %v2214, %v2630
      %2632 = vadd.xlane.f32.xlu0 %v2631
      %v2633 = vpop.xlane.xlu0 %2632
      %v2634 = vsel %vm1209, %v2492, 0.0
      %v2635 = vadd.f32 %v2216, %v2634
      %2636 = vadd.xlane.f32.xlu0 %v2635
      %v2637 = vpop.xlane.xlu0 %2636
      %v2638 = vsel %vm1209, %v2495, 0.0
      %v2639 = vadd.f32 %v2219, %v2638
      %2640 = vadd.xlane.f32.xlu0 %v2639
      %v2641 = vpop.xlane.xlu0 %2640
      %v2642 = vsel %vm1209, %v2497, 0.0
      %v2643 = vadd.f32 %v2221, %v2642
      %2644 = vadd.xlane.f32.xlu0 %v2643
      %v2645 = vpop.xlane.xlu0 %2644
      %v2646 = vsel %vm1209, %v2500, 0.0
      %v2647 = vadd.f32 %v2224, %v2646
      %2648 = vadd.xlane.f32.xlu0 %v2647
      %v2649 = vpop.xlane.xlu0 %2648
      %v2650 = vsel %vm1209, %v2502, 0.0
      %v2651 = vadd.f32 %v2226, %v2650
      %2652 = vadd.xlane.f32.xlu0 %v2651
      %v2653 = vpop.xlane.xlu0 %2652
      %v2654 = vsel %vm1209, %v2505, 0.0
      %v2655 = vadd.f32 %v2229, %v2654
      %2656 = vadd.xlane.f32.xlu0 %v2655
      %v2657 = vpop.xlane.xlu0 %2656
      %v2658 = vsel %vm1209, %v2507, 0.0
      %v2659 = vadd.f32 %v2231, %v2658
      %2660 = vadd.xlane.f32.xlu0 %v2659
      %v2661 = vpop.xlane.xlu0 %2660
      %v2662 = vsel %vm1209, %v2510, 0.0
      %v2663 = vadd.f32 %v2234, %v2662
      %2664 = vadd.xlane.f32.xlu0 %v2663
      %v2665 = vpop.xlane.xlu0 %2664
      %v2666 = vsel %vm1209, %v2512, 0.0
      %v2667 = vadd.f32 %v2236, %v2666
      %2668 = vadd.xlane.f32.xlu0 %v2667
      %v2669 = vpop.xlane.xlu0 %2668
      %v2670 = vsel %vm1209, %v2515, 0.0
      %v2671 = vadd.f32 %v2239, %v2670
      %2672 = vadd.xlane.f32.xlu0 %v2671
      %v2673 = vpop.xlane.xlu0 %2672
      %v2674 = vsel %vm1209, %v2517, 0.0
      %v2675 = vadd.f32 %v2241, %v2674
      %2676 = vadd.xlane.f32.xlu0 %v2675
      %v2677 = vpop.xlane.xlu0 %2676
      %v2678 = vsel %vm1209, %v2520, 0.0
      %v2679 = vadd.f32 %v2244, %v2678
      %2680 = vadd.xlane.f32.xlu0 %v2679
      %v2681 = vpop.xlane.xlu0 %2680
      %v2682 = vsel %vm1209, %v2522, 0.0
      %v2683 = vadd.f32 %v2246, %v2682
      %2684 = vadd.xlane.f32.xlu0 %v2683
      %v2685 = vpop.xlane.xlu0 %2684
      %v2686 = vsel %vm1209, %v2525, 0.0
      %v2687 = vadd.f32 %v2249, %v2686
      %2688 = vadd.xlane.f32.xlu0 %v2687
      %v2689 = vpop.xlane.xlu0 %2688
      %v2690 = vsel %vm1209, %v2527, 0.0
      %v2691 = vadd.f32 %v2251, %v2690
      %2692 = vadd.xlane.f32.xlu0 %v2691
      %v2693 = vpop.xlane.xlu0 %2692
      %v2694 = vsel %vm1209, %v2530, 0.0
      %v2695 = vadd.f32 %v2254, %v2694
      %2696 = vadd.xlane.f32.xlu0 %v2695
      %v2697 = vpop.xlane.xlu0 %2696
      %v2698 = vsel %vm1209, %v2532, 0.0
      %v2699 = vadd.f32 %v2256, %v2698
      %2700 = vadd.xlane.f32.xlu0 %v2699
      %v2701 = vpop.xlane.xlu0 %2700
      %v2702 = vsel %vm1209, %v2535, 0.0
      %v2703 = vadd.f32 %v2259, %v2702
      %2704 = vadd.xlane.f32.xlu0 %v2703
      %v2705 = vpop.xlane.xlu0 %2704
      %v2706 = vsel %vm1209, %v2537, 0.0
      %v2707 = vadd.f32 %v2261, %v2706
      %2708 = vadd.xlane.f32.xlu0 %v2707
      %v2709 = vpop.xlane.xlu0 %2708
      %v2710 = vsel %vm1209, %v2540, 0.0
      %v2711 = vadd.f32 %v2264, %v2710
      %2712 = vadd.xlane.f32.xlu0 %v2711
      %v2713 = vpop.xlane.xlu0 %2712
      %v2714 = vsel %vm1209, %v2542, 0.0
      %v2715 = vadd.f32 %v2266, %v2714
      %2716 = vadd.xlane.f32.xlu0 %v2715
      %v2717 = vpop.xlane.xlu0 %2716
      %v2718 = vsel %vm1209, %v2545, 0.0
      %v2719 = vadd.f32 %v2269, %v2718
      %2720 = vadd.xlane.f32.xlu0 %v2719
      %v2721 = vpop.xlane.xlu0 %2720
      %v2722 = vsel %vm1209, %v2547, 0.0
      %v2723 = vadd.f32 %v2271, %v2722
      %2724 = vadd.xlane.f32.xlu0 %v2723
      %v2725 = vpop.xlane.xlu0 %2724
      %v2726 = vsel %vm1209, %v2550, 0.0
      %v2727 = vadd.f32 %v2274, %v2726
      %2728 = vadd.xlane.f32.xlu0 %v2727
      %v2729 = vpop.xlane.xlu0 %2728
      %v2730 = vsel %vm1209, %v2552, 0.0
      %v2731 = vadd.f32 %v2276, %v2730
      %2732 = vadd.xlane.f32.xlu0 %v2731
      %v2733 = vpop.xlane.xlu0 %2732
      %v2734 = vsel %vm1209, %v2555, 0.0
      %v2735 = vadd.f32 %v2279, %v2734
      %2736 = vadd.xlane.f32.xlu0 %v2735
      %v2737 = vpop.xlane.xlu0 %2736
      %v2738 = vsel %vm1209, %v2557, 0.0
      %v2739 = vadd.f32 %v2281, %v2738
      %2740 = vadd.xlane.f32.xlu0 %v2739
      %v2741 = vpop.xlane.xlu0 %2740
      %v2742 = vsel %vm1209, %v2560, 0.0
      %v2743 = vadd.f32 %v2284, %v2742
      %2744 = vadd.xlane.f32.xlu0 %v2743
      %v2745 = vpop.xlane.xlu0 %2744
      %v2746 = vsel %vm1209, %v2562, 0.0
      %v2747 = vadd.f32 %v2286, %v2746
      %2748 = vadd.xlane.f32.xlu0 %v2747
      %v2749 = vpop.xlane.xlu0 %2748
      %v2750 = vsel %vm1209, %v2565, 0.0
      %v2751 = vadd.f32 %v2289, %v2750
      %2752 = vadd.xlane.f32.xlu0 %v2751
      %v2753 = vpop.xlane.xlu0 %2752
      %v2754 = vsel %vm1209, %v2567, 0.0
      %v2755 = vadd.f32 %v2291, %v2754
      %2756 = vadd.xlane.f32.xlu0 %v2755
      %v2757 = vpop.xlane.xlu0 %2756
      %v2758 = vsel %vm1209, %v2570, 0.0
      %v2759 = vadd.f32 %v2294, %v2758
      %2760 = vadd.xlane.f32.xlu0 %v2759
      %v2761 = vpop.xlane.xlu0 %2760
      %v2762 = vsel %vm1209, %v2572, 0.0
      %v2763 = vadd.f32 %v2296, %v2762
      %2764 = vadd.xlane.f32.xlu0 %v2763
      %v2765 = vpop.xlane.xlu0 %2764
      %v2766 = vsel %vm1209, %v2575, 0.0
      %v2767 = vadd.f32 %v2299, %v2766
      %2768 = vadd.xlane.f32.xlu0 %v2767
      %v2769 = vpop.xlane.xlu0 %2768
      %v2770 = vsel %vm1209, %v2577, 0.0
      %v2771 = vadd.f32 %v2301, %v2770
      %2772 = vadd.xlane.f32.xlu0 %v2771
      %v2773 = vpop.xlane.xlu0 %2772
      %v2774 = vsel %vm1209, %v2580, 0.0
      %v2775 = vadd.f32 %v2304, %v2774
      %2776 = vadd.xlane.f32.xlu0 %v2775
      %v2777 = vpop.xlane.xlu0 %2776
      %v2778 = vsel %vm1209, %v2582, 0.0
      %v2779 = vadd.f32 %v2306, %v2778
      %2780 = vadd.xlane.f32.xlu0 %v2779
      %v2781 = vpop.xlane.xlu0 %2780
      %v2782 = vsel %vm1209, %v2585, 0.0
      %v2783 = vadd.f32 %v2309, %v2782
      %2784 = vadd.xlane.f32.xlu0 %v2783
      %v2785 = vpop.xlane.xlu0 %2784
      %v2786 = vsel %vm1209, %v2587, 0.0
      %v2787 = vadd.f32 %v2311, %v2786
      %2788 = vadd.xlane.f32.xlu0 %v2787
      %v2789 = vpop.xlane.xlu0 %2788
      %v2790 = vsel %vm1209, %v2590, 0.0
      %v2791 = vadd.f32 %v2314, %v2790
      %2792 = vadd.xlane.f32.xlu0 %v2791
      %v2793 = vpop.xlane.xlu0 %2792
      %v2794 = vsel %vm1209, %v2592, 0.0
      %v2795 = vadd.f32 %v2316, %v2794
      %2796 = vadd.xlane.f32.xlu0 %v2795
      %v2797 = vpop.xlane.xlu0 %2796
      %v2798 = vsel %vm1209, %v2595, 0.0
      %v2799 = vadd.f32 %v2319, %v2798
      %2800 = vadd.xlane.f32.xlu0 %v2799
      %v2801 = vpop.xlane.xlu0 %2800
      %v2802 = vmul.f32 %v2601, 0.0051020407
      %v2803 = vmul.f32 %v2605, 0.0051020407
      %v2804 = vmul.f32 %v2609, 0.0051020407
      %v2805 = vmul.f32 %v2613, 0.0051020407
      %v2806 = vmul.f32 %v2617, 0.0051020407
      %v2807 = vmul.f32 %v2621, 0.0051020407
      %v2808 = vmul.f32 %v2625, 0.0051020407
      %v2809 = vmul.f32 %v2629, 0.0051020407
      %v2810 = vmul.f32 %v2633, 0.0051020407
      %v2811 = vmul.f32 %v2637, 0.0051020407
      %v2812 = vmul.f32 %v2641, 0.0051020407
      %v2813 = vmul.f32 %v2645, 0.0051020407
      %v2814 = vmul.f32 %v2649, 0.0051020407
      %v2815 = vmul.f32 %v2653, 0.0051020407
      %v2816 = vmul.f32 %v2657, 0.0051020407
      %v2817 = vmul.f32 %v2661, 0.0051020407
      %v2818 = vmul.f32 %v2665, 0.0051020407
      %v2819 = vmul.f32 %v2669, 0.0051020407
      %v2820 = vmul.f32 %v2673, 0.0051020407
      %v2821 = vmul.f32 %v2677, 0.0051020407
      %v2822 = vmul.f32 %v2681, 0.0051020407
      %v2823 = vmul.f32 %v2685, 0.0051020407
      %v2824 = vmul.f32 %v2689, 0.0051020407
      %v2825 = vmul.f32 %v2693, 0.0051020407
      %v2826 = vmul.f32 %v2697, 0.0051020407
      %v2827 = vmul.f32 %v2701, 0.0051020407
      %v2828 = vmul.f32 %v2705, 0.0051020407
      %v2829 = vmul.f32 %v2709, 0.0051020407
      %v2830 = vmul.f32 %v2713, 0.0051020407
      %v2831 = vmul.f32 %v2717, 0.0051020407
      %v2832 = vmul.f32 %v2721, 0.0051020407
      %v2833 = vmul.f32 %v2725, 0.0051020407
      %v2834 = vmul.f32 %v2729, 0.0051020407
      %v2835 = vmul.f32 %v2733, 0.0051020407
      %v2836 = vmul.f32 %v2737, 0.0051020407
      %v2837 = vmul.f32 %v2741, 0.0051020407
      %v2838 = vmul.f32 %v2745, 0.0051020407
      %v2839 = vmul.f32 %v2749, 0.0051020407
      %v2840 = vmul.f32 %v2753, 0.0051020407
      %v2841 = vmul.f32 %v2757, 0.0051020407
      %v2842 = vmul.f32 %v2761, 0.0051020407
      %v2843 = vmul.f32 %v2765, 0.0051020407
      %v2844 = vmul.f32 %v2769, 0.0051020407
      %v2845 = vmul.f32 %v2773, 0.0051020407
      %v2846 = vmul.f32 %v2777, 0.0051020407
      %v2847 = vmul.f32 %v2781, 0.0051020407
      %v2848 = vmul.f32 %v2785, 0.0051020407
      %v2849 = vmul.f32 %v2789, 0.0051020407
      %v2850 = vmul.f32 %v2793, 0.0051020407
      %v2851 = vmul.f32 %v2797, 0.0051020407
      %v2852 = vmul.f32 %v2801, 0.0051020407
      %v2853 = vsub.f32 %v2194, %v2802
      %v2854 = vsub.f32 %v2470, %v2802
      %v2855 = vsub.f32 %v2196, %v2803
      %v2856 = vsub.f32 %v2472, %v2803
      %v2857 = vsub.f32 %v2199, %v2804
      %v2858 = vsub.f32 %v2475, %v2804
      %v2859 = vsub.f32 %v2201, %v2805
      %v2860 = vsub.f32 %v2477, %v2805
      %v2861 = vsub.f32 %v2204, %v2806
      %v2862 = vsub.f32 %v2480, %v2806
      %v2863 = vsub.f32 %v2206, %v2807
      %v2864 = vsub.f32 %v2482, %v2807
      %v2865 = vsub.f32 %v2209, %v2808
      %v2866 = vsub.f32 %v2485, %v2808
      %v2867 = vsub.f32 %v2211, %v2809
      %v2868 = vsub.f32 %v2487, %v2809
      %v2869 = vsub.f32 %v2214, %v2810
      %v2870 = vsub.f32 %v2490, %v2810
      %v2871 = vsub.f32 %v2216, %v2811
      %v2872 = vsub.f32 %v2492, %v2811
      %v2873 = vsub.f32 %v2219, %v2812
      %v2874 = vsub.f32 %v2495, %v2812
      %v2875 = vsub.f32 %v2221, %v2813
      %v2876 = vsub.f32 %v2497, %v2813
      %v2877 = vsub.f32 %v2224, %v2814
      %v2878 = vsub.f32 %v2500, %v2814
      %v2879 = vsub.f32 %v2226, %v2815
      %v2880 = vsub.f32 %v2502, %v2815
      %v2881 = vsub.f32 %v2229, %v2816
      %v2882 = vsub.f32 %v2505, %v2816
      %v2883 = vsub.f32 %v2231, %v2817
      %v2884 = vsub.f32 %v2507, %v2817
      %v2885 = vsub.f32 %v2234, %v2818
      %v2886 = vsub.f32 %v2510, %v2818
      %v2887 = vsub.f32 %v2236, %v2819
      %v2888 = vsub.f32 %v2512, %v2819
      %v2889 = vsub.f32 %v2239, %v2820
      %v2890 = vsub.f32 %v2515, %v2820
      %v2891 = vsub.f32 %v2241, %v2821
      %v2892 = vsub.f32 %v2517, %v2821
      %v2893 = vsub.f32 %v2244, %v2822
      %v2894 = vsub.f32 %v2520, %v2822
      %v2895 = vsub.f32 %v2246, %v2823
      %v2896 = vsub.f32 %v2522, %v2823
      %v2897 = vsub.f32 %v2249, %v2824
      %v2898 = vsub.f32 %v2525, %v2824
      %v2899 = vsub.f32 %v2251, %v2825
      %v2900 = vsub.f32 %v2527, %v2825
      %v2901 = vsub.f32 %v2254, %v2826
      %v2902 = vsub.f32 %v2530, %v2826
      %v2903 = vsub.f32 %v2256, %v2827
      %v2904 = vsub.f32 %v2532, %v2827
      %v2905 = vsub.f32 %v2259, %v2828
      %v2906 = vsub.f32 %v2535, %v2828
      %v2907 = vsub.f32 %v2261, %v2829
      %v2908 = vsub.f32 %v2537, %v2829
      %v2909 = vsub.f32 %v2264, %v2830
      %v2910 = vsub.f32 %v2540, %v2830
      %v2911 = vsub.f32 %v2266, %v2831
      %v2912 = vsub.f32 %v2542, %v2831
      %v2913 = vsub.f32 %v2269, %v2832
      %v2914 = vsub.f32 %v2545, %v2832
      %v2915 = vsub.f32 %v2271, %v2833
      %v2916 = vsub.f32 %v2547, %v2833
      %v2917 = vsub.f32 %v2274, %v2834
      %v2918 = vsub.f32 %v2550, %v2834
      %v2919 = vsub.f32 %v2276, %v2835
      %v2920 = vsub.f32 %v2552, %v2835
      %v2921 = vsub.f32 %v2279, %v2836
      %v2922 = vsub.f32 %v2555, %v2836
      %v2923 = vsub.f32 %v2281, %v2837
      %v2924 = vsub.f32 %v2557, %v2837
      %v2925 = vsub.f32 %v2284, %v2838
      %v2926 = vsub.f32 %v2560, %v2838
      %v2927 = vsub.f32 %v2286, %v2839
      %v2928 = vsub.f32 %v2562, %v2839
      %v2929 = vsub.f32 %v2289, %v2840
      %v2930 = vsub.f32 %v2565, %v2840
      %v2931 = vsub.f32 %v2291, %v2841
      %v2932 = vsub.f32 %v2567, %v2841
      %v2933 = vsub.f32 %v2294, %v2842
      %v2934 = vsub.f32 %v2570, %v2842
      %v2935 = vsub.f32 %v2296, %v2843
      %v2936 = vsub.f32 %v2572, %v2843
      %v2937 = vsub.f32 %v2299, %v2844
      %v2938 = vsub.f32 %v2575, %v2844
      %v2939 = vsub.f32 %v2301, %v2845
      %v2940 = vsub.f32 %v2577, %v2845
      %v2941 = vsub.f32 %v2304, %v2846
      %v2942 = vsub.f32 %v2580, %v2846
      %v2943 = vsub.f32 %v2306, %v2847
      %v2944 = vsub.f32 %v2582, %v2847
      %v2945 = vsub.f32 %v2309, %v2848
      %v2946 = vsub.f32 %v2585, %v2848
      %v2947 = vsub.f32 %v2311, %v2849
      %v2948 = vsub.f32 %v2587, %v2849
      %v2949 = vsub.f32 %v2314, %v2850
      %v2950 = vsub.f32 %v2590, %v2850
      %v2951 = vsub.f32 %v2316, %v2851
      %v2952 = vsub.f32 %v2592, %v2851
      %v2953 = vsub.f32 %v2319, %v2852
      %v2954 = vsub.f32 %v2595, %v2852
      %v2955 = vmul.f32 %v2853, %v2853
      %v2956 = vmul.f32 %v2854, %v2854
      %v2957 = vmul.f32 %v2855, %v2855
      %v2958 = vmul.f32 %v2856, %v2856
      %v2959 = vmul.f32 %v2857, %v2857
      %v2960 = vmul.f32 %v2858, %v2858
      %v2961 = vmul.f32 %v2859, %v2859
      %v2962 = vmul.f32 %v2860, %v2860
      %v2963 = vmul.f32 %v2861, %v2861
      %v2964 = vmul.f32 %v2862, %v2862
      %v2965 = vmul.f32 %v2863, %v2863
      %v2966 = vmul.f32 %v2864, %v2864
      %v2967 = vmul.f32 %v2865, %v2865
      %v2968 = vmul.f32 %v2866, %v2866
      %v2969 = vmul.f32 %v2867, %v2867
      %v2970 = vmul.f32 %v2868, %v2868
      %v2971 = vmul.f32 %v2869, %v2869
      %v2972 = vmul.f32 %v2870, %v2870
      %v2973 = vmul.f32 %v2871, %v2871
      %v2974 = vmul.f32 %v2872, %v2872
      %v2975 = vmul.f32 %v2873, %v2873
      %v2976 = vmul.f32 %v2874, %v2874
      %v2977 = vmul.f32 %v2875, %v2875
      %v2978 = vmul.f32 %v2876, %v2876
      %v2979 = vmul.f32 %v2877, %v2877
      %v2980 = vmul.f32 %v2878, %v2878
      %v2981 = vmul.f32 %v2879, %v2879
      %v2982 = vmul.f32 %v2880, %v2880
      %v2983 = vmul.f32 %v2881, %v2881
      %v2984 = vmul.f32 %v2882, %v2882
      %v2985 = vmul.f32 %v2883, %v2883
      %v2986 = vmul.f32 %v2884, %v2884
      %v2987 = vmul.f32 %v2885, %v2885
      %v2988 = vmul.f32 %v2886, %v2886
      %v2989 = vmul.f32 %v2887, %v2887
      %v2990 = vmul.f32 %v2888, %v2888
      %v2991 = vmul.f32 %v2889, %v2889
      %v2992 = vmul.f32 %v2890, %v2890
      %v2993 = vmul.f32 %v2891, %v2891
      %v2994 = vmul.f32 %v2892, %v2892
      %v2995 = vmul.f32 %v2893, %v2893
      %v2996 = vmul.f32 %v2894, %v2894
      %v2997 = vmul.f32 %v2895, %v2895
      %v2998 = vmul.f32 %v2896, %v2896
      %v2999 = vmul.f32 %v2897, %v2897
      %v3000 = vmul.f32 %v2898, %v2898
      %v3001 = vmul.f32 %v2899, %v2899
      %v3002 = vmul.f32 %v2900, %v2900
      %v3003 = vmul.f32 %v2901, %v2901
      %v3004 = vmul.f32 %v2902, %v2902
      %v3005 = vmul.f32 %v2903, %v2903
      %v3006 = vmul.f32 %v2904, %v2904
      %v3007 = vmul.f32 %v2905, %v2905
      %v3008 = vmul.f32 %v2906, %v2906
      %v3009 = vmul.f32 %v2907, %v2907
      %v3010 = vmul.f32 %v2908, %v2908
      %v3011 = vmul.f32 %v2909, %v2909
      %v3012 = vmul.f32 %v2910, %v2910
      %v3013 = vmul.f32 %v2911, %v2911
      %v3014 = vmul.f32 %v2912, %v2912
      %v3015 = vmul.f32 %v2913, %v2913
      %v3016 = vmul.f32 %v2914, %v2914
      %v3017 = vmul.f32 %v2915, %v2915
      %v3018 = vmul.f32 %v2916, %v2916
      %v3019 = vmul.f32 %v2917, %v2917
      %v3020 = vmul.f32 %v2918, %v2918
      %v3021 = vmul.f32 %v2919, %v2919
      %v3022 = vmul.f32 %v2920, %v2920
      %v3023 = vmul.f32 %v2921, %v2921
      %v3024 = vmul.f32 %v2922, %v2922
      %v3025 = vmul.f32 %v2923, %v2923
      %v3026 = vmul.f32 %v2924, %v2924
      %v3027 = vmul.f32 %v2925, %v2925
      %v3028 = vmul.f32 %v2926, %v2926
      %v3029 = vmul.f32 %v2927, %v2927
      %v3030 = vmul.f32 %v2928, %v2928
      %v3031 = vmul.f32 %v2929, %v2929
      %v3032 = vmul.f32 %v2930, %v2930
      %v3033 = vmul.f32 %v2931, %v2931
      %v3034 = vmul.f32 %v2932, %v2932
      %v3035 = vmul.f32 %v2933, %v2933
      %v3036 = vmul.f32 %v2934, %v2934
      %v3037 = vmul.f32 %v2935, %v2935
      %v3038 = vmul.f32 %v2936, %v2936
      %v3039 = vmul.f32 %v2937, %v2937
      %v3040 = vmul.f32 %v2938, %v2938
      %v3041 = vmul.f32 %v2939, %v2939
      %v3042 = vmul.f32 %v2940, %v2940
      %v3043 = vmul.f32 %v2941, %v2941
      %v3044 = vmul.f32 %v2942, %v2942
      %v3045 = vmul.f32 %v2943, %v2943
      %v3046 = vmul.f32 %v2944, %v2944
      %v3047 = vmul.f32 %v2945, %v2945
      %v3048 = vmul.f32 %v2946, %v2946
      %v3049 = vmul.f32 %v2947, %v2947
      %v3050 = vmul.f32 %v2948, %v2948
      %v3051 = vmul.f32 %v2949, %v2949
      %v3052 = vmul.f32 %v2950, %v2950
      %v3053 = vmul.f32 %v2951, %v2951
      %v3054 = vmul.f32 %v2952, %v2952
      %v3055 = vmul.f32 %v2953, %v2953
      %v3056 = vmul.f32 %v2954, %v2954
      %v3057 = vsel %vm1209, %v2956, 0.0
      %v3058 = vadd.f32 %v2955, %v3057
      %3059 = vadd.xlane.f32.xlu0 %v3058
      %v3060 = vpop.xlane.xlu0 %3059
      %v3061 = vsel %vm1209, %v2958, 0.0
      %v3062 = vadd.f32 %v2957, %v3061
      %3063 = vadd.xlane.f32.xlu0 %v3062
      %v3064 = vpop.xlane.xlu0 %3063
      %v3065 = vsel %vm1209, %v2960, 0.0
      %v3066 = vadd.f32 %v2959, %v3065
      %3067 = vadd.xlane.f32.xlu0 %v3066
      %v3068 = vpop.xlane.xlu0 %3067
      %v3069 = vsel %vm1209, %v2962, 0.0
      %v3070 = vadd.f32 %v2961, %v3069
      %3071 = vadd.xlane.f32.xlu0 %v3070
      %v3072 = vpop.xlane.xlu0 %3071
      %v3073 = vsel %vm1209, %v2964, 0.0
      %v3074 = vadd.f32 %v2963, %v3073
      %3075 = vadd.xlane.f32.xlu0 %v3074
      %v3076 = vpop.xlane.xlu0 %3075
      %v3077 = vsel %vm1209, %v2966, 0.0
      %v3078 = vadd.f32 %v2965, %v3077
      %3079 = vadd.xlane.f32.xlu0 %v3078
      %v3080 = vpop.xlane.xlu0 %3079
      %v3081 = vsel %vm1209, %v2968, 0.0
      %v3082 = vadd.f32 %v2967, %v3081
      %3083 = vadd.xlane.f32.xlu0 %v3082
      %v3084 = vpop.xlane.xlu0 %3083
      %v3085 = vsel %vm1209, %v2970, 0.0
      %v3086 = vadd.f32 %v2969, %v3085
      %3087 = vadd.xlane.f32.xlu0 %v3086
      %v3088 = vpop.xlane.xlu0 %3087
      %v3089 = vsel %vm1209, %v2972, 0.0
      %v3090 = vadd.f32 %v2971, %v3089
      %3091 = vadd.xlane.f32.xlu0 %v3090
      %v3092 = vpop.xlane.xlu0 %3091
      %v3093 = vsel %vm1209, %v2974, 0.0
      %v3094 = vadd.f32 %v2973, %v3093
      %3095 = vadd.xlane.f32.xlu0 %v3094
      %v3096 = vpop.xlane.xlu0 %3095
      %v3097 = vsel %vm1209, %v2976, 0.0
      %v3098 = vadd.f32 %v2975, %v3097
      %3099 = vadd.xlane.f32.xlu0 %v3098
      %v3100 = vpop.xlane.xlu0 %3099
      %v3101 = vsel %vm1209, %v2978, 0.0
      %v3102 = vadd.f32 %v2977, %v3101
      %3103 = vadd.xlane.f32.xlu0 %v3102
      %v3104 = vpop.xlane.xlu0 %3103
      %v3105 = vsel %vm1209, %v2980, 0.0
      %v3106 = vadd.f32 %v2979, %v3105
      %3107 = vadd.xlane.f32.xlu0 %v3106
      %v3108 = vpop.xlane.xlu0 %3107
      %v3109 = vsel %vm1209, %v2982, 0.0
      %v3110 = vadd.f32 %v2981, %v3109
      %3111 = vadd.xlane.f32.xlu0 %v3110
      %v3112 = vpop.xlane.xlu0 %3111
      %v3113 = vsel %vm1209, %v2984, 0.0
      %v3114 = vadd.f32 %v2983, %v3113
      %3115 = vadd.xlane.f32.xlu0 %v3114
      %v3116 = vpop.xlane.xlu0 %3115
      %v3117 = vsel %vm1209, %v2986, 0.0
      %v3118 = vadd.f32 %v2985, %v3117
      %3119 = vadd.xlane.f32.xlu0 %v3118
      %v3120 = vpop.xlane.xlu0 %3119
      %v3121 = vsel %vm1209, %v2988, 0.0
      %v3122 = vadd.f32 %v2987, %v3121
      %3123 = vadd.xlane.f32.xlu0 %v3122
      %v3124 = vpop.xlane.xlu0 %3123
      %v3125 = vsel %vm1209, %v2990, 0.0
      %v3126 = vadd.f32 %v2989, %v3125
      %3127 = vadd.xlane.f32.xlu0 %v3126
      %v3128 = vpop.xlane.xlu0 %3127
      %v3129 = vsel %vm1209, %v2992, 0.0
      %v3130 = vadd.f32 %v2991, %v3129
      %3131 = vadd.xlane.f32.xlu0 %v3130
      %v3132 = vpop.xlane.xlu0 %3131
      %v3133 = vsel %vm1209, %v2994, 0.0
      %v3134 = vadd.f32 %v2993, %v3133
      %3135 = vadd.xlane.f32.xlu0 %v3134
      %v3136 = vpop.xlane.xlu0 %3135
      %v3137 = vsel %vm1209, %v2996, 0.0
      %v3138 = vadd.f32 %v2995, %v3137
      %3139 = vadd.xlane.f32.xlu0 %v3138
      %v3140 = vpop.xlane.xlu0 %3139
      %v3141 = vsel %vm1209, %v2998, 0.0
      %v3142 = vadd.f32 %v2997, %v3141
      %3143 = vadd.xlane.f32.xlu0 %v3142
      %v3144 = vpop.xlane.xlu0 %3143
      %v3145 = vsel %vm1209, %v3000, 0.0
      %v3146 = vadd.f32 %v2999, %v3145
      %3147 = vadd.xlane.f32.xlu0 %v3146
      %v3148 = vpop.xlane.xlu0 %3147
      %v3149 = vsel %vm1209, %v3002, 0.0
      %v3150 = vadd.f32 %v3001, %v3149
      %3151 = vadd.xlane.f32.xlu0 %v3150
      %v3152 = vpop.xlane.xlu0 %3151
      %v3153 = vsel %vm1209, %v3004, 0.0
      %v3154 = vadd.f32 %v3003, %v3153
      %3155 = vadd.xlane.f32.xlu0 %v3154
      %v3156 = vpop.xlane.xlu0 %3155
      %v3157 = vsel %vm1209, %v3006, 0.0
      %v3158 = vadd.f32 %v3005, %v3157
      %3159 = vadd.xlane.f32.xlu0 %v3158
      %v3160 = vpop.xlane.xlu0 %3159
      %v3161 = vsel %vm1209, %v3008, 0.0
      %v3162 = vadd.f32 %v3007, %v3161
      %3163 = vadd.xlane.f32.xlu0 %v3162
      %v3164 = vpop.xlane.xlu0 %3163
      %v3165 = vsel %vm1209, %v3010, 0.0
      %v3166 = vadd.f32 %v3009, %v3165
      %3167 = vadd.xlane.f32.xlu0 %v3166
      %v3168 = vpop.xlane.xlu0 %3167
      %v3169 = vsel %vm1209, %v3012, 0.0
      %v3170 = vadd.f32 %v3011, %v3169
      %3171 = vadd.xlane.f32.xlu0 %v3170
      %v3172 = vpop.xlane.xlu0 %3171
      %v3173 = vsel %vm1209, %v3014, 0.0
      %v3174 = vadd.f32 %v3013, %v3173
      %3175 = vadd.xlane.f32.xlu0 %v3174
      %v3176 = vpop.xlane.xlu0 %3175
      %v3177 = vsel %vm1209, %v3016, 0.0
      %v3178 = vadd.f32 %v3015, %v3177
      %3179 = vadd.xlane.f32.xlu0 %v3178
      %v3180 = vpop.xlane.xlu0 %3179
      %v3181 = vsel %vm1209, %v3018, 0.0
      %v3182 = vadd.f32 %v3017, %v3181
      %3183 = vadd.xlane.f32.xlu0 %v3182
      %v3184 = vpop.xlane.xlu0 %3183
      %v3185 = vsel %vm1209, %v3020, 0.0
      %v3186 = vadd.f32 %v3019, %v3185
      %3187 = vadd.xlane.f32.xlu0 %v3186
      %v3188 = vpop.xlane.xlu0 %3187
      %v3189 = vsel %vm1209, %v3022, 0.0
      %v3190 = vadd.f32 %v3021, %v3189
      %3191 = vadd.xlane.f32.xlu0 %v3190
      %v3192 = vpop.xlane.xlu0 %3191
      %v3193 = vsel %vm1209, %v3024, 0.0
      %v3194 = vadd.f32 %v3023, %v3193
      %3195 = vadd.xlane.f32.xlu0 %v3194
      %v3196 = vpop.xlane.xlu0 %3195
      %v3197 = vsel %vm1209, %v3026, 0.0
      %v3198 = vadd.f32 %v3025, %v3197
      %3199 = vadd.xlane.f32.xlu0 %v3198
      %v3200 = vpop.xlane.xlu0 %3199
      %v3201 = vsel %vm1209, %v3028, 0.0
      %v3202 = vadd.f32 %v3027, %v3201
      %3203 = vadd.xlane.f32.xlu0 %v3202
      %v3204 = vpop.xlane.xlu0 %3203
      %v3205 = vsel %vm1209, %v3030, 0.0
      %v3206 = vadd.f32 %v3029, %v3205
      %3207 = vadd.xlane.f32.xlu0 %v3206
      %v3208 = vpop.xlane.xlu0 %3207
      %v3209 = vsel %vm1209, %v3032, 0.0
      %v3210 = vadd.f32 %v3031, %v3209
      %3211 = vadd.xlane.f32.xlu0 %v3210
      %v3212 = vpop.xlane.xlu0 %3211
      %v3213 = vsel %vm1209, %v3034, 0.0
      %v3214 = vadd.f32 %v3033, %v3213
      %3215 = vadd.xlane.f32.xlu0 %v3214
      %v3216 = vpop.xlane.xlu0 %3215
      %v3217 = vsel %vm1209, %v3036, 0.0
      %v3218 = vadd.f32 %v3035, %v3217
      %3219 = vadd.xlane.f32.xlu0 %v3218
      %v3220 = vpop.xlane.xlu0 %3219
      %v3221 = vsel %vm1209, %v3038, 0.0
      %v3222 = vadd.f32 %v3037, %v3221
      %3223 = vadd.xlane.f32.xlu0 %v3222
      %v3224 = vpop.xlane.xlu0 %3223
      %v3225 = vsel %vm1209, %v3040, 0.0
      %v3226 = vadd.f32 %v3039, %v3225
      %3227 = vadd.xlane.f32.xlu0 %v3226
      %v3228 = vpop.xlane.xlu0 %3227
      %v3229 = vsel %vm1209, %v3042, 0.0
      %v3230 = vadd.f32 %v3041, %v3229
      %3231 = vadd.xlane.f32.xlu0 %v3230
      %v3232 = vpop.xlane.xlu0 %3231
      %v3233 = vsel %vm1209, %v3044, 0.0
      %v3234 = vadd.f32 %v3043, %v3233
      %3235 = vadd.xlane.f32.xlu0 %v3234
      %v3236 = vpop.xlane.xlu0 %3235
      %v3237 = vsel %vm1209, %v3046, 0.0
      %v3238 = vadd.f32 %v3045, %v3237
      %3239 = vadd.xlane.f32.xlu0 %v3238
      %v3240 = vpop.xlane.xlu0 %3239
      %v3241 = vsel %vm1209, %v3048, 0.0
      %v3242 = vadd.f32 %v3047, %v3241
      %3243 = vadd.xlane.f32.xlu0 %v3242
      %v3244 = vpop.xlane.xlu0 %3243
      %v3245 = vsel %vm1209, %v3050, 0.0
      %v3246 = vadd.f32 %v3049, %v3245
      %3247 = vadd.xlane.f32.xlu0 %v3246
      %v3248 = vpop.xlane.xlu0 %3247
      %v3249 = vsel %vm1209, %v3052, 0.0
      %v3250 = vadd.f32 %v3051, %v3249
      %3251 = vadd.xlane.f32.xlu0 %v3250
      %v3252 = vpop.xlane.xlu0 %3251
      %v3253 = vsel %vm1209, %v3054, 0.0
      %v3254 = vadd.f32 %v3053, %v3253
      %3255 = vadd.xlane.f32.xlu0 %v3254
      %v3256 = vpop.xlane.xlu0 %3255
      %v3257 = vsel %vm1209, %v3056, 0.0
      %v3258 = vadd.f32 %v3055, %v3257
      %3259 = vadd.xlane.f32.xlu0 %v3258
      %v3260 = vpop.xlane.xlu0 %3259
      %v3261 = vmul.f32 %v3060, 0.0051020407
      %v3262 = vmul.f32 %v3064, 0.0051020407
      %v3263 = vmul.f32 %v3068, 0.0051020407
      %v3264 = vmul.f32 %v3072, 0.0051020407
      %v3265 = vmul.f32 %v3076, 0.0051020407
      %v3266 = vmul.f32 %v3080, 0.0051020407
      %v3267 = vmul.f32 %v3084, 0.0051020407
      %v3268 = vmul.f32 %v3088, 0.0051020407
      %v3269 = vmul.f32 %v3092, 0.0051020407
      %v3270 = vmul.f32 %v3096, 0.0051020407
      %v3271 = vmul.f32 %v3100, 0.0051020407
      %v3272 = vmul.f32 %v3104, 0.0051020407
      %v3273 = vmul.f32 %v3108, 0.0051020407
      %v3274 = vmul.f32 %v3112, 0.0051020407
      %v3275 = vmul.f32 %v3116, 0.0051020407
      %v3276 = vmul.f32 %v3120, 0.0051020407
      %v3277 = vmul.f32 %v3124, 0.0051020407
      %v3278 = vmul.f32 %v3128, 0.0051020407
      %v3279 = vmul.f32 %v3132, 0.0051020407
      %v3280 = vmul.f32 %v3136, 0.0051020407
      %v3281 = vmul.f32 %v3140, 0.0051020407
      %v3282 = vmul.f32 %v3144, 0.0051020407
      %v3283 = vmul.f32 %v3148, 0.0051020407
      %v3284 = vmul.f32 %v3152, 0.0051020407
      %v3285 = vmul.f32 %v3156, 0.0051020407
      %v3286 = vmul.f32 %v3160, 0.0051020407
      %v3287 = vmul.f32 %v3164, 0.0051020407
      %v3288 = vmul.f32 %v3168, 0.0051020407
      %v3289 = vmul.f32 %v3172, 0.0051020407
      %v3290 = vmul.f32 %v3176, 0.0051020407
      %v3291 = vmul.f32 %v3180, 0.0051020407
      %v3292 = vmul.f32 %v3184, 0.0051020407
      %v3293 = vmul.f32 %v3188, 0.0051020407
      %v3294 = vmul.f32 %v3192, 0.0051020407
      %v3295 = vmul.f32 %v3196, 0.0051020407
      %v3296 = vmul.f32 %v3200, 0.0051020407
      %v3297 = vmul.f32 %v3204, 0.0051020407
      %v3298 = vmul.f32 %v3208, 0.0051020407
      %v3299 = vmul.f32 %v3212, 0.0051020407
      %v3300 = vmul.f32 %v3216, 0.0051020407
      %v3301 = vmul.f32 %v3220, 0.0051020407
      %v3302 = vmul.f32 %v3224, 0.0051020407
      %v3303 = vmul.f32 %v3228, 0.0051020407
      %v3304 = vmul.f32 %v3232, 0.0051020407
      %v3305 = vmul.f32 %v3236, 0.0051020407
      %v3306 = vmul.f32 %v3240, 0.0051020407
      %v3307 = vmul.f32 %v3244, 0.0051020407
      %v3308 = vmul.f32 %v3248, 0.0051020407
      %v3309 = vmul.f32 %v3252, 0.0051020407
      %v3310 = vmul.f32 %v3256, 0.0051020407
      %v3311 = vmul.f32 %v3260, 0.0051020407
      %v3312 = vld [vmem:[%s289] sm:$0xff]
      %v3313 = vld [vmem:[%s289 + $0x8] sm:$0xff]
      %v3314 = vld [vmem:[%s289 + $0x10] sm:$0xff]
      %v3315 = vld [vmem:[%s289 + $0x18] sm:$0xff]
      %v3316 = vld [vmem:[%s289 + $0x20] sm:$0xff]
      %v3317 = vld [vmem:[%s289 + $0x28] sm:$0xff]
      %v3318 = vld [vmem:[%s289 + $0x30] sm:$0xff]
      %v3319 = vld [vmem:[%s289 + $0x38] sm:$0xff]
      %v3320 = vld [vmem:[%s289 + $0x40] sm:$0xff]
      %v3321 = vld [vmem:[%s289 + $0x48] sm:$0xff]
      %v3322 = vld [vmem:[%s289 + $0x50] sm:$0xff]
      %v3323 = vld [vmem:[%s289 + $0x58] sm:$0xff]
      %v3324 = vld [vmem:[%s289 + $0x60] sm:$0xff]
      %v3325 = vld [vmem:[%s289 + $0x68] sm:$0xff]
      %v3326 = vld [vmem:[%s289 + $0x70] sm:$0xff]
      %v3327 = vld [vmem:[%s289 + $0x78] sm:$0xff]
      %v3328 = vld [vmem:[%s289 + $0x80] sm:$0xff]
      %v3329 = vld [vmem:[%s289 + $0x88] sm:$0xff]
      %v3330 = vld [vmem:[%s289 + $0x90] sm:$0xff]
      %v3331 = vld [vmem:[%s289 + $0x98] sm:$0xff]
      %v3332 = vld [vmem:[%s289 + $0xa0] sm:$0xff]
      %v3333 = vld [vmem:[%s289 + $0xa8] sm:$0xff]
      %v3334 = vld [vmem:[%s289 + $0xb0] sm:$0xff]
      %v3335 = vld [vmem:[%s289 + $0xb8] sm:$0xff]
      %v3336 = vld [vmem:[%s289 + $0xc0] sm:$0xff]
      %v3337 = vld [vmem:[%s289 + $0xc8] sm:$0xff]
      %v3338 = vld [vmem:[%s289 + $0xd0] sm:$0xff]
      %v3339 = vld [vmem:[%s289 + $0xd8] sm:$0xff]
      %v3340 = vld [vmem:[%s289 + $0xe0] sm:$0xff]
      %v3341 = vld [vmem:[%s289 + $0xe8] sm:$0xff]
      %v3342 = vld [vmem:[%s289 + $0xf0] sm:$0xff]
      %v3343 = vld [vmem:[%s289 + $0xf8] sm:$0xff]
      %v3344 = vld [vmem:[%s289 + $0x100] sm:$0xff]
      %v3345 = vld [vmem:[%s289 + $0x108] sm:$0xff]
      %v3346 = vld [vmem:[%s289 + $0x110] sm:$0xff]
      %v3347 = vld [vmem:[%s289 + $0x118] sm:$0xff]
      %v3348 = vld [vmem:[%s289 + $0x120] sm:$0xff]
      %v3349 = vld [vmem:[%s289 + $0x128] sm:$0xff]
      %v3350 = vld [vmem:[%s289 + $0x130] sm:$0xff]
      %v3351 = vld [vmem:[%s289 + $0x138] sm:$0xff]
      %v3352 = vld [vmem:[%s289 + $0x140] sm:$0xff]
      %v3353 = vld [vmem:[%s289 + $0x148] sm:$0xff]
      %v3354 = vld [vmem:[%s289 + $0x150] sm:$0xff]
      %v3355 = vld [vmem:[%s289 + $0x158] sm:$0xff]
      %v3356 = vld [vmem:[%s289 + $0x160] sm:$0xff]
      %v3357 = vld [vmem:[%s289 + $0x168] sm:$0xff]
      %v3358 = vld [vmem:[%s289 + $0x170] sm:$0xff]
      %v3359 = vld [vmem:[%s289 + $0x178] sm:$0xff]
      %v3360 = vld [vmem:[%s289 + $0x180] sm:$0xff]
      %v3361 = vld [vmem:[%s289 + $0x188] sm:$0xff]
      %v3362 = vld [vmem:[%s289 + $0x190] sm:$0xff]
      %v3363 = vadd.f32 %v3261, 1e-05
      %v3364 = vadd.f32 %v3262, 1e-05
      %v3365 = vadd.f32 %v3263, 1e-05
      %v3366 = vadd.f32 %v3264, 1e-05
      %v3367 = vadd.f32 %v3265, 1e-05
      %v3368 = vadd.f32 %v3266, 1e-05
      %v3369 = vadd.f32 %v3267, 1e-05
      %v3370 = vadd.f32 %v3268, 1e-05
      %v3371 = vadd.f32 %v3269, 1e-05
      %v3372 = vadd.f32 %v3270, 1e-05
      %v3373 = vadd.f32 %v3271, 1e-05
      %v3374 = vadd.f32 %v3272, 1e-05
      %v3375 = vadd.f32 %v3273, 1e-05
      %v3376 = vadd.f32 %v3274, 1e-05
      %v3377 = vadd.f32 %v3275, 1e-05
      %v3378 = vadd.f32 %v3276, 1e-05
      %v3379 = vadd.f32 %v3277, 1e-05
      %v3380 = vadd.f32 %v3278, 1e-05
      %v3381 = vadd.f32 %v3279, 1e-05
      %v3382 = vadd.f32 %v3280, 1e-05
      %v3383 = vadd.f32 %v3281, 1e-05
      %v3384 = vadd.f32 %v3282, 1e-05
      %v3385 = vadd.f32 %v3283, 1e-05
      %v3386 = vadd.f32 %v3284, 1e-05
      %v3387 = vadd.f32 %v3285, 1e-05
      %v3388 = vadd.f32 %v3286, 1e-05
      %v3389 = vadd.f32 %v3287, 1e-05
      %v3390 = vadd.f32 %v3288, 1e-05
      %v3391 = vadd.f32 %v3289, 1e-05
      %v3392 = vadd.f32 %v3290, 1e-05
      %v3393 = vadd.f32 %v3291, 1e-05
      %v3394 = vadd.f32 %v3292, 1e-05
      %v3395 = vadd.f32 %v3293, 1e-05
      %v3396 = vadd.f32 %v3294, 1e-05
      %v3397 = vadd.f32 %v3295, 1e-05
      %v3398 = vadd.f32 %v3296, 1e-05
      %v3399 = vadd.f32 %v3297, 1e-05
      %v3400 = vadd.f32 %v3298, 1e-05
      %v3401 = vadd.f32 %v3299, 1e-05
      %v3402 = vadd.f32 %v3300, 1e-05
      %v3403 = vadd.f32 %v3301, 1e-05
      %v3404 = vadd.f32 %v3302, 1e-05
      %v3405 = vadd.f32 %v3303, 1e-05
      %v3406 = vadd.f32 %v3304, 1e-05
      %v3407 = vadd.f32 %v3305, 1e-05
      %v3408 = vadd.f32 %v3306, 1e-05
      %v3409 = vadd.f32 %v3307, 1e-05
      %v3410 = vadd.f32 %v3308, 1e-05
      %v3411 = vadd.f32 %v3309, 1e-05
      %v3412 = vadd.f32 %v3310, 1e-05
      %v3413 = vadd.f32 %v3311, 1e-05
      %v3414 = vrsqrt.pop %v3363
      %v3415 = vmul.f32 %v3414, %v3363
      %v3416 = vmul.f32 %v3415, %v3414
      %v3417 = vmul.f32 0.5, %v3416
      %v3418 = vsub.f32 1.5, %v3417
      %v3419 = vmul.f32 %v3414, %v3418
      %vm3420 = vweird.f32 %v3363
      %vm3421 = vweird.f32 %v3414
      %vm3422 = vmor %vm3420, %vm3421
      %v3423 = vsel %vm3422, %v3414, %v3419
      %v3424 = vrsqrt.pop %v3364
      %v3425 = vmul.f32 %v3424, %v3364
      %v3426 = vmul.f32 %v3425, %v3424
      %v3427 = vmul.f32 0.5, %v3426
      %v3428 = vsub.f32 1.5, %v3427
      %v3429 = vmul.f32 %v3424, %v3428
      %vm3430 = vweird.f32 %v3364
      %vm3431 = vweird.f32 %v3424
      %vm3432 = vmor %vm3430, %vm3431
      %v3433 = vsel %vm3432, %v3424, %v3429
      %v3434 = vrsqrt.pop %v3365
      %v3435 = vmul.f32 %v3434, %v3365
      %v3436 = vmul.f32 %v3435, %v3434
      %v3437 = vmul.f32 0.5, %v3436
      %v3438 = vsub.f32 1.5, %v3437
      %v3439 = vmul.f32 %v3434, %v3438
      %vm3440 = vweird.f32 %v3365
      %vm3441 = vweird.f32 %v3434
      %vm3442 = vmor %vm3440, %vm3441
      %v3443 = vsel %vm3442, %v3434, %v3439
      %v3444 = vrsqrt.pop %v3366
      %v3445 = vmul.f32 %v3444, %v3366
      %v3446 = vmul.f32 %v3445, %v3444
      %v3447 = vmul.f32 0.5, %v3446
      %v3448 = vsub.f32 1.5, %v3447
      %v3449 = vmul.f32 %v3444, %v3448
      %vm3450 = vweird.f32 %v3366
      %vm3451 = vweird.f32 %v3444
      %vm3452 = vmor %vm3450, %vm3451
      %v3453 = vsel %vm3452, %v3444, %v3449
      %v3454 = vrsqrt.pop %v3367
      %v3455 = vmul.f32 %v3454, %v3367
      %v3456 = vmul.f32 %v3455, %v3454
      %v3457 = vmul.f32 0.5, %v3456
      %v3458 = vsub.f32 1.5, %v3457
      %v3459 = vmul.f32 %v3454, %v3458
      %vm3460 = vweird.f32 %v3367
      %vm3461 = vweird.f32 %v3454
      %vm3462 = vmor %vm3460, %vm3461
      %v3463 = vsel %vm3462, %v3454, %v3459
      %v3464 = vrsqrt.pop %v3368
      %v3465 = vmul.f32 %v3464, %v3368
      %v3466 = vmul.f32 %v3465, %v3464
      %v3467 = vmul.f32 0.5, %v3466
      %v3468 = vsub.f32 1.5, %v3467
      %v3469 = vmul.f32 %v3464, %v3468
      %vm3470 = vweird.f32 %v3368
      %vm3471 = vweird.f32 %v3464
      %vm3472 = vmor %vm3470, %vm3471
      %v3473 = vsel %vm3472, %v3464, %v3469
      %v3474 = vrsqrt.pop %v3369
      %v3475 = vmul.f32 %v3474, %v3369
      %v3476 = vmul.f32 %v3475, %v3474
      %v3477 = vmul.f32 0.5, %v3476
      %v3478 = vsub.f32 1.5, %v3477
      %v3479 = vmul.f32 %v3474, %v3478
      %vm3480 = vweird.f32 %v3369
      %vm3481 = vweird.f32 %v3474
      %vm3482 = vmor %vm3480, %vm3481
      %v3483 = vsel %vm3482, %v3474, %v3479
      %v3484 = vrsqrt.pop %v3370
      %v3485 = vmul.f32 %v3484, %v3370
      %v3486 = vmul.f32 %v3485, %v3484
      %v3487 = vmul.f32 0.5, %v3486
      %v3488 = vsub.f32 1.5, %v3487
      %v3489 = vmul.f32 %v3484, %v3488
      %vm3490 = vweird.f32 %v3370
      %vm3491 = vweird.f32 %v3484
      %vm3492 = vmor %vm3490, %vm3491
      %v3493 = vsel %vm3492, %v3484, %v3489
      %v3494 = vrsqrt.pop %v3371
      %v3495 = vmul.f32 %v3494, %v3371
      %v3496 = vmul.f32 %v3495, %v3494
      %v3497 = vmul.f32 0.5, %v3496
      %v3498 = vsub.f32 1.5, %v3497
      %v3499 = vmul.f32 %v3494, %v3498
      %vm3500 = vweird.f32 %v3371
      %vm3501 = vweird.f32 %v3494
      %vm3502 = vmor %vm3500, %vm3501
      %v3503 = vsel %vm3502, %v3494, %v3499
      %v3504 = vrsqrt.pop %v3372
      %v3505 = vmul.f32 %v3504, %v3372
      %v3506 = vmul.f32 %v3505, %v3504
      %v3507 = vmul.f32 0.5, %v3506
      %v3508 = vsub.f32 1.5, %v3507
      %v3509 = vmul.f32 %v3504, %v3508
      %vm3510 = vweird.f32 %v3372
      %vm3511 = vweird.f32 %v3504
      %vm3512 = vmor %vm3510, %vm3511
      %v3513 = vsel %vm3512, %v3504, %v3509
      %v3514 = vrsqrt.pop %v3373
      %v3515 = vmul.f32 %v3514, %v3373
      %v3516 = vmul.f32 %v3515, %v3514
      %v3517 = vmul.f32 0.5, %v3516
      %v3518 = vsub.f32 1.5, %v3517
      %v3519 = vmul.f32 %v3514, %v3518
      %vm3520 = vweird.f32 %v3373
      %vm3521 = vweird.f32 %v3514
      %vm3522 = vmor %vm3520, %vm3521
      %v3523 = vsel %vm3522, %v3514, %v3519
      %v3524 = vrsqrt.pop %v3374
      %v3525 = vmul.f32 %v3524, %v3374
      %v3526 = vmul.f32 %v3525, %v3524
      %v3527 = vmul.f32 0.5, %v3526
      %v3528 = vsub.f32 1.5, %v3527
      %v3529 = vmul.f32 %v3524, %v3528
      %vm3530 = vweird.f32 %v3374
      %vm3531 = vweird.f32 %v3524
      %vm3532 = vmor %vm3530, %vm3531
      %v3533 = vsel %vm3532, %v3524, %v3529
      %v3534 = vrsqrt.pop %v3375
      %v3535 = vmul.f32 %v3534, %v3375
      %v3536 = vmul.f32 %v3535, %v3534
      %v3537 = vmul.f32 0.5, %v3536
      %v3538 = vsub.f32 1.5, %v3537
      %v3539 = vmul.f32 %v3534, %v3538
      %vm3540 = vweird.f32 %v3375
      %vm3541 = vweird.f32 %v3534
      %vm3542 = vmor %vm3540, %vm3541
      %v3543 = vsel %vm3542, %v3534, %v3539
      %v3544 = vrsqrt.pop %v3376
      %v3545 = vmul.f32 %v3544, %v3376
      %v3546 = vmul.f32 %v3545, %v3544
      %v3547 = vmul.f32 0.5, %v3546
      %v3548 = vsub.f32 1.5, %v3547
      %v3549 = vmul.f32 %v3544, %v3548
      %vm3550 = vweird.f32 %v3376
      %vm3551 = vweird.f32 %v3544
      %vm3552 = vmor %vm3550, %vm3551
      %v3553 = vsel %vm3552, %v3544, %v3549
      %v3554 = vrsqrt.pop %v3377
      %v3555 = vmul.f32 %v3554, %v3377
      %v3556 = vmul.f32 %v3555, %v3554
      %v3557 = vmul.f32 0.5, %v3556
      %v3558 = vsub.f32 1.5, %v3557
      %v3559 = vmul.f32 %v3554, %v3558
      %vm3560 = vweird.f32 %v3377
      %vm3561 = vweird.f32 %v3554
      %vm3562 = vmor %vm3560, %vm3561
      %v3563 = vsel %vm3562, %v3554, %v3559
      %v3564 = vrsqrt.pop %v3378
      %v3565 = vmul.f32 %v3564, %v3378
      %v3566 = vmul.f32 %v3565, %v3564
      %v3567 = vmul.f32 0.5, %v3566
      %v3568 = vsub.f32 1.5, %v3567
      %v3569 = vmul.f32 %v3564, %v3568
      %vm3570 = vweird.f32 %v3378
      %vm3571 = vweird.f32 %v3564
      %vm3572 = vmor %vm3570, %vm3571
      %v3573 = vsel %vm3572, %v3564, %v3569
      %v3574 = vrsqrt.pop %v3379
      %v3575 = vmul.f32 %v3574, %v3379
      %v3576 = vmul.f32 %v3575, %v3574
      %v3577 = vmul.f32 0.5, %v3576
      %v3578 = vsub.f32 1.5, %v3577
      %v3579 = vmul.f32 %v3574, %v3578
      %vm3580 = vweird.f32 %v3379
      %vm3581 = vweird.f32 %v3574
      %vm3582 = vmor %vm3580, %vm3581
      %v3583 = vsel %vm3582, %v3574, %v3579
      %v3584 = vrsqrt.pop %v3380
      %v3585 = vmul.f32 %v3584, %v3380
      %v3586 = vmul.f32 %v3585, %v3584
      %v3587 = vmul.f32 0.5, %v3586
      %v3588 = vsub.f32 1.5, %v3587
      %v3589 = vmul.f32 %v3584, %v3588
      %vm3590 = vweird.f32 %v3380
      %vm3591 = vweird.f32 %v3584
      %vm3592 = vmor %vm3590, %vm3591
      %v3593 = vsel %vm3592, %v3584, %v3589
      %v3594 = vrsqrt.pop %v3381
      %v3595 = vmul.f32 %v3594, %v3381
      %v3596 = vmul.f32 %v3595, %v3594
      %v3597 = vmul.f32 0.5, %v3596
      %v3598 = vsub.f32 1.5, %v3597
      %v3599 = vmul.f32 %v3594, %v3598
      %vm3600 = vweird.f32 %v3381
      %vm3601 = vweird.f32 %v3594
      %vm3602 = vmor %vm3600, %vm3601
      %v3603 = vsel %vm3602, %v3594, %v3599
      %v3604 = vrsqrt.pop %v3382
      %v3605 = vmul.f32 %v3604, %v3382
      %v3606 = vmul.f32 %v3605, %v3604
      %v3607 = vmul.f32 0.5, %v3606
      %v3608 = vsub.f32 1.5, %v3607
      %v3609 = vmul.f32 %v3604, %v3608
      %vm3610 = vweird.f32 %v3382
      %vm3611 = vweird.f32 %v3604
      %vm3612 = vmor %vm3610, %vm3611
      %v3613 = vsel %vm3612, %v3604, %v3609
      %v3614 = vrsqrt.pop %v3383
      %v3615 = vmul.f32 %v3614, %v3383
      %v3616 = vmul.f32 %v3615, %v3614
      %v3617 = vmul.f32 0.5, %v3616
      %v3618 = vsub.f32 1.5, %v3617
      %v3619 = vmul.f32 %v3614, %v3618
      %vm3620 = vweird.f32 %v3383
      %vm3621 = vweird.f32 %v3614
      %vm3622 = vmor %vm3620, %vm3621
      %v3623 = vsel %vm3622, %v3614, %v3619
      %v3624 = vrsqrt.pop %v3384
      %v3625 = vmul.f32 %v3624, %v3384
      %v3626 = vmul.f32 %v3625, %v3624
      %v3627 = vmul.f32 0.5, %v3626
      %v3628 = vsub.f32 1.5, %v3627
      %v3629 = vmul.f32 %v3624, %v3628
      %vm3630 = vweird.f32 %v3384
      %vm3631 = vweird.f32 %v3624
      %vm3632 = vmor %vm3630, %vm3631
      %v3633 = vsel %vm3632, %v3624, %v3629
      %v3634 = vrsqrt.pop %v3385
      %v3635 = vmul.f32 %v3634, %v3385
      %v3636 = vmul.f32 %v3635, %v3634
      %v3637 = vmul.f32 0.5, %v3636
      %v3638 = vsub.f32 1.5, %v3637
      %v3639 = vmul.f32 %v3634, %v3638
      %vm3640 = vweird.f32 %v3385
      %vm3641 = vweird.f32 %v3634
      %vm3642 = vmor %vm3640, %vm3641
      %v3643 = vsel %vm3642, %v3634, %v3639
      %v3644 = vrsqrt.pop %v3386
      %v3645 = vmul.f32 %v3644, %v3386
      %v3646 = vmul.f32 %v3645, %v3644
      %v3647 = vmul.f32 0.5, %v3646
      %v3648 = vsub.f32 1.5, %v3647
      %v3649 = vmul.f32 %v3644, %v3648
      %vm3650 = vweird.f32 %v3386
      %vm3651 = vweird.f32 %v3644
      %vm3652 = vmor %vm3650, %vm3651
      %v3653 = vsel %vm3652, %v3644, %v3649
      %v3654 = vrsqrt.pop %v3387
      %v3655 = vmul.f32 %v3654, %v3387
      %v3656 = vmul.f32 %v3655, %v3654
      %v3657 = vmul.f32 0.5, %v3656
      %v3658 = vsub.f32 1.5, %v3657
      %v3659 = vmul.f32 %v3654, %v3658
      %vm3660 = vweird.f32 %v3387
      %vm3661 = vweird.f32 %v3654
      %vm3662 = vmor %vm3660, %vm3661
      %v3663 = vsel %vm3662, %v3654, %v3659
      %v3664 = vrsqrt.pop %v3388
      %v3665 = vmul.f32 %v3664, %v3388
      %v3666 = vmul.f32 %v3665, %v3664
      %v3667 = vmul.f32 0.5, %v3666
      %v3668 = vsub.f32 1.5, %v3667
      %v3669 = vmul.f32 %v3664, %v3668
      %vm3670 = vweird.f32 %v3388
      %vm3671 = vweird.f32 %v3664
      %vm3672 = vmor %vm3670, %vm3671
      %v3673 = vsel %vm3672, %v3664, %v3669
      %v3674 = vrsqrt.pop %v3389
      %v3675 = vmul.f32 %v3674, %v3389
      %v3676 = vmul.f32 %v3675, %v3674
      %v3677 = vmul.f32 0.5, %v3676
      %v3678 = vsub.f32 1.5, %v3677
      %v3679 = vmul.f32 %v3674, %v3678
      %vm3680 = vweird.f32 %v3389
      %vm3681 = vweird.f32 %v3674
      %vm3682 = vmor %vm3680, %vm3681
      %v3683 = vsel %vm3682, %v3674, %v3679
      %v3684 = vrsqrt.pop %v3390
      %v3685 = vmul.f32 %v3684, %v3390
      %v3686 = vmul.f32 %v3685, %v3684
      %v3687 = vmul.f32 0.5, %v3686
      %v3688 = vsub.f32 1.5, %v3687
      %v3689 = vmul.f32 %v3684, %v3688
      %vm3690 = vweird.f32 %v3390
      %vm3691 = vweird.f32 %v3684
      %vm3692 = vmor %vm3690, %vm3691
      %v3693 = vsel %vm3692, %v3684, %v3689
      %v3694 = vrsqrt.pop %v3391
      %v3695 = vmul.f32 %v3694, %v3391
      %v3696 = vmul.f32 %v3695, %v3694
      %v3697 = vmul.f32 0.5, %v3696
      %v3698 = vsub.f32 1.5, %v3697
      %v3699 = vmul.f32 %v3694, %v3698
      %vm3700 = vweird.f32 %v3391
      %vm3701 = vweird.f32 %v3694
      %vm3702 = vmor %vm3700, %vm3701
      %v3703 = vsel %vm3702, %v3694, %v3699
      %v3704 = vrsqrt.pop %v3392
      %v3705 = vmul.f32 %v3704, %v3392
      %v3706 = vmul.f32 %v3705, %v3704
      %v3707 = vmul.f32 0.5, %v3706
      %v3708 = vsub.f32 1.5, %v3707
      %v3709 = vmul.f32 %v3704, %v3708
      %vm3710 = vweird.f32 %v3392
      %vm3711 = vweird.f32 %v3704
      %vm3712 = vmor %vm3710, %vm3711
      %v3713 = vsel %vm3712, %v3704, %v3709
      %v3714 = vrsqrt.pop %v3393
      %v3715 = vmul.f32 %v3714, %v3393
      %v3716 = vmul.f32 %v3715, %v3714
      %v3717 = vmul.f32 0.5, %v3716
      %v3718 = vsub.f32 1.5, %v3717
      %v3719 = vmul.f32 %v3714, %v3718
      %vm3720 = vweird.f32 %v3393
      %vm3721 = vweird.f32 %v3714
      %vm3722 = vmor %vm3720, %vm3721
      %v3723 = vsel %vm3722, %v3714, %v3719
      %v3724 = vrsqrt.pop %v3394
      %v3725 = vmul.f32 %v3724, %v3394
      %v3726 = vmul.f32 %v3725, %v3724
      %v3727 = vmul.f32 0.5, %v3726
      %v3728 = vsub.f32 1.5, %v3727
      %v3729 = vmul.f32 %v3724, %v3728
      %vm3730 = vweird.f32 %v3394
      %vm3731 = vweird.f32 %v3724
      %vm3732 = vmor %vm3730, %vm3731
      %v3733 = vsel %vm3732, %v3724, %v3729
      %v3734 = vrsqrt.pop %v3395
      %v3735 = vmul.f32 %v3734, %v3395
      %v3736 = vmul.f32 %v3735, %v3734
      %v3737 = vmul.f32 0.5, %v3736
      %v3738 = vsub.f32 1.5, %v3737
      %v3739 = vmul.f32 %v3734, %v3738
      %vm3740 = vweird.f32 %v3395
      %vm3741 = vweird.f32 %v3734
      %vm3742 = vmor %vm3740, %vm3741
      %v3743 = vsel %vm3742, %v3734, %v3739
      %v3744 = vrsqrt.pop %v3396
      %v3745 = vmul.f32 %v3744, %v3396
      %v3746 = vmul.f32 %v3745, %v3744
      %v3747 = vmul.f32 0.5, %v3746
      %v3748 = vsub.f32 1.5, %v3747
      %v3749 = vmul.f32 %v3744, %v3748
      %vm3750 = vweird.f32 %v3396
      %vm3751 = vweird.f32 %v3744
      %vm3752 = vmor %vm3750, %vm3751
      %v3753 = vsel %vm3752, %v3744, %v3749
      %v3754 = vrsqrt.pop %v3397
      %v3755 = vmul.f32 %v3754, %v3397
      %v3756 = vmul.f32 %v3755, %v3754
      %v3757 = vmul.f32 0.5, %v3756
      %v3758 = vsub.f32 1.5, %v3757
      %v3759 = vmul.f32 %v3754, %v3758
      %vm3760 = vweird.f32 %v3397
      %vm3761 = vweird.f32 %v3754
      %vm3762 = vmor %vm3760, %vm3761
      %v3763 = vsel %vm3762, %v3754, %v3759
      %v3764 = vrsqrt.pop %v3398
      %v3765 = vmul.f32 %v3764, %v3398
      %v3766 = vmul.f32 %v3765, %v3764
      %v3767 = vmul.f32 0.5, %v3766
      %v3768 = vsub.f32 1.5, %v3767
      %v3769 = vmul.f32 %v3764, %v3768
      %vm3770 = vweird.f32 %v3398
      %vm3771 = vweird.f32 %v3764
      %vm3772 = vmor %vm3770, %vm3771
      %v3773 = vsel %vm3772, %v3764, %v3769
      %v3774 = vrsqrt.pop %v3399
      %v3775 = vmul.f32 %v3774, %v3399
      %v3776 = vmul.f32 %v3775, %v3774
      %v3777 = vmul.f32 0.5, %v3776
      %v3778 = vsub.f32 1.5, %v3777
      %v3779 = vmul.f32 %v3774, %v3778
      %vm3780 = vweird.f32 %v3399
      %vm3781 = vweird.f32 %v3774
      %vm3782 = vmor %vm3780, %vm3781
      %v3783 = vsel %vm3782, %v3774, %v3779
      %v3784 = vrsqrt.pop %v3400
      %v3785 = vmul.f32 %v3784, %v3400
      %v3786 = vmul.f32 %v3785, %v3784
      %v3787 = vmul.f32 0.5, %v3786
      %v3788 = vsub.f32 1.5, %v3787
      %v3789 = vmul.f32 %v3784, %v3788
      %vm3790 = vweird.f32 %v3400
      %vm3791 = vweird.f32 %v3784
      %vm3792 = vmor %vm3790, %vm3791
      %v3793 = vsel %vm3792, %v3784, %v3789
      %v3794 = vrsqrt.pop %v3401
      %v3795 = vmul.f32 %v3794, %v3401
      %v3796 = vmul.f32 %v3795, %v3794
      %v3797 = vmul.f32 0.5, %v3796
      %v3798 = vsub.f32 1.5, %v3797
      %v3799 = vmul.f32 %v3794, %v3798
      %vm3800 = vweird.f32 %v3401
      %vm3801 = vweird.f32 %v3794
      %vm3802 = vmor %vm3800, %vm3801
      %v3803 = vsel %vm3802, %v3794, %v3799
      %v3804 = vrsqrt.pop %v3402
      %v3805 = vmul.f32 %v3804, %v3402
      %v3806 = vmul.f32 %v3805, %v3804
      %v3807 = vmul.f32 0.5, %v3806
      %v3808 = vsub.f32 1.5, %v3807
      %v3809 = vmul.f32 %v3804, %v3808
      %vm3810 = vweird.f32 %v3402
      %vm3811 = vweird.f32 %v3804
      %vm3812 = vmor %vm3810, %vm3811
      %v3813 = vsel %vm3812, %v3804, %v3809
      %v3814 = vrsqrt.pop %v3403
      %v3815 = vmul.f32 %v3814, %v3403
      %v3816 = vmul.f32 %v3815, %v3814
      %v3817 = vmul.f32 0.5, %v3816
      %v3818 = vsub.f32 1.5, %v3817
      %v3819 = vmul.f32 %v3814, %v3818
      %vm3820 = vweird.f32 %v3403
      %vm3821 = vweird.f32 %v3814
      %vm3822 = vmor %vm3820, %vm3821
      %v3823 = vsel %vm3822, %v3814, %v3819
      %v3824 = vrsqrt.pop %v3404
      %v3825 = vmul.f32 %v3824, %v3404
      %v3826 = vmul.f32 %v3825, %v3824
      %v3827 = vmul.f32 0.5, %v3826
      %v3828 = vsub.f32 1.5, %v3827
      %v3829 = vmul.f32 %v3824, %v3828
      %vm3830 = vweird.f32 %v3404
      %vm3831 = vweird.f32 %v3824
      %vm3832 = vmor %vm3830, %vm3831
      %v3833 = vsel %vm3832, %v3824, %v3829
      %v3834 = vrsqrt.pop %v3405
      %v3835 = vmul.f32 %v3834, %v3405
      %v3836 = vmul.f32 %v3835, %v3834
      %v3837 = vmul.f32 0.5, %v3836
      %v3838 = vsub.f32 1.5, %v3837
      %v3839 = vmul.f32 %v3834, %v3838
      %vm3840 = vweird.f32 %v3405
      %vm3841 = vweird.f32 %v3834
      %vm3842 = vmor %vm3840, %vm3841
      %v3843 = vsel %vm3842, %v3834, %v3839
      %v3844 = vrsqrt.pop %v3406
      %v3845 = vmul.f32 %v3844, %v3406
      %v3846 = vmul.f32 %v3845, %v3844
      %v3847 = vmul.f32 0.5, %v3846
      %v3848 = vsub.f32 1.5, %v3847
      %v3849 = vmul.f32 %v3844, %v3848
      %vm3850 = vweird.f32 %v3406
      %vm3851 = vweird.f32 %v3844
      %vm3852 = vmor %vm3850, %vm3851
      %v3853 = vsel %vm3852, %v3844, %v3849
      %v3854 = vrsqrt.pop %v3407
      %v3855 = vmul.f32 %v3854, %v3407
      %v3856 = vmul.f32 %v3855, %v3854
      %v3857 = vmul.f32 0.5, %v3856
      %v3858 = vsub.f32 1.5, %v3857
      %v3859 = vmul.f32 %v3854, %v3858
      %vm3860 = vweird.f32 %v3407
      %vm3861 = vweird.f32 %v3854
      %vm3862 = vmor %vm3860, %vm3861
      %v3863 = vsel %vm3862, %v3854, %v3859
      %v3864 = vrsqrt.pop %v3408
      %v3865 = vmul.f32 %v3864, %v3408
      %v3866 = vmul.f32 %v3865, %v3864
      %v3867 = vmul.f32 0.5, %v3866
      %v3868 = vsub.f32 1.5, %v3867
      %v3869 = vmul.f32 %v3864, %v3868
      %vm3870 = vweird.f32 %v3408
      %vm3871 = vweird.f32 %v3864
      %vm3872 = vmor %vm3870, %vm3871
      %v3873 = vsel %vm3872, %v3864, %v3869
      %v3874 = vrsqrt.pop %v3409
      %v3875 = vmul.f32 %v3874, %v3409
      %v3876 = vmul.f32 %v3875, %v3874
      %v3877 = vmul.f32 0.5, %v3876
      %v3878 = vsub.f32 1.5, %v3877
      %v3879 = vmul.f32 %v3874, %v3878
      %vm3880 = vweird.f32 %v3409
      %vm3881 = vweird.f32 %v3874
      %vm3882 = vmor %vm3880, %vm3881
      %v3883 = vsel %vm3882, %v3874, %v3879
      %v3884 = vrsqrt.pop %v3410
      %v3885 = vmul.f32 %v3884, %v3410
      %v3886 = vmul.f32 %v3885, %v3884
      %v3887 = vmul.f32 0.5, %v3886
      %v3888 = vsub.f32 1.5, %v3887
      %v3889 = vmul.f32 %v3884, %v3888
      %vm3890 = vweird.f32 %v3410
      %vm3891 = vweird.f32 %v3884
      %vm3892 = vmor %vm3890, %vm3891
      %v3893 = vsel %vm3892, %v3884, %v3889
      %v3894 = vrsqrt.pop %v3411
      %v3895 = vmul.f32 %v3894, %v3411
      %v3896 = vmul.f32 %v3895, %v3894
      %v3897 = vmul.f32 0.5, %v3896
      %v3898 = vsub.f32 1.5, %v3897
      %v3899 = vmul.f32 %v3894, %v3898
      %vm3900 = vweird.f32 %v3411
      %vm3901 = vweird.f32 %v3894
      %vm3902 = vmor %vm3900, %vm3901
      %v3903 = vsel %vm3902, %v3894, %v3899
      %v3904 = vrsqrt.pop %v3412
      %v3905 = vmul.f32 %v3904, %v3412
      %v3906 = vmul.f32 %v3905, %v3904
      %v3907 = vmul.f32 0.5, %v3906
      %v3908 = vsub.f32 1.5, %v3907
      %v3909 = vmul.f32 %v3904, %v3908
      %vm3910 = vweird.f32 %v3412
      %vm3911 = vweird.f32 %v3904
      %vm3912 = vmor %vm3910, %vm3911
      %v3913 = vsel %vm3912, %v3904, %v3909
      %v3914 = vrsqrt.pop %v3413
      %v3915 = vmul.f32 %v3914, %v3413
      %v3916 = vmul.f32 %v3915, %v3914
      %v3917 = vmul.f32 0.5, %v3916
      %v3918 = vsub.f32 1.5, %v3917
      %v3919 = vmul.f32 %v3914, %v3918
      %vm3920 = vweird.f32 %v3413
      %vm3921 = vweird.f32 %v3914
      %vm3922 = vmor %vm3920, %vm3921
      %v3923 = vsel %vm3922, %v3914, %v3919
      %v3924 = vmul.f32 %v3312, %v3423
      %v3925 = vmul.f32 %v3313, %v3433
      %v3926 = vmul.f32 %v3314, %v3443
      %v3927 = vmul.f32 %v3315, %v3453
      %v3928 = vmul.f32 %v3316, %v3463
      %v3929 = vmul.f32 %v3317, %v3473
      %v3930 = vmul.f32 %v3318, %v3483
      %v3931 = vmul.f32 %v3319, %v3493
      %v3932 = vmul.f32 %v3320, %v3503
      %v3933 = vmul.f32 %v3321, %v3513
      %v3934 = vmul.f32 %v3322, %v3523
      %v3935 = vmul.f32 %v3323, %v3533
      %v3936 = vmul.f32 %v3324, %v3543
      %v3937 = vmul.f32 %v3325, %v3553
      %v3938 = vmul.f32 %v3326, %v3563
      %v3939 = vmul.f32 %v3327, %v3573
      %v3940 = vmul.f32 %v3328, %v3583
      %v3941 = vmul.f32 %v3329, %v3593
      %v3942 = vmul.f32 %v3330, %v3603
      %v3943 = vmul.f32 %v3331, %v3613
      %v3944 = vmul.f32 %v3332, %v3623
      %v3945 = vmul.f32 %v3333, %v3633
      %v3946 = vmul.f32 %v3334, %v3643
      %v3947 = vmul.f32 %v3335, %v3653
      %v3948 = vmul.f32 %v3336, %v3663
      %v3949 = vmul.f32 %v3337, %v3673
      %v3950 = vmul.f32 %v3338, %v3683
      %v3951 = vmul.f32 %v3339, %v3693
      %v3952 = vmul.f32 %v3340, %v3703
      %v3953 = vmul.f32 %v3341, %v3713
      %v3954 = vmul.f32 %v3342, %v3723
      %v3955 = vmul.f32 %v3343, %v3733
      %v3956 = vmul.f32 %v3344, %v3743
      %v3957 = vmul.f32 %v3345, %v3753
      %v3958 = vmul.f32 %v3346, %v3763
      %v3959 = vmul.f32 %v3347, %v3773
      %v3960 = vmul.f32 %v3348, %v3783
      %v3961 = vmul.f32 %v3349, %v3793
      %v3962 = vmul.f32 %v3350, %v3803
      %v3963 = vmul.f32 %v3351, %v3813
      %v3964 = vmul.f32 %v3352, %v3823
      %v3965 = vmul.f32 %v3353, %v3833
      %v3966 = vmul.f32 %v3354, %v3843
      %v3967 = vmul.f32 %v3355, %v3853
      %v3968 = vmul.f32 %v3356, %v3863
      %v3969 = vmul.f32 %v3357, %v3873
      %v3970 = vmul.f32 %v3358, %v3883
      %v3971 = vmul.f32 %v3359, %v3893
      %v3972 = vmul.f32 %v3360, %v3903
      %v3973 = vmul.f32 %v3361, %v3913
      %v3974 = vmul.f32 %v3362, %v3923
      %3976 = vset.pattern.permute.xlu0 0
      %3977 = vperm.xlu0 %3976, %v3924
      %v3978 = vpop.permute.xlu0 %3977
      %3981 = vset.pattern.permute.xlu0 0
      %3982 = vperm.xlu0 %3981, %v3925
      %v3983 = vpop.permute.xlu0 %3982
      %3986 = vset.pattern.permute.xlu0 0
      %3987 = vperm.xlu0 %3986, %v3926
      %v3988 = vpop.permute.xlu0 %3987
      %3991 = vset.pattern.permute.xlu0 0
      %3992 = vperm.xlu0 %3991, %v3927
      %v3993 = vpop.permute.xlu0 %3992
      %3996 = vset.pattern.permute.xlu0 0
      %3997 = vperm.xlu0 %3996, %v3928
      %v3998 = vpop.permute.xlu0 %3997
      %4001 = vset.pattern.permute.xlu0 0
      %4002 = vperm.xlu0 %4001, %v3929
      %v4003 = vpop.permute.xlu0 %4002
      %4006 = vset.pattern.permute.xlu0 0
      %4007 = vperm.xlu0 %4006, %v3930
      %v4008 = vpop.permute.xlu0 %4007
      %4011 = vset.pattern.permute.xlu0 0
      %4012 = vperm.xlu0 %4011, %v3931
      %v4013 = vpop.permute.xlu0 %4012
      %4016 = vset.pattern.permute.xlu0 0
      %4017 = vperm.xlu0 %4016, %v3932
      %v4018 = vpop.permute.xlu0 %4017
      %4021 = vset.pattern.permute.xlu0 0
      %4022 = vperm.xlu0 %4021, %v3933
      %v4023 = vpop.permute.xlu0 %4022
      %4026 = vset.pattern.permute.xlu0 0
      %4027 = vperm.xlu0 %4026, %v3934
      %v4028 = vpop.permute.xlu0 %4027
      %4031 = vset.pattern.permute.xlu0 0
      %4032 = vperm.xlu0 %4031, %v3935
      %v4033 = vpop.permute.xlu0 %4032
      %4036 = vset.pattern.permute.xlu0 0
      %4037 = vperm.xlu0 %4036, %v3936
      %v4038 = vpop.permute.xlu0 %4037
      %4041 = vset.pattern.permute.xlu0 0
      %4042 = vperm.xlu0 %4041, %v3937
      %v4043 = vpop.permute.xlu0 %4042
      %4046 = vset.pattern.permute.xlu0 0
      %4047 = vperm.xlu0 %4046, %v3938
      %v4048 = vpop.permute.xlu0 %4047
      %4051 = vset.pattern.permute.xlu0 0
      %4052 = vperm.xlu0 %4051, %v3939
      %v4053 = vpop.permute.xlu0 %4052
      %4056 = vset.pattern.permute.xlu0 0
      %4057 = vperm.xlu0 %4056, %v3940
      %v4058 = vpop.permute.xlu0 %4057
      %4061 = vset.pattern.permute.xlu0 0
      %4062 = vperm.xlu0 %4061, %v3941
      %v4063 = vpop.permute.xlu0 %4062
      %4066 = vset.pattern.permute.xlu0 0
      %4067 = vperm.xlu0 %4066, %v3942
      %v4068 = vpop.permute.xlu0 %4067
      %4071 = vset.pattern.permute.xlu0 0
      %4072 = vperm.xlu0 %4071, %v3943
      %v4073 = vpop.permute.xlu0 %4072
      %4076 = vset.pattern.permute.xlu0 0
      %4077 = vperm.xlu0 %4076, %v3944
      %v4078 = vpop.permute.xlu0 %4077
      %4081 = vset.pattern.permute.xlu0 0
      %4082 = vperm.xlu0 %4081, %v3945
      %v4083 = vpop.permute.xlu0 %4082
      %4086 = vset.pattern.permute.xlu0 0
      %4087 = vperm.xlu0 %4086, %v3946
      %v4088 = vpop.permute.xlu0 %4087
      %4091 = vset.pattern.permute.xlu0 0
      %4092 = vperm.xlu0 %4091, %v3947
      %v4093 = vpop.permute.xlu0 %4092
      %4096 = vset.pattern.permute.xlu0 0
      %4097 = vperm.xlu0 %4096, %v3948
      %v4098 = vpop.permute.xlu0 %4097
      %4101 = vset.pattern.permute.xlu0 0
      %4102 = vperm.xlu0 %4101, %v3949
      %v4103 = vpop.permute.xlu0 %4102
      %4106 = vset.pattern.permute.xlu0 0
      %4107 = vperm.xlu0 %4106, %v3950
      %v4108 = vpop.permute.xlu0 %4107
      %4111 = vset.pattern.permute.xlu0 0
      %4112 = vperm.xlu0 %4111, %v3951
      %v4113 = vpop.permute.xlu0 %4112
      %4116 = vset.pattern.permute.xlu0 0
      %4117 = vperm.xlu0 %4116, %v3952
      %v4118 = vpop.permute.xlu0 %4117
      %4121 = vset.pattern.permute.xlu0 0
      %4122 = vperm.xlu0 %4121, %v3953
      %v4123 = vpop.permute.xlu0 %4122
      %4126 = vset.pattern.permute.xlu0 0
      %4127 = vperm.xlu0 %4126, %v3954
      %v4128 = vpop.permute.xlu0 %4127
      %4131 = vset.pattern.permute.xlu0 0
      %4132 = vperm.xlu0 %4131, %v3955
      %v4133 = vpop.permute.xlu0 %4132
      %4136 = vset.pattern.permute.xlu0 0
      %4137 = vperm.xlu0 %4136, %v3956
      %v4138 = vpop.permute.xlu0 %4137
      %4141 = vset.pattern.permute.xlu0 0
      %4142 = vperm.xlu0 %4141, %v3957
      %v4143 = vpop.permute.xlu0 %4142
      %4146 = vset.pattern.permute.xlu0 0
      %4147 = vperm.xlu0 %4146, %v3958
      %v4148 = vpop.permute.xlu0 %4147
      %4151 = vset.pattern.permute.xlu0 0
      %4152 = vperm.xlu0 %4151, %v3959
      %v4153 = vpop.permute.xlu0 %4152
      %4156 = vset.pattern.permute.xlu0 0
      %4157 = vperm.xlu0 %4156, %v3960
      %v4158 = vpop.permute.xlu0 %4157
      %4161 = vset.pattern.permute.xlu0 0
      %4162 = vperm.xlu0 %4161, %v3961
      %v4163 = vpop.permute.xlu0 %4162
      %4166 = vset.pattern.permute.xlu0 0
      %4167 = vperm.xlu0 %4166, %v3962
      %v4168 = vpop.permute.xlu0 %4167
      %4171 = vset.pattern.permute.xlu0 0
      %4172 = vperm.xlu0 %4171, %v3963
      %v4173 = vpop.permute.xlu0 %4172
      %4176 = vset.pattern.permute.xlu0 0
      %4177 = vperm.xlu0 %4176, %v3964
      %v4178 = vpop.permute.xlu0 %4177
      %4181 = vset.pattern.permute.xlu0 0
      %4182 = vperm.xlu0 %4181, %v3965
      %v4183 = vpop.permute.xlu0 %4182
      %4186 = vset.pattern.permute.xlu0 0
      %4187 = vperm.xlu0 %4186, %v3966
      %v4188 = vpop.permute.xlu0 %4187
      %4191 = vset.pattern.permute.xlu0 0
      %4192 = vperm.xlu0 %4191, %v3967
      %v4193 = vpop.permute.xlu0 %4192
      %4196 = vset.pattern.permute.xlu0 0
      %4197 = vperm.xlu0 %4196, %v3968
      %v4198 = vpop.permute.xlu0 %4197
      %4201 = vset.pattern.permute.xlu0 0
      %4202 = vperm.xlu0 %4201, %v3969
      %v4203 = vpop.permute.xlu0 %4202
      %4206 = vset.pattern.permute.xlu0 0
      %4207 = vperm.xlu0 %4206, %v3970
      %v4208 = vpop.permute.xlu0 %4207
      %4211 = vset.pattern.permute.xlu0 0
      %4212 = vperm.xlu0 %4211, %v3971
      %v4213 = vpop.permute.xlu0 %4212
      %4216 = vset.pattern.permute.xlu0 0
      %4217 = vperm.xlu0 %4216, %v3972
      %v4218 = vpop.permute.xlu0 %4217
      %4221 = vset.pattern.permute.xlu0 0
      %4222 = vperm.xlu0 %4221, %v3973
      %v4223 = vpop.permute.xlu0 %4222
      %4226 = vset.pattern.permute.xlu0 0
      %4227 = vperm.xlu0 %4226, %v3974
      %v4228 = vpop.permute.xlu0 %4227
      %v4230 = vmul.f32 %v2853, %v3978
      %v4231 = vmul.f32 %v2854, %v3978
      %v4232 = vmul.f32 %v2855, %v3983
      %v4233 = vmul.f32 %v2856, %v3983
      %v4234 = vmul.f32 %v2857, %v3988
      %v4235 = vmul.f32 %v2858, %v3988
      %v4236 = vmul.f32 %v2859, %v3993
      %v4237 = vmul.f32 %v2860, %v3993
      %v4238 = vmul.f32 %v2861, %v3998
      %v4239 = vmul.f32 %v2862, %v3998
      %v4240 = vmul.f32 %v2863, %v4003
      %v4241 = vmul.f32 %v2864, %v4003
      %v4242 = vmul.f32 %v2865, %v4008
      %v4243 = vmul.f32 %v2866, %v4008
      %v4244 = vmul.f32 %v2867, %v4013
      %v4245 = vmul.f32 %v2868, %v4013
      %v4246 = vmul.f32 %v2869, %v4018
      %v4247 = vmul.f32 %v2870, %v4018
      %v4248 = vmul.f32 %v2871, %v4023
      %v4249 = vmul.f32 %v2872, %v4023
      %v4250 = vmul.f32 %v2873, %v4028
      %v4251 = vmul.f32 %v2874, %v4028
      %v4252 = vmul.f32 %v2875, %v4033
      %v4253 = vmul.f32 %v2876, %v4033
      %v4254 = vmul.f32 %v2877, %v4038
      %v4255 = vmul.f32 %v2878, %v4038
      %v4256 = vmul.f32 %v2879, %v4043
      %v4257 = vmul.f32 %v2880, %v4043
      %v4258 = vmul.f32 %v2881, %v4048
      %v4259 = vmul.f32 %v2882, %v4048
      %v4260 = vmul.f32 %v2883, %v4053
      %v4261 = vmul.f32 %v2884, %v4053
      %v4262 = vmul.f32 %v2885, %v4058
      %v4263 = vmul.f32 %v2886, %v4058
      %v4264 = vmul.f32 %v2887, %v4063
      %v4265 = vmul.f32 %v2888, %v4063
      %v4266 = vmul.f32 %v2889, %v4068
      %v4267 = vmul.f32 %v2890, %v4068
      %v4268 = vmul.f32 %v2891, %v4073
      %v4269 = vmul.f32 %v2892, %v4073
      %v4270 = vmul.f32 %v2893, %v4078
      %v4271 = vmul.f32 %v2894, %v4078
      %v4272 = vmul.f32 %v2895, %v4083
      %v4273 = vmul.f32 %v2896, %v4083
      %v4274 = vmul.f32 %v2897, %v4088
      %v4275 = vmul.f32 %v2898, %v4088
      %v4276 = vmul.f32 %v2899, %v4093
      %v4277 = vmul.f32 %v2900, %v4093
      %v4278 = vmul.f32 %v2901, %v4098
      %v4279 = vmul.f32 %v2902, %v4098
      %v4280 = vmul.f32 %v2903, %v4103
      %v4281 = vmul.f32 %v2904, %v4103
      %v4282 = vmul.f32 %v2905, %v4108
      %v4283 = vmul.f32 %v2906, %v4108
      %v4284 = vmul.f32 %v2907, %v4113
      %v4285 = vmul.f32 %v2908, %v4113
      %v4286 = vmul.f32 %v2909, %v4118
      %v4287 = vmul.f32 %v2910, %v4118
      %v4288 = vmul.f32 %v2911, %v4123
      %v4289 = vmul.f32 %v2912, %v4123
      %v4290 = vmul.f32 %v2913, %v4128
      %v4291 = vmul.f32 %v2914, %v4128
      %v4292 = vmul.f32 %v2915, %v4133
      %v4293 = vmul.f32 %v2916, %v4133
      %v4294 = vmul.f32 %v2917, %v4138
      %v4295 = vmul.f32 %v2918, %v4138
      %v4296 = vmul.f32 %v2919, %v4143
      %v4297 = vmul.f32 %v2920, %v4143
      %v4298 = vmul.f32 %v2921, %v4148
      %v4299 = vmul.f32 %v2922, %v4148
      %v4300 = vmul.f32 %v2923, %v4153
      %v4301 = vmul.f32 %v2924, %v4153
      %v4302 = vmul.f32 %v2925, %v4158
      %v4303 = vmul.f32 %v2926, %v4158
      %v4304 = vmul.f32 %v2927, %v4163
      %v4305 = vmul.f32 %v2928, %v4163
      %v4306 = vmul.f32 %v2929, %v4168
      %v4307 = vmul.f32 %v2930, %v4168
      %v4308 = vmul.f32 %v2931, %v4173
      %v4309 = vmul.f32 %v2932, %v4173
      %v4310 = vmul.f32 %v2933, %v4178
      %v4311 = vmul.f32 %v2934, %v4178
      %v4312 = vmul.f32 %v2935, %v4183
      %v4313 = vmul.f32 %v2936, %v4183
      %v4314 = vmul.f32 %v2937, %v4188
      %v4315 = vmul.f32 %v2938, %v4188
      %v4316 = vmul.f32 %v2939, %v4193
      %v4317 = vmul.f32 %v2940, %v4193
      %v4318 = vmul.f32 %v2941, %v4198
      %v4319 = vmul.f32 %v2942, %v4198
      %v4320 = vmul.f32 %v2943, %v4203
      %v4321 = vmul.f32 %v2944, %v4203
      %v4322 = vmul.f32 %v2945, %v4208
      %v4323 = vmul.f32 %v2946, %v4208
      %v4324 = vmul.f32 %v2947, %v4213
      %v4325 = vmul.f32 %v2948, %v4213
      %v4326 = vmul.f32 %v2949, %v4218
      %v4327 = vmul.f32 %v2950, %v4218
      %v4328 = vmul.f32 %v2951, %v4223
      %v4329 = vmul.f32 %v2952, %v4223
      %v4330 = vmul.f32 %v2953, %v4228
      %v4331 = vmul.f32 %v2954, %v4228
      %v4332 = vld [vmem:[%s295] sm:$0xff]
      %v4333 = vld [vmem:[%s295 + $0x8] sm:$0xff]
      %v4334 = vld [vmem:[%s295 + $0x10] sm:$0xff]
      %v4335 = vld [vmem:[%s295 + $0x18] sm:$0xff]
      %v4336 = vld [vmem:[%s295 + $0x20] sm:$0xff]
      %v4337 = vld [vmem:[%s295 + $0x28] sm:$0xff]
      %v4338 = vld [vmem:[%s295 + $0x30] sm:$0xff]
      %v4339 = vld [vmem:[%s295 + $0x38] sm:$0xff]
      %v4340 = vld [vmem:[%s295 + $0x40] sm:$0xff]
      %v4341 = vld [vmem:[%s295 + $0x48] sm:$0xff]
      %v4342 = vld [vmem:[%s295 + $0x50] sm:$0xff]
      %v4343 = vld [vmem:[%s295 + $0x58] sm:$0xff]
      %v4344 = vld [vmem:[%s295 + $0x60] sm:$0xff]
      %v4345 = vld [vmem:[%s295 + $0x68] sm:$0xff]
      %v4346 = vld [vmem:[%s295 + $0x70] sm:$0xff]
      %v4347 = vld [vmem:[%s295 + $0x78] sm:$0xff]
      %v4348 = vld [vmem:[%s295 + $0x80] sm:$0xff]
      %v4349 = vld [vmem:[%s295 + $0x88] sm:$0xff]
      %v4350 = vld [vmem:[%s295 + $0x90] sm:$0xff]
      %v4351 = vld [vmem:[%s295 + $0x98] sm:$0xff]
      %v4352 = vld [vmem:[%s295 + $0xa0] sm:$0xff]
      %v4353 = vld [vmem:[%s295 + $0xa8] sm:$0xff]
      %v4354 = vld [vmem:[%s295 + $0xb0] sm:$0xff]
      %v4355 = vld [vmem:[%s295 + $0xb8] sm:$0xff]
      %v4356 = vld [vmem:[%s295 + $0xc0] sm:$0xff]
      %v4357 = vld [vmem:[%s295 + $0xc8] sm:$0xff]
      %v4358 = vld [vmem:[%s295 + $0xd0] sm:$0xff]
      %v4359 = vld [vmem:[%s295 + $0xd8] sm:$0xff]
      %v4360 = vld [vmem:[%s295 + $0xe0] sm:$0xff]
      %v4361 = vld [vmem:[%s295 + $0xe8] sm:$0xff]
      %v4362 = vld [vmem:[%s295 + $0xf0] sm:$0xff]
      %v4363 = vld [vmem:[%s295 + $0xf8] sm:$0xff]
      %v4364 = vld [vmem:[%s295 + $0x100] sm:$0xff]
      %v4365 = vld [vmem:[%s295 + $0x108] sm:$0xff]
      %v4366 = vld [vmem:[%s295 + $0x110] sm:$0xff]
      %v4367 = vld [vmem:[%s295 + $0x118] sm:$0xff]
      %v4368 = vld [vmem:[%s295 + $0x120] sm:$0xff]
      %v4369 = vld [vmem:[%s295 + $0x128] sm:$0xff]
      %v4370 = vld [vmem:[%s295 + $0x130] sm:$0xff]
      %v4371 = vld [vmem:[%s295 + $0x138] sm:$0xff]
      %v4372 = vld [vmem:[%s295 + $0x140] sm:$0xff]
      %v4373 = vld [vmem:[%s295 + $0x148] sm:$0xff]
      %v4374 = vld [vmem:[%s295 + $0x150] sm:$0xff]
      %v4375 = vld [vmem:[%s295 + $0x158] sm:$0xff]
      %v4376 = vld [vmem:[%s295 + $0x160] sm:$0xff]
      %v4377 = vld [vmem:[%s295 + $0x168] sm:$0xff]
      %v4378 = vld [vmem:[%s295 + $0x170] sm:$0xff]
      %v4379 = vld [vmem:[%s295 + $0x178] sm:$0xff]
      %v4380 = vld [vmem:[%s295 + $0x180] sm:$0xff]
      %v4381 = vld [vmem:[%s295 + $0x188] sm:$0xff]
      %v4382 = vld [vmem:[%s295 + $0x190] sm:$0xff]
      %4384 = vset.pattern.permute.xlu0 0
      %4385 = vperm.xlu0 %4384, %v4332
      %v4386 = vpop.permute.xlu0 %4385
      %4389 = vset.pattern.permute.xlu0 0
      %4390 = vperm.xlu0 %4389, %v4333
      %v4391 = vpop.permute.xlu0 %4390
      %4394 = vset.pattern.permute.xlu0 0
      %4395 = vperm.xlu0 %4394, %v4334
      %v4396 = vpop.permute.xlu0 %4395
      %4399 = vset.pattern.permute.xlu0 0
      %4400 = vperm.xlu0 %4399, %v4335
      %v4401 = vpop.permute.xlu0 %4400
      %4404 = vset.pattern.permute.xlu0 0
      %4405 = vperm.xlu0 %4404, %v4336
      %v4406 = vpop.permute.xlu0 %4405
      %4409 = vset.pattern.permute.xlu0 0
      %4410 = vperm.xlu0 %4409, %v4337
      %v4411 = vpop.permute.xlu0 %4410
      %4414 = vset.pattern.permute.xlu0 0
      %4415 = vperm.xlu0 %4414, %v4338
      %v4416 = vpop.permute.xlu0 %4415
      %4419 = vset.pattern.permute.xlu0 0
      %4420 = vperm.xlu0 %4419, %v4339
      %v4421 = vpop.permute.xlu0 %4420
      %4424 = vset.pattern.permute.xlu0 0
      %4425 = vperm.xlu0 %4424, %v4340
      %v4426 = vpop.permute.xlu0 %4425
      %4429 = vset.pattern.permute.xlu0 0
      %4430 = vperm.xlu0 %4429, %v4341
      %v4431 = vpop.permute.xlu0 %4430
      %4434 = vset.pattern.permute.xlu0 0
      %4435 = vperm.xlu0 %4434, %v4342
      %v4436 = vpop.permute.xlu0 %4435
      %4439 = vset.pattern.permute.xlu0 0
      %4440 = vperm.xlu0 %4439, %v4343
      %v4441 = vpop.permute.xlu0 %4440
      %4444 = vset.pattern.permute.xlu0 0
      %4445 = vperm.xlu0 %4444, %v4344
      %v4446 = vpop.permute.xlu0 %4445
      %4449 = vset.pattern.permute.xlu0 0
      %4450 = vperm.xlu0 %4449, %v4345
      %v4451 = vpop.permute.xlu0 %4450
      %4454 = vset.pattern.permute.xlu0 0
      %4455 = vperm.xlu0 %4454, %v4346
      %v4456 = vpop.permute.xlu0 %4455
      %4459 = vset.pattern.permute.xlu0 0
      %4460 = vperm.xlu0 %4459, %v4347
      %v4461 = vpop.permute.xlu0 %4460
      %4464 = vset.pattern.permute.xlu0 0
      %4465 = vperm.xlu0 %4464, %v4348
      %v4466 = vpop.permute.xlu0 %4465
      %4469 = vset.pattern.permute.xlu0 0
      %4470 = vperm.xlu0 %4469, %v4349
      %v4471 = vpop.permute.xlu0 %4470
      %4474 = vset.pattern.permute.xlu0 0
      %4475 = vperm.xlu0 %4474, %v4350
      %v4476 = vpop.permute.xlu0 %4475
      %4479 = vset.pattern.permute.xlu0 0
      %4480 = vperm.xlu0 %4479, %v4351
      %v4481 = vpop.permute.xlu0 %4480
      %4484 = vset.pattern.permute.xlu0 0
      %4485 = vperm.xlu0 %4484, %v4352
      %v4486 = vpop.permute.xlu0 %4485
      %4489 = vset.pattern.permute.xlu0 0
      %4490 = vperm.xlu0 %4489, %v4353
      %v4491 = vpop.permute.xlu0 %4490
      %4494 = vset.pattern.permute.xlu0 0
      %4495 = vperm.xlu0 %4494, %v4354
      %v4496 = vpop.permute.xlu0 %4495
      %4499 = vset.pattern.permute.xlu0 0
      %4500 = vperm.xlu0 %4499, %v4355
      %v4501 = vpop.permute.xlu0 %4500
      %4504 = vset.pattern.permute.xlu0 0
      %4505 = vperm.xlu0 %4504, %v4356
      %v4506 = vpop.permute.xlu0 %4505
      %4509 = vset.pattern.permute.xlu0 0
      %4510 = vperm.xlu0 %4509, %v4357
      %v4511 = vpop.permute.xlu0 %4510
      %4514 = vset.pattern.permute.xlu0 0
      %4515 = vperm.xlu0 %4514, %v4358
      %v4516 = vpop.permute.xlu0 %4515
      %4519 = vset.pattern.permute.xlu0 0
      %4520 = vperm.xlu0 %4519, %v4359
      %v4521 = vpop.permute.xlu0 %4520
      %4524 = vset.pattern.permute.xlu0 0
      %4525 = vperm.xlu0 %4524, %v4360
      %v4526 = vpop.permute.xlu0 %4525
      %4529 = vset.pattern.permute.xlu0 0
      %4530 = vperm.xlu0 %4529, %v4361
      %v4531 = vpop.permute.xlu0 %4530
      %4534 = vset.pattern.permute.xlu0 0
      %4535 = vperm.xlu0 %4534, %v4362
      %v4536 = vpop.permute.xlu0 %4535
      %4539 = vset.pattern.permute.xlu0 0
      %4540 = vperm.xlu0 %4539, %v4363
      %v4541 = vpop.permute.xlu0 %4540
      %4544 = vset.pattern.permute.xlu0 0
      %4545 = vperm.xlu0 %4544, %v4364
      %v4546 = vpop.permute.xlu0 %4545
      %4549 = vset.pattern.permute.xlu0 0
      %4550 = vperm.xlu0 %4549, %v4365
      %v4551 = vpop.permute.xlu0 %4550
      %4554 = vset.pattern.permute.xlu0 0
      %4555 = vperm.xlu0 %4554, %v4366
      %v4556 = vpop.permute.xlu0 %4555
      %4559 = vset.pattern.permute.xlu0 0
      %4560 = vperm.xlu0 %4559, %v4367
      %v4561 = vpop.permute.xlu0 %4560
      %4564 = vset.pattern.permute.xlu0 0
      %4565 = vperm.xlu0 %4564, %v4368
      %v4566 = vpop.permute.xlu0 %4565
      %4569 = vset.pattern.permute.xlu0 0
      %4570 = vperm.xlu0 %4569, %v4369
      %v4571 = vpop.permute.xlu0 %4570
      %4574 = vset.pattern.permute.xlu0 0
      %4575 = vperm.xlu0 %4574, %v4370
      %v4576 = vpop.permute.xlu0 %4575
      %4579 = vset.pattern.permute.xlu0 0
      %4580 = vperm.xlu0 %4579, %v4371
      %v4581 = vpop.permute.xlu0 %4580
      %4584 = vset.pattern.permute.xlu0 0
      %4585 = vperm.xlu0 %4584, %v4372
      %v4586 = vpop.permute.xlu0 %4585
      %4589 = vset.pattern.permute.xlu0 0
      %4590 = vperm.xlu0 %4589, %v4373
      %v4591 = vpop.permute.xlu0 %4590
      %4594 = vset.pattern.permute.xlu0 0
      %4595 = vperm.xlu0 %4594, %v4374
      %v4596 = vpop.permute.xlu0 %4595
      %4599 = vset.pattern.permute.xlu0 0
      %4600 = vperm.xlu0 %4599, %v4375
      %v4601 = vpop.permute.xlu0 %4600
      %4604 = vset.pattern.permute.xlu0 0
      %4605 = vperm.xlu0 %4604, %v4376
      %v4606 = vpop.permute.xlu0 %4605
      %4609 = vset.pattern.permute.xlu0 0
      %4610 = vperm.xlu0 %4609, %v4377
      %v4611 = vpop.permute.xlu0 %4610
      %4614 = vset.pattern.permute.xlu0 0
      %4615 = vperm.xlu0 %4614, %v4378
      %v4616 = vpop.permute.xlu0 %4615
      %4619 = vset.pattern.permute.xlu0 0
      %4620 = vperm.xlu0 %4619, %v4379
      %v4621 = vpop.permute.xlu0 %4620
      %4624 = vset.pattern.permute.xlu0 0
      %4625 = vperm.xlu0 %4624, %v4380
      %v4626 = vpop.permute.xlu0 %4625
      %4629 = vset.pattern.permute.xlu0 0
      %4630 = vperm.xlu0 %4629, %v4381
      %v4631 = vpop.permute.xlu0 %4630
      %4634 = vset.pattern.permute.xlu0 0
      %4635 = vperm.xlu0 %4634, %v4382
      %v4636 = vpop.permute.xlu0 %4635
      %v4638 = vadd.f32 %v4230, %v4386
      %v4639 = vadd.f32 %v4231, %v4386
      %v4640 = vadd.f32 %v4232, %v4391
      %v4641 = vadd.f32 %v4233, %v4391
      %v4642 = vadd.f32 %v4234, %v4396
      %v4643 = vadd.f32 %v4235, %v4396
      %v4644 = vadd.f32 %v4236, %v4401
      %v4645 = vadd.f32 %v4237, %v4401
      %v4646 = vadd.f32 %v4238, %v4406
      %v4647 = vadd.f32 %v4239, %v4406
      %v4648 = vadd.f32 %v4240, %v4411
      %v4649 = vadd.f32 %v4241, %v4411
      %v4650 = vadd.f32 %v4242, %v4416
      %v4651 = vadd.f32 %v4243, %v4416
      %v4652 = vadd.f32 %v4244, %v4421
      %v4653 = vadd.f32 %v4245, %v4421
      %v4654 = vadd.f32 %v4246, %v4426
      %v4655 = vadd.f32 %v4247, %v4426
      %v4656 = vadd.f32 %v4248, %v4431
      %v4657 = vadd.f32 %v4249, %v4431
      %v4658 = vadd.f32 %v4250, %v4436
      %v4659 = vadd.f32 %v4251, %v4436
      %v4660 = vadd.f32 %v4252, %v4441
      %v4661 = vadd.f32 %v4253, %v4441
      %v4662 = vadd.f32 %v4254, %v4446
      %v4663 = vadd.f32 %v4255, %v4446
      %v4664 = vadd.f32 %v4256, %v4451
      %v4665 = vadd.f32 %v4257, %v4451
      %v4666 = vadd.f32 %v4258, %v4456
      %v4667 = vadd.f32 %v4259, %v4456
      %v4668 = vadd.f32 %v4260, %v4461
      %v4669 = vadd.f32 %v4261, %v4461
      %v4670 = vadd.f32 %v4262, %v4466
      %v4671 = vadd.f32 %v4263, %v4466
      %v4672 = vadd.f32 %v4264, %v4471
      %v4673 = vadd.f32 %v4265, %v4471
      %v4674 = vadd.f32 %v4266, %v4476
      %v4675 = vadd.f32 %v4267, %v4476
      %v4676 = vadd.f32 %v4268, %v4481
      %v4677 = vadd.f32 %v4269, %v4481
      %v4678 = vadd.f32 %v4270, %v4486
      %v4679 = vadd.f32 %v4271, %v4486
      %v4680 = vadd.f32 %v4272, %v4491
      %v4681 = vadd.f32 %v4273, %v4491
      %v4682 = vadd.f32 %v4274, %v4496
      %v4683 = vadd.f32 %v4275, %v4496
      %v4684 = vadd.f32 %v4276, %v4501
      %v4685 = vadd.f32 %v4277, %v4501
      %v4686 = vadd.f32 %v4278, %v4506
      %v4687 = vadd.f32 %v4279, %v4506
      %v4688 = vadd.f32 %v4280, %v4511
      %v4689 = vadd.f32 %v4281, %v4511
      %v4690 = vadd.f32 %v4282, %v4516
      %v4691 = vadd.f32 %v4283, %v4516
      %v4692 = vadd.f32 %v4284, %v4521
      %v4693 = vadd.f32 %v4285, %v4521
      %v4694 = vadd.f32 %v4286, %v4526
      %v4695 = vadd.f32 %v4287, %v4526
      %v4696 = vadd.f32 %v4288, %v4531
      %v4697 = vadd.f32 %v4289, %v4531
      %v4698 = vadd.f32 %v4290, %v4536
      %v4699 = vadd.f32 %v4291, %v4536
      %v4700 = vadd.f32 %v4292, %v4541
      %v4701 = vadd.f32 %v4293, %v4541
      %v4702 = vadd.f32 %v4294, %v4546
      %v4703 = vadd.f32 %v4295, %v4546
      %v4704 = vadd.f32 %v4296, %v4551
      %v4705 = vadd.f32 %v4297, %v4551
      %v4706 = vadd.f32 %v4298, %v4556
      %v4707 = vadd.f32 %v4299, %v4556
      %v4708 = vadd.f32 %v4300, %v4561
      %v4709 = vadd.f32 %v4301, %v4561
      %v4710 = vadd.f32 %v4302, %v4566
      %v4711 = vadd.f32 %v4303, %v4566
      %v4712 = vadd.f32 %v4304, %v4571
      %v4713 = vadd.f32 %v4305, %v4571
      %v4714 = vadd.f32 %v4306, %v4576
      %v4715 = vadd.f32 %v4307, %v4576
      %v4716 = vadd.f32 %v4308, %v4581
      %v4717 = vadd.f32 %v4309, %v4581
      %v4718 = vadd.f32 %v4310, %v4586
      %v4719 = vadd.f32 %v4311, %v4586
      %v4720 = vadd.f32 %v4312, %v4591
      %v4721 = vadd.f32 %v4313, %v4591
      %v4722 = vadd.f32 %v4314, %v4596
      %v4723 = vadd.f32 %v4315, %v4596
      %v4724 = vadd.f32 %v4316, %v4601
      %v4725 = vadd.f32 %v4317, %v4601
      %v4726 = vadd.f32 %v4318, %v4606
      %v4727 = vadd.f32 %v4319, %v4606
      %v4728 = vadd.f32 %v4320, %v4611
      %v4729 = vadd.f32 %v4321, %v4611
      %v4730 = vadd.f32 %v4322, %v4616
      %v4731 = vadd.f32 %v4323, %v4616
      %v4732 = vadd.f32 %v4324, %v4621
      %v4733 = vadd.f32 %v4325, %v4621
      %v4734 = vadd.f32 %v4326, %v4626
      %v4735 = vadd.f32 %v4327, %v4626
      %v4736 = vadd.f32 %v4328, %v4631
      %v4737 = vadd.f32 %v4329, %v4631
      %v4738 = vadd.f32 %v4330, %v4636
      %v4739 = vadd.f32 %v4331, %v4636
      %4740 = vst [vmem:[%s302] sm:$0xff] %v4638
      %4741 = vst.msk [vmem:[%s302 + $0x8] sm:$0xff] %vm1209, %v4639
      %4742 = vst [vmem:[%s302 + $0x10] sm:$0xff] %v4640
      %4743 = vst.msk [vmem:[%s302 + $0x18] sm:$0xff] %vm1209, %v4641
      %4744 = vst [vmem:[%s302 + $0x20] sm:$0xff] %v4642
      %4745 = vst.msk [vmem:[%s302 + $0x28] sm:$0xff] %vm1209, %v4643
      %4746 = vst [vmem:[%s302 + $0x30] sm:$0xff] %v4644
      %4747 = vst.msk [vmem:[%s302 + $0x38] sm:$0xff] %vm1209, %v4645
      %4748 = vst [vmem:[%s302 + $0x40] sm:$0xff] %v4646
      %4749 = vst.msk [vmem:[%s302 + $0x48] sm:$0xff] %vm1209, %v4647
      %4750 = vst [vmem:[%s302 + $0x50] sm:$0xff] %v4648
      %4751 = vst.msk [vmem:[%s302 + $0x58] sm:$0xff] %vm1209, %v4649
      %4752 = vst [vmem:[%s302 + $0x60] sm:$0xff] %v4650
      %4753 = vst.msk [vmem:[%s302 + $0x68] sm:$0xff] %vm1209, %v4651
      %4754 = vst [vmem:[%s302 + $0x70] sm:$0xff] %v4652
      %4755 = vst.msk [vmem:[%s302 + $0x78] sm:$0xff] %vm1209, %v4653
      %4756 = vst [vmem:[%s302 + $0x80] sm:$0xff] %v4654
      %4757 = vst.msk [vmem:[%s302 + $0x88] sm:$0xff] %vm1209, %v4655
      %4758 = vst [vmem:[%s302 + $0x90] sm:$0xff] %v4656
      %4759 = vst.msk [vmem:[%s302 + $0x98] sm:$0xff] %vm1209, %v4657
      %4760 = vst [vmem:[%s302 + $0xa0] sm:$0xff] %v4658
      %4761 = vst.msk [vmem:[%s302 + $0xa8] sm:$0xff] %vm1209, %v4659
      %4762 = vst [vmem:[%s302 + $0xb0] sm:$0xff] %v4660
      %4763 = vst.msk [vmem:[%s302 + $0xb8] sm:$0xff] %vm1209, %v4661
      %4764 = vst [vmem:[%s302 + $0xc0] sm:$0xff] %v4662
      %4765 = vst.msk [vmem:[%s302 + $0xc8] sm:$0xff] %vm1209, %v4663
      %4766 = vst [vmem:[%s302 + $0xd0] sm:$0xff] %v4664
      %4767 = vst.msk [vmem:[%s302 + $0xd8] sm:$0xff] %vm1209, %v4665
      %4768 = vst [vmem:[%s302 + $0xe0] sm:$0xff] %v4666
      %4769 = vst.msk [vmem:[%s302 + $0xe8] sm:$0xff] %vm1209, %v4667
      %4770 = vst [vmem:[%s302 + $0xf0] sm:$0xff] %v4668
      %4771 = vst.msk [vmem:[%s302 + $0xf8] sm:$0xff] %vm1209, %v4669
      %4772 = vst [vmem:[%s302 + $0x100] sm:$0xff] %v4670
      %4773 = vst.msk [vmem:[%s302 + $0x108] sm:$0xff] %vm1209, %v4671
      %4774 = vst [vmem:[%s302 + $0x110] sm:$0xff] %v4672
      %4775 = vst.msk [vmem:[%s302 + $0x118] sm:$0xff] %vm1209, %v4673
      %4776 = vst [vmem:[%s302 + $0x120] sm:$0xff] %v4674
      %4777 = vst.msk [vmem:[%s302 + $0x128] sm:$0xff] %vm1209, %v4675
      %4778 = vst [vmem:[%s302 + $0x130] sm:$0xff] %v4676
      %4779 = vst.msk [vmem:[%s302 + $0x138] sm:$0xff] %vm1209, %v4677
      %4780 = vst [vmem:[%s302 + $0x140] sm:$0xff] %v4678
      %4781 = vst.msk [vmem:[%s302 + $0x148] sm:$0xff] %vm1209, %v4679
      %4782 = vst [vmem:[%s302 + $0x150] sm:$0xff] %v4680
      %4783 = vst.msk [vmem:[%s302 + $0x158] sm:$0xff] %vm1209, %v4681
      %4784 = vst [vmem:[%s302 + $0x160] sm:$0xff] %v4682
      %4785 = vst.msk [vmem:[%s302 + $0x168] sm:$0xff] %vm1209, %v4683
      %4786 = vst [vmem:[%s302 + $0x170] sm:$0xff] %v4684
      %4787 = vst.msk [vmem:[%s302 + $0x178] sm:$0xff] %vm1209, %v4685
      %4788 = vst [vmem:[%s302 + $0x180] sm:$0xff] %v4686
      %4789 = vst.msk [vmem:[%s302 + $0x188] sm:$0xff] %vm1209, %v4687
      %4790 = vst [vmem:[%s302 + $0x190] sm:$0xff] %v4688
      %4791 = vst.msk [vmem:[%s302 + $0x198] sm:$0xff] %vm1209, %v4689
      %4792 = vst [vmem:[%s302 + $0x1a0] sm:$0xff] %v4690
      %4793 = vst.msk [vmem:[%s302 + $0x1a8] sm:$0xff] %vm1209, %v4691
      %4794 = vst [vmem:[%s302 + $0x1b0] sm:$0xff] %v4692
      %4795 = vst.msk [vmem:[%s302 + $0x1b8] sm:$0xff] %vm1209, %v4693
      %4796 = vst [vmem:[%s302 + $0x1c0] sm:$0xff] %v4694
      %4797 = vst.msk [vmem:[%s302 + $0x1c8] sm:$0xff] %vm1209, %v4695
      %4798 = vst [vmem:[%s302 + $0x1d0] sm:$0xff] %v4696
      %4799 = vst.msk [vmem:[%s302 + $0x1d8] sm:$0xff] %vm1209, %v4697
      %4800 = vst [vmem:[%s302 + $0x1e0] sm:$0xff] %v4698
      %4801 = vst.msk [vmem:[%s302 + $0x1e8] sm:$0xff] %vm1209, %v4699
      %4802 = vst [vmem:[%s302 + $0x1f0] sm:$0xff] %v4700
      %4803 = vst.msk [vmem:[%s302 + $0x1f8] sm:$0xff] %vm1209, %v4701
      %4804 = vst [vmem:[%s302 + $0x200] sm:$0xff] %v4702
      %4805 = vst.msk [vmem:[%s302 + $0x208] sm:$0xff] %vm1209, %v4703
      %4806 = vst [vmem:[%s302 + $0x210] sm:$0xff] %v4704
      %4807 = vst.msk [vmem:[%s302 + $0x218] sm:$0xff] %vm1209, %v4705
      %4808 = vst [vmem:[%s302 + $0x220] sm:$0xff] %v4706
      %4809 = vst.msk [vmem:[%s302 + $0x228] sm:$0xff] %vm1209, %v4707
      %4810 = vst [vmem:[%s302 + $0x230] sm:$0xff] %v4708
      %4811 = vst.msk [vmem:[%s302 + $0x238] sm:$0xff] %vm1209, %v4709
      %4812 = vst [vmem:[%s302 + $0x240] sm:$0xff] %v4710
      %4813 = vst.msk [vmem:[%s302 + $0x248] sm:$0xff] %vm1209, %v4711
      %4814 = vst [vmem:[%s302 + $0x250] sm:$0xff] %v4712
      %4815 = vst.msk [vmem:[%s302 + $0x258] sm:$0xff] %vm1209, %v4713
      %4816 = vst [vmem:[%s302 + $0x260] sm:$0xff] %v4714
      %4817 = vst.msk [vmem:[%s302 + $0x268] sm:$0xff] %vm1209, %v4715
      %4818 = vst [vmem:[%s302 + $0x270] sm:$0xff] %v4716
      %4819 = vst.msk [vmem:[%s302 + $0x278] sm:$0xff] %vm1209, %v4717
      %4820 = vst [vmem:[%s302 + $0x280] sm:$0xff] %v4718
      %4821 = vst.msk [vmem:[%s302 + $0x288] sm:$0xff] %vm1209, %v4719
      %4822 = vst [vmem:[%s302 + $0x290] sm:$0xff] %v4720
      %4823 = vst.msk [vmem:[%s302 + $0x298] sm:$0xff] %vm1209, %v4721
      %4824 = vst [vmem:[%s302 + $0x2a0] sm:$0xff] %v4722
      %4825 = vst.msk [vmem:[%s302 + $0x2a8] sm:$0xff] %vm1209, %v4723
      %4826 = vst [vmem:[%s302 + $0x2b0] sm:$0xff] %v4724
      %4827 = vst.msk [vmem:[%s302 + $0x2b8] sm:$0xff] %vm1209, %v4725
      %4828 = vst [vmem:[%s302 + $0x2c0] sm:$0xff] %v4726
      %4829 = vst.msk [vmem:[%s302 + $0x2c8] sm:$0xff] %vm1209, %v4727
      %4830 = vst [vmem:[%s302 + $0x2d0] sm:$0xff] %v4728
      %4831 = vst.msk [vmem:[%s302 + $0x2d8] sm:$0xff] %vm1209, %v4729
      %4832 = vst [vmem:[%s302 + $0x2e0] sm:$0xff] %v4730
      %4833 = vst.msk [vmem:[%s302 + $0x2e8] sm:$0xff] %vm1209, %v4731
      %4834 = vst [vmem:[%s302 + $0x2f0] sm:$0xff] %v4732
      %4835 = vst.msk [vmem:[%s302 + $0x2f8] sm:$0xff] %vm1209, %v4733
      %4836 = vst [vmem:[%s302 + $0x300] sm:$0xff] %v4734
      %4837 = vst.msk [vmem:[%s302 + $0x308] sm:$0xff] %vm1209, %v4735
      %4838 = vst [vmem:[%s302 + $0x310] sm:$0xff] %v4736
      %4839 = vst.msk [vmem:[%s302 + $0x318] sm:$0xff] %vm1209, %v4737
      %4840 = vst [vmem:[%s302 + $0x320] sm:$0xff] %v4738
      %4841 = vst.msk [vmem:[%s302 + $0x328] sm:$0xff] %vm1209, %v4739
      %s4842 = smul.u32 51, %s17
      %p4843 = scmp.lt.s32.totalorder %s4842, 101
      %s4844 = scalar_select %p4843, %s4842, 101
      %s4845 = smul.addr %s4844, 2
      %s4846 = smul.addr %s4845, 8
      %s4847 = scalar_lea.vmem %s6, %s4846
      // Predicated region
      $region45: #{tpu_custom_call.1} parent=43 // pred_check
        %p4848 = pneg %p176
      $region46: #{tpu_custom_call.1} parent=43 // pred_check_branch
        %4850 = sbr.rel (%p4848) target = $region48
      $region47: #{tpu_custom_call.1} parent=43 // pred_region
        %s4851 = smul.u32 51, %s17
      $region48: #{tpu_custom_call.1} parent=43 // pred_fallthru
        _
    $region44: #{tpu_custom_call.1} parent=5 // pred_fallthru
      _
    %p4852 = scmp.le.s32.totalorder 2, %s12
    // Predicated region
    $region49: #{tpu_custom_call.1} parent=5 // pred_check
      %p4853 = pneg %p4852
    $region50: #{tpu_custom_call.1} parent=5 // pred_check_branch
      %4855 = sbr.rel (%p4853) target = $region52
    $region51: #{tpu_custom_call.1} parent=5 // pred_region
      %s4856 = ssub.s32 %s12, 2
      // Predicated region
      $region53: #{tpu_custom_call.1} parent=51 // pred_check
        %p4857 = pneg %p182
      $region54: #{tpu_custom_call.1} parent=51 // pred_check_branch
        %4859 = sbr.rel (%p4857) target = $region56
      $region55: #{tpu_custom_call.1} parent=51 // pred_region
        %s4860 = smul.u32 51, %s18
        %p4861 = scmp.lt.s32.totalorder %s4860, 101
        %s4862 = scalar_select %p4861, %s4860, 101
        %s4863 = smul.addr %s4862, 2
        %s4864 = smul.addr %s4863, 8
        %s4865 = scalar_lea.vmem %s6, %s4864
      $region56: #{tpu_custom_call.1} parent=51 // pred_fallthru
        _
    $region52: #{tpu_custom_call.1} parent=5 // pred_fallthru
      _
  $region6: #{tpu_custom_call.1} parent=0 // loop_footer
    %s16 = sadd.s32 1, %s12
  $region7: #{tpu_custom_call.1} parent=0 // loop_footer_branch
    %11 = sbr.rel target = $region3
  $region8: #{tpu_custom_call.1} parent=0 // loop_exit
    _

</llo_original>
